<compile_context>
chip_gen: v5e
topology: v5e:2x2
jax: 0.10.0
libtpu: 0.0.40
codegen_flags: <defaults>
</compile_context>

<pallas_src>
import numpy as np
import jax
import jax.numpy as jnp
from jax.experimental import pallas as pl
from jax.experimental.pallas import tpu as pltpu

NUM_JOINTS = 24
NUM_BETAS = 10
POSE_FEAT = (NUM_JOINTS - 1) * 9            # 207
NUM_JOINTS_OUT = NUM_JOINTS + 9 + 17        # 50
SHAPE_K = 3 * NUM_BETAS + 3                 # 33 (block-diag betas + template fold)
TV_MAX = 2048                               # max vertex tile (lane dim), multiple of 128
NUM_SPLITS = 2                              # v7x: two TensorCores; harmless on 1-TC chips

SMPL_PARENTS = np.array(
    [-1, 0, 0, 0, 1, 2, 3, 4, 5, 6, 7, 8, 9, 9, 9, 12, 13, 14, 16, 17, 18, 19, 20, 21],
    dtype=np.int32)


def _choose_tiling(V, num_splits=NUM_SPLITS, tv_max=TV_MAX):
    """Pick lane tile TV (multiple of 128, <= tv_max) and padded Vp = num_splits*steps*TV
    with minimal padding.  V=6890 -> (1728, 6912, 2); V=512 -> (256, 512, 1)."""
    v128 = ((V + 127) // 128) * 128
    steps = 1
    while True:
        tv = -(-v128 // (num_splits * steps))
        tv = ((tv + 127) // 128) * 128
        if tv <= tv_max:
            return tv, num_splits * steps * tv, steps
        steps += 1


def _compiler_params(step_bytes):
    # streamed tiles double/triple-buffered + margin; floor 16 MiB (= v5e scoped default),
    # cap 32 MiB (headroom on v7x's 64 MiB physical VMEM).
    est = 3 * int(step_bytes) + (8 << 20)
    return pltpu.CompilerParams(
        dimension_semantics=("parallel", "arbitrary"),   # (core split, V-tile accumulation)
        vmem_limit_bytes=int(min(max(est, 16 << 20), 32 << 20)))


# ----------------------------- Pallas kernels ----------------------------- #

def _shape_joints_kernel(betas_ref, sd_ref, jreg_ref, vshaped_ref, j_ref):
    # betas_ref: (3B, 33) bf16 block-diag betas + one-hot template columns
    # sd_ref:    (33, TV) bf16 (shapedirs channel-first with template rows appended)
    # jreg_ref:  (24, TV) bf16
    # vshaped_ref: (3B, TV) f32 per-tile output
    # j_ref:     (1, 3B, 24) f32 resident per-core accumulator
    @pl.when(pl.program_id(1) == 0)
    def _init():
        j_ref[...] = jnp.zeros_like(j_ref)

    vs = jnp.dot(betas_ref[...], sd_ref[...],
                 preferred_element_type=jnp.float32)                       # (3B, TV)
    vshaped_ref[...] = vs
    # J[c*B+b, j] += sum_v vs[c*B+b, v] * reg[j, v]   (lane-contraction on both operands)
    j_ref[0] += jax.lax.dot_general(
        vs.astype(jnp.bfloat16), jreg_ref[...], (((1,), (1,)), ((), ())),
        preferred_element_type=jnp.float32)


def _pose_skin_joints_kernel(pf_ref, a_ref, vshaped_ref, pd_ref, w_ref, jreg_ref,
                             verts_ref, j_ref):
    # pf_ref: (3B, 621) bf16 block-diag pose features   a_ref: (16B, 24) bf16, row (4r+k)*B+b
    # vshaped_ref: (3B, TV) f32                         pd_ref: (621, TV) bf16
    # w_ref: (24, TV) bf16                              jreg_ref: (50, TV) bf16
    # verts_ref: (3B, TV) f32 per-tile output; j_ref: (1, 3B, 50) f32 resident accumulator
    @pl.when(pl.program_id(1) == 0)
    def _init():
        j_ref[...] = jnp.zeros_like(j_ref)

    B = vshaped_ref.shape[0] // 3

    # pose blend: single wide dot, then add shaped template
    vp = jnp.dot(pf_ref[...], pd_ref[...],
                 preferred_element_type=jnp.float32) + vshaped_ref[...]    # (3B, TV)
    # per-vertex transforms for all 16 matrix entries in ONE dot
    T = jnp.dot(a_ref[...], w_ref[...],
                preferred_element_type=jnp.float32)                        # (16B, TV)

    vp0, vp1, vp2 = vp[0:B], vp[B:2 * B], vp[2 * B:3 * B]                  # (B, TV) each
    rows = []
    for r in range(3):
        t0 = T[(4 * r + 0) * B:(4 * r + 1) * B]
        t1 = T[(4 * r + 1) * B:(4 * r + 2) * B]
        t2 = T[(4 * r + 2) * B:(4 * r + 3) * B]
        t3 = T[(4 * r + 3) * B:(4 * r + 4) * B]
        rows.append(t0 * vp0 + t1 * vp1 + t2 * vp2 + t3)
    verts = jnp.concatenate(rows, axis=0)                                  # (3B, TV)
    verts_ref[...] = verts                                                 # store once
    # feed the same value (no VMEM read-back) to the 50-joint regression
    j_ref[0] += jax.lax.dot_general(
        verts.astype(jnp.bfloat16), jreg_ref[...], (((1,), (1,)), ((), ())),
        preferred_element_type=jnp.float32)


# ----------------------------- Pallas wrappers ----------------------------- #

def shape_blend_and_joints(betas_aug, sd_aug, jreg_p, tv):
    B3 = betas_aug.shape[0]
    K, Vp = sd_aug.shape
    steps = Vp // (NUM_SPLITS * tv)
    step_bytes = (betas_aug.size * 2
                  + (K + NUM_JOINTS) * tv * 2      # streamed bf16 tiles
                  + B3 * tv * 4                    # vshaped out tile
                  + B3 * tv * 4                    # vs intermediate
                  + NUM_SPLITS * B3 * NUM_JOINTS * 4)
    return pl.pallas_call(
        _shape_joints_kernel,
        out_shape=(jax.ShapeDtypeStruct((B3, Vp), jnp.float32),
                   jax.ShapeDtypeStruct((NUM_SPLITS, B3, NUM_JOINTS), jnp.float32)),
        grid=(NUM_SPLITS, steps),
        in_specs=[
            pl.BlockSpec((B3, K), lambda c, i: (0, 0)),
            pl.BlockSpec((K, tv), lambda c, i, s=steps: (0, c * s + i)),
            pl.BlockSpec((NUM_JOINTS, tv), lambda c, i, s=steps: (0, c * s + i)),
        ],
        out_specs=(pl.BlockSpec((B3, tv), lambda c, i, s=steps: (0, c * s + i)),
                   pl.BlockSpec((1, B3, NUM_JOINTS), lambda c, i: (c, 0, 0))),
        compiler_params=_compiler_params(step_bytes),
    )(betas_aug, sd_aug, jreg_p)


def pose_skin_and_joints(pf_bd, a2, v_shaped_cb, pd2, w_cb, jregcat_p, tv):
    B3, Vp = v_shaped_cb.shape
    B16 = a2.shape[0]
    J_out = jregcat_p.shape[0]
    steps = Vp // (NUM_SPLITS * tv)
    step_bytes = (pf_bd.size * 2 + a2.size * 2
                  + B3 * tv * 4                              # vshaped in tile
                  + (pd2.shape[0] + NUM_JOINTS + J_out) * tv * 2   # streamed bf16 tiles
                  + B3 * tv * 4                              # verts out tile
                  + (B3 + B16 + B3) * tv * 4                 # vp, T, verts intermediates
                  + NUM_SPLITS * B3 * J_out * 4)
    return pl.pallas_call(
        _pose_skin_joints_kernel,
        out_shape=(jax.ShapeDtypeStruct((B3, Vp), jnp.float32),
                   jax.ShapeDtypeStruct((NUM_SPLITS, B3, J_out), jnp.float32)),
        grid=(NUM_SPLITS, steps),
        in_specs=[
            pl.BlockSpec((B3, 3 * POSE_FEAT), lambda c, i: (0, 0)),
            pl.BlockSpec((B16, NUM_JOINTS), lambda c, i: (0, 0)),
            pl.BlockSpec((B3, tv), lambda c, i, s=steps: (0, c * s + i)),
            pl.BlockSpec((3 * POSE_FEAT, tv), lambda c, i, s=steps: (0, c * s + i)),
            pl.BlockSpec((NUM_JOINTS, tv), lambda c, i, s=steps: (0, c * s + i)),
            pl.BlockSpec((J_out, tv), lambda c, i, s=steps: (0, c * s + i)),
        ],
        out_specs=(pl.BlockSpec((B3, tv), lambda c, i, s=steps: (0, c * s + i)),
                   pl.BlockSpec((1, B3, J_out), lambda c, i: (c, 0, 0))),
        compiler_params=_compiler_params(step_bytes),
    )(pf_bd, a2, v_shaped_cb, pd2, w_cb, jregcat_p)


# ----------------------------- plain-JAX glue ----------------------------- #

def batch_rodrigues(rot_vecs):
    # rot_vecs: (N, 3) axis-angle -> (N, 3, 3) rotation matrices (matches PyTorch impl)
    angle = jnp.linalg.norm(rot_vecs + 1e-8, axis=1, keepdims=True)        # (N, 1)
    rot_dir = rot_vecs / angle
    cos = jnp.expand_dims(jnp.cos(angle), 1)                               # (N, 1, 1)
    sin = jnp.expand_dims(jnp.sin(angle), 1)
    rx, ry, rz = rot_dir[:, 0:1], rot_dir[:, 1:2], rot_dir[:, 2:3]
    zeros = jnp.zeros_like(rx)
    K = jnp.concatenate([zeros, -rz, ry, rz, zeros, -rx, -ry, rx, zeros],
                        axis=1).reshape(-1, 3, 3)
    ident = jnp.eye(3, dtype=jnp.float32)[None]
    return ident + sin * K + (1.0 - cos) * jnp.matmul(K, K)


def _transform_mat(R, t):
    # R: (N, 3, 3), t: (N, 3, 1) -> (N, 4, 4)
    Rp = jnp.pad(R, ((0, 0), (0, 1), (0, 0)))
    tp = jnp.concatenate([t, jnp.ones_like(t[:, :1])], axis=1)
    return jnp.concatenate([Rp, tp], axis=2)


def batch_rigid_transform(rot_mats, joints, parents):
    # rot_mats: (B, 24, 3, 3)  joints: (B, 24, 3)
    B, J = joints.shape[:2]
    joints = joints[..., None]                                             # (B, 24, 3, 1)
    rel = joints.at[:, 1:].add(-joints[:, parents[1:]])
    tm = _transform_mat(rot_mats.reshape(-1, 3, 3),
                        rel.reshape(-1, 3, 1)).reshape(B, J, 4, 4)
    chain = [tm[:, 0]]
    for i in range(1, J):
        chain.append(jnp.matmul(chain[int(parents[i])], tm[:, i]))
    transforms = jnp.stack(chain, axis=1)                                  # (B, 24, 4, 4)
    posed_joints = transforms[:, :, :3, 3]
    joints_h = jnp.concatenate([joints, jnp.zeros_like(joints[:, :, :1, :])], axis=2)
    init_bone = jnp.matmul(transforms, joints_h)                           # (B, 24, 4, 1)
    init_bone = jnp.pad(init_bone, ((0, 0), (0, 0), (0, 0), (3, 0)))
    rel_transforms = transforms - init_bone
    return posed_joints, rel_transforms


# ----------------------------- SMPL forward ----------------------------- #

def smpl_forward(betas, thetas, params, root_align=False):
    betas = betas.astype(jnp.float32)
    thetas = thetas.astype(jnp.float32)
    B = betas.shape[0]
    V = params['v_template'].shape[0]
    tv, Vp, _ = _choose_tiling(V)
    assert Vp == params['sd_aug'].shape[1]            # static shapes, checked at trace time
    eye3 = jnp.eye(3, dtype=jnp.float32)

    # block-diagonal betas + one-hot channel columns (template fold) ->
    # ONE (3B,33)x(33,TV) dot per tile inside kernel A
    betas_bd = jnp.kron(eye3, betas)                                       # (3B, 30)
    ones_bd = jnp.kron(eye3, jnp.ones((B, 1), jnp.float32))                # (3B, 3)
    betas_aug = jnp.concatenate([betas_bd, ones_bd], axis=1).astype(jnp.bfloat16)

    # kernel A: shape blend (+template) + 24-joint regression, split over 2 cores on v7x
    v_shaped_cb, J_parts = shape_blend_and_joints(betas_aug, params['sd_aug'],
                                                  params['jreg_p'], tv)
    J_cb = J_parts.sum(axis=0)                                             # (3B, 24)
    J = jnp.transpose(J_cb.reshape(3, B, NUM_JOINTS), (1, 2, 0))           # (B, 24, 3)

    # axis-angle -> rotations, pose feature, kinematic chain (tiny glue)
    rot_mats = batch_rodrigues(thetas.reshape(-1, 3)).reshape(B, NUM_JOINTS, 3, 3)
    pose_feature = (rot_mats[:, 1:] - eye3).reshape(B, POSE_FEAT)
    _, A = batch_rigid_transform(rot_mats, J, SMPL_PARENTS)                # (B, 24, 4, 4)

    pf_bd = jnp.kron(eye3, pose_feature).astype(jnp.bfloat16)              # (3B, 621)
    # row (4r+k)*B + b = A[b, j, r, k] -> ONE (16B,24)x(24,TV) dot per tile in kernel B
    a2 = jnp.transpose(A, (2, 3, 0, 1)).reshape(16 * B, NUM_JOINTS).astype(jnp.bfloat16)

    # kernel B: pose blend + LBS + 50-joint regression
    verts_cb, joints_parts = pose_skin_and_joints(pf_bd, a2, v_shaped_cb,
                                                  params['pd2'], params['w_cb'],
                                                  params['jregcat_p'], tv)
    joints_cb = joints_parts.sum(axis=0)                                   # (3B, 50)

    verts = jnp.transpose(verts_cb.reshape(3, B, Vp), (1, 2, 0))[:, :V, :]      # (B, V, 3)
    joints = jnp.transpose(joints_cb.reshape(3, B, NUM_JOINTS_OUT), (1, 2, 0))  # (B, 50, 3)

    if root_align:
        root_trans = joints[:, jnp.array([45, 46])].mean(axis=1, keepdims=True)
        joints = joints - root_trans
        verts = verts - root_trans
    return verts, joints, params['faces']


smpl_forward_jit = jax.jit(smpl_forward, static_argnames=("root_align",))


def smpl_parser_forward(outputs, params, root_align=False):
    """Equivalent of SMPL_parser.forward."""
    verts, joints, face = smpl_forward_jit(outputs['smpl_betas'], outputs['smpl_thetas'],
                                           params, root_align=root_align)
    outputs = dict(outputs)
    outputs.update({'verts': verts, 'joints': joints, 'smpl_face': face})
    return outputs


# ----------------------- deterministic synthetic params ----------------------- #
# TODO(synk): real SMPL loads .pth model data (torch.load); parameters are synthesized here.

def init_smpl_params(key, V=512, n_faces=128):
    ks = jax.random.split(key, 8)
    v_template = jax.random.normal(ks[0], (V, 3), jnp.float32) * 0.1
    shapedirs = jax.random.normal(ks[1], (V, 3, NUM_BETAS), jnp.float32) * 0.01
    posedirs = jax.random.normal(ks[2], (POSE_FEAT, V * 3), jnp.float32) * 0.01
    J_regressor = jax.nn.softmax(jax.random.normal(ks[3], (NUM_JOINTS, V)) * 2.0, axis=-1)
    J_reg_extra9 = jax.nn.softmax(jax.random.normal(ks[4], (9, V)) * 2.0, axis=-1)
    J_reg_h36m17 = jax.nn.softmax(jax.random.normal(ks[5], (17, V)) * 2.0, axis=-1)
    lbs_weights = jax.nn.softmax(jax.random.normal(ks[6], (V, NUM_JOINTS)) * 2.0, axis=-1)
    faces = jax.random.randint(ks[7], (n_faces, 3), 0, V).astype(jnp.int32)
    J_regressor_cat = jnp.concatenate([J_regressor, J_reg_extra9, J_reg_h36m17], axis=0)

    # big streamed params quantized to bf16 (HBM-bandwidth bound streams)
    sd_q = shapedirs.astype(jnp.bfloat16)                                  # (V, 3, 10)
    pd_q = posedirs.astype(jnp.bfloat16)                                   # (207, 3V)

    tv, Vp, _ = _choose_tiling(V)
    pad = Vp - V

    # channel-first, padded-to-Vp kernel arrays (zero padding keeps the joint reductions exact)
    sd_cb = jnp.transpose(sd_q, (1, 2, 0)).reshape(3 * NUM_BETAS, V)       # (30, V) bf16
    vt_rows = v_template.T.astype(jnp.bfloat16)                            # (3, V)  template fold
    sd_aug = jnp.pad(jnp.concatenate([sd_cb, vt_rows], axis=0), ((0, 0), (0, pad)))   # (33, Vp)
    pd2 = jnp.pad(jnp.transpose(pd_q.reshape(POSE_FEAT, V, 3), (2, 0, 1)
                                ).reshape(3 * POSE_FEAT, V),
                  ((0, 0), (0, pad)))                                      # (621, Vp) bf16
    w_cb = jnp.pad(lbs_weights.T.astype(jnp.bfloat16), ((0, 0), (0, pad)))         # (24, Vp) bf16
    jreg_p = jnp.pad(J_regressor.astype(jnp.bfloat16), ((0, 0), (0, pad)))         # (24, Vp) bf16
    jregcat_p = jnp.pad(J_regressor_cat.astype(jnp.bfloat16), ((0, 0), (0, pad)))  # (50, Vp) bf16

    return dict(
        # PyTorch-convention parameters (bf16-rounded dirs kept in f32 for the reference)
        v_template=v_template,
        shapedirs_q=sd_q.astype(jnp.float32),
        posedirs_q=pd_q.astype(jnp.float32),
        J_regressor=J_regressor, J_regressor_cat=J_regressor_cat,
        lbs_weights=lbs_weights, faces=faces,
        # kernel-ready channel-first arrays
        sd_aug=sd_aug, pd2=pd2, w_cb=w_cb,
        jreg_p=jreg_p, jregcat_p=jregcat_p,
    )


# ----------------------------- pure-JAX reference ----------------------------- #

def lbs_reference(betas, thetas, P):
    hp = jax.lax.Precision.HIGHEST
    B = betas.shape[0]
    v_shaped = P['v_template'][None] + jnp.einsum('bl,mkl->bmk', betas, P['shapedirs_q'],
                                                  precision=hp)
    J = jnp.einsum('jv,bvc->bjc', P['J_regressor'], v_shaped, precision=hp)
    rot_mats = batch_rodrigues(thetas.reshape(-1, 3)).reshape(B, NUM_JOINTS, 3, 3)
    pose_feature = (rot_mats[:, 1:] - jnp.eye(3, dtype=jnp.float32)).reshape(B, POSE_FEAT)
    pose_offsets = jnp.matmul(pose_feature, P['posedirs_q'], precision=hp).reshape(B, -1, 3)
    v_posed = v_shaped + pose_offsets
    _, A = batch_rigid_transform(rot_mats, J, SMPL_PARENTS)
    T = jnp.einsum('vj,bjk->bvk', P['lbs_weights'], A.reshape(B, NUM_JOINTS, 16),
                   precision=hp).reshape(B, -1, 4, 4)
    v_posed_h = jnp.concatenate([v_posed, jnp.ones((B, v_posed.shape[1], 1), jnp.float32)],
                                axis=2)
    verts = jnp.einsum('bvij,bvj->bvi', T, v_posed_h, precision=hp)[..., :3]
    joints = jnp.einsum('jv,bvc->bjc', P['J_regressor_cat'], verts, precision=hp)
    return verts, joints


# ----------------------------------- main ----------------------------------- #

if __name__ == "__main__":
    key = jax.random.PRNGKey(0)
    kp, kb, kt = jax.random.split(key, 3)

    V = 512
    B = 2
    params = init_smpl_params(kp, V=V, n_faces=128)

    outputs = {
        'smpl_betas': jax.random.normal(kb, (B, NUM_BETAS), jnp.float32) * 0.5,
        'smpl_thetas': jax.random.normal(kt, (B, NUM_JOINTS * 3), jnp.float32) * 0.3,
    }

    res = smpl_parser_forward(outputs, params, root_align=False)
    jax.block_until_ready(res['verts'])
    jax.block_until_ready(res['joints'])

    assert res['verts'].shape == (B, V, 3)
    assert res['joints'].shape == (B, NUM_JOINTS_OUT, 3)
    assert res['smpl_face'].shape == (128, 3)

    verts_ref, joints_ref = lbs_reference(outputs['smpl_betas'], outputs['smpl_thetas'], params)
    np.testing.assert_allclose(np.asarray(res['verts']), np.asarray(verts_ref),
                               atol=5e-3, rtol=5e-3)
    np.testing.assert_allclose(np.asarray(res['joints']), np.asarray(joints_ref),
                               atol=5e-3, rtol=5e-3)

    print("KERNEL_OK")
</pallas_src>

<mosaic_0001>
module attributes {stable_mosaic.version = 11 : i64} {
  func.func @_shape_joints_kernel(%arg0: i32, %arg1: i32, %arg2: memref<6x33xbf16, #tpu.memory_space<vmem>>, %arg3: memref<33x256xbf16, #tpu.memory_space<vmem>>, %arg4: memref<24x256xbf16, #tpu.memory_space<vmem>>, %arg5: memref<6x256xf32, #tpu.memory_space<vmem>>, %arg6: memref<1x6x24xf32, #tpu.memory_space<vmem>>) attributes {dimension_semantics = [#tpu.dimension_semantics<parallel>, #tpu.dimension_semantics<arbitrary>], iteration_bounds = array<i64: 2, 1>, scalar_prefetch = 0 : i64, scratch_operands = 0 : i64, tpu.core_type = #tpu.core_type<tc>, window_params = [{pipeline_mode = #tpu.pipeline_mode<synchronous>, transform_indices = @transform_0, window_bounds = array<i64: 6, 33>}, {transform_indices = @transform_1, window_bounds = array<i64: 33, 256>}, {transform_indices = @transform_2, window_bounds = array<i64: 24, 256>}, {transform_indices = @transform_3, window_bounds = array<i64: 6, 256>}, {transform_indices = @transform_4, window_bounds = array<i64: 1, 6, 24>}]} {
    %c0_i32 = arith.constant 0 : i32
    %0 = arith.cmpi eq, %arg1, %c0_i32 : i32
    %1 = arith.extui %0 : i1 to i32
    %c0_i32_0 = arith.constant 0 : i32
    %2 = arith.cmpi ne, %1, %c0_i32_0 : i32
    scf.if %2 {
      %cst_15 = arith.constant 0.000000e+00 : f32
      %16 = vector.broadcast %cst_15 : f32 to vector<1x6x24xf32>
      %c0_16 = arith.constant 0 : index
      %c0_17 = arith.constant 0 : index
      %c0_18 = arith.constant 0 : index
      %17 = vector.load %arg6[%c0_16, %c0_17, %c0_18] : memref<1x6x24xf32, #tpu.memory_space<vmem>>, vector<1x6x24xf32>
      tpu.vector_store %arg6[%c0_16, %c0_17, %c0_18], %16 {strides = array<i32>} : memref<1x6x24xf32, #tpu.memory_space<vmem>>, vector<1x6x24xf32>,
    } else {
    }
    %c0 = arith.constant 0 : index
    %c0_1 = arith.constant 0 : index
    %3 = vector.load %arg2[%c0, %c0_1] : memref<6x33xbf16, #tpu.memory_space<vmem>>, vector<6x33xbf16>
    %c0_2 = arith.constant 0 : index
    %c0_3 = arith.constant 0 : index
    %4 = vector.load %arg3[%c0_2, %c0_3] : memref<33x256xbf16, #tpu.memory_space<vmem>>, vector<33x256xbf16>
    %cst = arith.constant dense<0.000000e+00> : vector<6x256xf32>
    %5 = tpu.matmul %3, %4, %cst {dimension_numbers = #tpu.dot_dimension_numbers<[1], [0], [0], [1], [0, 0, 1, 1], [], []>} : vector<6x33xbf16>, vector<33x256xbf16>, vector<6x256xf32> -> vector<6x256xf32>
    %c0_4 = arith.constant 0 : index
    %c0_5 = arith.constant 0 : index
    %6 = vector.load %arg5[%c0_4, %c0_5] : memref<6x256xf32, #tpu.memory_space<vmem>>, vector<6x256xf32>
    tpu.vector_store %arg5[%c0_4, %c0_5], %5 {strides = array<i32>} : memref<6x256xf32, #tpu.memory_space<vmem>>, vector<6x256xf32>,
    %c0_6 = arith.constant 0 : index
    %c0_7 = arith.constant 0 : index
    %c0_8 = arith.constant 0 : index
    %7 = vector.load %arg6[%c0_6, %c0_7, %c0_8] : memref<1x6x24xf32, #tpu.memory_space<vmem>>, vector<1x6x24xf32>
    %8 = vector.shape_cast %7 : vector<1x6x24xf32> to vector<6x24xf32>
    %9 = arith.truncf %5 : vector<6x256xf32> to vector<6x256xbf16>
    %c0_9 = arith.constant 0 : index
    %c0_10 = arith.constant 0 : index
    %10 = vector.load %arg4[%c0_9, %c0_10] : memref<24x256xbf16, #tpu.memory_space<vmem>>, vector<24x256xbf16>
    %cst_11 = arith.constant dense<0.000000e+00> : vector<6x24xf32>
    %11 = tpu.matmul %9, %10, %cst_11 {dimension_numbers = #tpu.dot_dimension_numbers<[1], [1], [0], [0], [0, 0, 1, 0], [], []>} : vector<6x256xbf16>, vector<24x256xbf16>, vector<6x24xf32> -> vector<6x24xf32>
    %12 = arith.addf %8, %11 : vector<6x24xf32>
    %c0_12 = arith.constant 0 : index
    %c0_13 = arith.constant 0 : index
    %c0_14 = arith.constant 0 : index
    %13 = vector.load %arg6[%c0_12, %c0_13, %c0_14] : memref<1x6x24xf32, #tpu.memory_space<vmem>>, vector<1x6x24xf32>
    %14 = vector.shape_cast %13 : vector<1x6x24xf32> to vector<6x24xf32>
    %15 = vector.shape_cast %12 : vector<6x24xf32> to vector<1x6x24xf32>
    tpu.vector_store %arg6[%c0_12, %c0_13, %c0_14], %15 {strides = array<i32>} : memref<1x6x24xf32, #tpu.memory_space<vmem>>, vector<1x6x24xf32>,
    return
  }
  func.func @transform_0(%arg0: i32, %arg1: i32) -> (i32, i32) {
    %c0_i32 = arith.constant 0 : i32
    %c0_i32_0 = arith.constant 0 : i32
    %c0_i32_1 = arith.constant 0 : i32
    return %c0_i32, %c0_i32_0 : i32, i32
  }
  func.func @transform_1(%arg0: i32, %arg1: i32) -> (i32, i32) {
    %c1_i32 = arith.constant 1 : i32
    %0 = arith.muli %arg0, %c1_i32 : i32
    %1 = arith.addi %0, %arg1 : i32
    %c0_i32 = arith.constant 0 : i32
    %c0_i32_0 = arith.constant 0 : i32
    return %c0_i32, %1 : i32, i32
  }
  func.func @transform_2(%arg0: i32, %arg1: i32) -> (i32, i32) {
    %c1_i32 = arith.constant 1 : i32
    %0 = arith.muli %arg0, %c1_i32 : i32
    %1 = arith.addi %0, %arg1 : i32
    %c0_i32 = arith.constant 0 : i32
    %c0_i32_0 = arith.constant 0 : i32
    return %c0_i32, %1 : i32, i32
  }
  func.func @transform_3(%arg0: i32, %arg1: i32) -> (i32, i32) {
    %c1_i32 = arith.constant 1 : i32
    %0 = arith.muli %arg0, %c1_i32 : i32
    %1 = arith.addi %0, %arg1 : i32
    %c0_i32 = arith.constant 0 : i32
    %c0_i32_0 = arith.constant 0 : i32
    return %c0_i32, %1 : i32, i32
  }
  func.func @transform_4(%arg0: i32, %arg1: i32) -> (i32, i32, i32) {
    %c0_i32 = arith.constant 0 : i32
    %c0_i32_0 = arith.constant 0 : i32
    %c0_i32_1 = arith.constant 0 : i32
    return %arg0, %c0_i32, %c0_i32_0 : i32, i32, i32
  }
}

module attributes {stable_mosaic.version = 11 : i64} {
  func.func @_pose_skin_joints_kernel(%arg0: i32, %arg1: i32, %arg2: memref<6x621xbf16, #tpu.memory_space<vmem>>, %arg3: memref<32x24xbf16, #tpu.memory_space<vmem>>, %arg4: memref<6x256xf32, #tpu.memory_space<vmem>>, %arg5: memref<621x256xbf16, #tpu.memory_space<vmem>>, %arg6: memref<24x256xbf16, #tpu.memory_space<vmem>>, %arg7: memref<50x256xbf16, #tpu.memory_space<vmem>>, %arg8: memref<6x256xf32, #tpu.memory_space<vmem>>, %arg9: memref<1x6x50xf32, #tpu.memory_space<vmem>>) attributes {dimension_semantics = [#tpu.dimension_semantics<parallel>, #tpu.dimension_semantics<arbitrary>], iteration_bounds = array<i64: 2, 1>, scalar_prefetch = 0 : i64, scratch_operands = 0 : i64, tpu.core_type = #tpu.core_type<tc>, window_params = [{pipeline_mode = #tpu.pipeline_mode<synchronous>, transform_indices = @transform_0, window_bounds = array<i64: 6, 621>}, {pipeline_mode = #tpu.pipeline_mode<synchronous>, transform_indices = @transform_1, window_bounds = array<i64: 32, 24>}, {transform_indices = @transform_2, window_bounds = array<i64: 6, 256>}, {transform_indices = @transform_3, window_bounds = array<i64: 621, 256>}, {transform_indices = @transform_4, window_bounds = array<i64: 24, 256>}, {transform_indices = @transform_5, window_bounds = array<i64: 50, 256>}, {transform_indices = @transform_6, window_bounds = array<i64: 6, 256>}, {transform_indices = @transform_7, window_bounds = array<i64: 1, 6, 50>}]} {
    %c0_i32 = arith.constant 0 : i32
    %0 = arith.cmpi eq, %arg1, %c0_i32 : i32
    %1 = arith.extui %0 : i1 to i32
    %c0_i32_0 = arith.constant 0 : i32
    %2 = arith.cmpi ne, %1, %c0_i32_0 : i32
    scf.if %2 {
      %cst_22 = arith.constant 0.000000e+00 : f32
      %55 = vector.broadcast %cst_22 : f32 to vector<1x6x50xf32>
      %c0_23 = arith.constant 0 : index
      %c0_24 = arith.constant 0 : index
      %c0_25 = arith.constant 0 : index
      %56 = vector.load %arg9[%c0_23, %c0_24, %c0_25] : memref<1x6x50xf32, #tpu.memory_space<vmem>>, vector<1x6x50xf32>
      tpu.vector_store %arg9[%c0_23, %c0_24, %c0_25], %55 {strides = array<i32>} : memref<1x6x50xf32, #tpu.memory_space<vmem>>, vector<1x6x50xf32>,
    } else {
    }
    %c0 = arith.constant 0 : index
    %c0_1 = arith.constant 0 : index
    %3 = vector.load %arg2[%c0, %c0_1] : memref<6x621xbf16, #tpu.memory_space<vmem>>, vector<6x621xbf16>
    %c0_2 = arith.constant 0 : index
    %c0_3 = arith.constant 0 : index
    %4 = vector.load %arg5[%c0_2, %c0_3] : memref<621x256xbf16, #tpu.memory_space<vmem>>, vector<621x256xbf16>
    %cst = arith.constant dense<0.000000e+00> : vector<6x256xf32>
    %5 = tpu.matmul %3, %4, %cst {dimension_numbers = #tpu.dot_dimension_numbers<[1], [0], [0], [1], [0, 0, 1, 1], [], []>} : vector<6x621xbf16>, vector<621x256xbf16>, vector<6x256xf32> -> vector<6x256xf32>
    %c0_4 = arith.constant 0 : index
    %c0_5 = arith.constant 0 : index
    %6 = vector.load %arg4[%c0_4, %c0_5] : memref<6x256xf32, #tpu.memory_space<vmem>>, vector<6x256xf32>
    %7 = arith.addf %5, %6 : vector<6x256xf32>
    %c0_6 = arith.constant 0 : index
    %c0_7 = arith.constant 0 : index
    %8 = vector.load %arg3[%c0_6, %c0_7] : memref<32x24xbf16, #tpu.memory_space<vmem>>, vector<32x24xbf16>
    %c0_8 = arith.constant 0 : index
    %c0_9 = arith.constant 0 : index
    %9 = vector.load %arg6[%c0_8, %c0_9] : memref<24x256xbf16, #tpu.memory_space<vmem>>, vector<24x256xbf16>
    %cst_10 = arith.constant dense<0.000000e+00> : vector<32x256xf32>
    %10 = tpu.matmul %8, %9, %cst_10 {dimension_numbers = #tpu.dot_dimension_numbers<[1], [0], [0], [1], [0, 0, 1, 1], [], []>} : vector<32x24xbf16>, vector<24x256xbf16>, vector<32x256xf32> -> vector<32x256xf32>
    %11 = vector.extract_strided_slice %7 {offsets = [0, 0], sizes = [2, 256], strides = [1, 1]} : vector<6x256xf32> to vector<2x256xf32>
    %12 = vector.extract_strided_slice %7 {offsets = [2, 0], sizes = [2, 256], strides = [1, 1]} : vector<6x256xf32> to vector<2x256xf32>
    %13 = vector.extract_strided_slice %7 {offsets = [4, 0], sizes = [2, 256], strides = [1, 1]} : vector<6x256xf32> to vector<2x256xf32>
    %14 = vector.extract_strided_slice %10 {offsets = [0, 0], sizes = [2, 256], strides = [1, 1]} : vector<32x256xf32> to vector<2x256xf32>
    %15 = vector.extract_strided_slice %10 {offsets = [2, 0], sizes = [2, 256], strides = [1, 1]} : vector<32x256xf32> to vector<2x256xf32>
    %16 = vector.extract_strided_slice %10 {offsets = [4, 0], sizes = [2, 256], strides = [1, 1]} : vector<32x256xf32> to vector<2x256xf32>
    %17 = vector.extract_strided_slice %10 {offsets = [6, 0], sizes = [2, 256], strides = [1, 1]} : vector<32x256xf32> to vector<2x256xf32>
    %18 = arith.mulf %14, %11 : vector<2x256xf32>
    %19 = arith.mulf %15, %12 : vector<2x256xf32>
    %20 = arith.addf %18, %19 : vector<2x256xf32>
    %21 = arith.mulf %16, %13 : vector<2x256xf32>
    %22 = arith.addf %20, %21 : vector<2x256xf32>
    %23 = arith.addf %22, %17 : vector<2x256xf32>
    %24 = vector.extract_strided_slice %10 {offsets = [8, 0], sizes = [2, 256], strides = [1, 1]} : vector<32x256xf32> to vector<2x256xf32>
    %25 = vector.extract_strided_slice %10 {offsets = [10, 0], sizes = [2, 256], strides = [1, 1]} : vector<32x256xf32> to vector<2x256xf32>
    %26 = vector.extract_strided_slice %10 {offsets = [12, 0], sizes = [2, 256], strides = [1, 1]} : vector<32x256xf32> to vector<2x256xf32>
    %27 = vector.extract_strided_slice %10 {offsets = [14, 0], sizes = [2, 256], strides = [1, 1]} : vector<32x256xf32> to vector<2x256xf32>
    %28 = arith.mulf %24, %11 : vector<2x256xf32>
    %29 = arith.mulf %25, %12 : vector<2x256xf32>
    %30 = arith.addf %28, %29 : vector<2x256xf32>
    %31 = arith.mulf %26, %13 : vector<2x256xf32>
    %32 = arith.addf %30, %31 : vector<2x256xf32>
    %33 = arith.addf %32, %27 : vector<2x256xf32>
    %34 = vector.extract_strided_slice %10 {offsets = [16, 0], sizes = [2, 256], strides = [1, 1]} : vector<32x256xf32> to vector<2x256xf32>
    %35 = vector.extract_strided_slice %10 {offsets = [18, 0], sizes = [2, 256], strides = [1, 1]} : vector<32x256xf32> to vector<2x256xf32>
    %36 = vector.extract_strided_slice %10 {offsets = [20, 0], sizes = [2, 256], strides = [1, 1]} : vector<32x256xf32> to vector<2x256xf32>
    %37 = vector.extract_strided_slice %10 {offsets = [22, 0], sizes = [2, 256], strides = [1, 1]} : vector<32x256xf32> to vector<2x256xf32>
    %38 = arith.mulf %34, %11 : vector<2x256xf32>
    %39 = arith.mulf %35, %12 : vector<2x256xf32>
    %40 = arith.addf %38, %39 : vector<2x256xf32>
    %41 = arith.mulf %36, %13 : vector<2x256xf32>
    %42 = arith.addf %40, %41 : vector<2x256xf32>
    %43 = arith.addf %42, %37 : vector<2x256xf32>
    %44 = tpu.concatenate %23, %33, %43 in 0 : vector<2x256xf32>, vector<2x256xf32>, vector<2x256xf32> -> vector<6x256xf32>
    %c0_11 = arith.constant 0 : index
    %c0_12 = arith.constant 0 : index
    %45 = vector.load %arg8[%c0_11, %c0_12] : memref<6x256xf32, #tpu.memory_space<vmem>>, vector<6x256xf32>
    tpu.vector_store %arg8[%c0_11, %c0_12], %44 {strides = array<i32>} : memref<6x256xf32, #tpu.memory_space<vmem>>, vector<6x256xf32>,
    %c0_13 = arith.constant 0 : index
    %c0_14 = arith.constant 0 : index
    %c0_15 = arith.constant 0 : index
    %46 = vector.load %arg9[%c0_13, %c0_14, %c0_15] : memref<1x6x50xf32, #tpu.memory_space<vmem>>, vector<1x6x50xf32>
    %47 = vector.shape_cast %46 : vector<1x6x50xf32> to vector<6x50xf32>
    %48 = arith.truncf %44 : vector<6x256xf32> to vector<6x256xbf16>
    %c0_16 = arith.constant 0 : index
    %c0_17 = arith.constant 0 : index
    %49 = vector.load %arg7[%c0_16, %c0_17] : memref<50x256xbf16, #tpu.memory_space<vmem>>, vector<50x256xbf16>
    %cst_18 = arith.constant dense<0.000000e+00> : vector<6x50xf32>
    %50 = tpu.matmul %48, %49, %cst_18 {dimension_numbers = #tpu.dot_dimension_numbers<[1], [1], [0], [0], [0, 0, 1, 0], [], []>} : vector<6x256xbf16>, vector<50x256xbf16>, vector<6x50xf32> -> vector<6x50xf32>
    %51 = arith.addf %47, %50 : vector<6x50xf32>
    %c0_19 = arith.constant 0 : index
    %c0_20 = arith.constant 0 : index
    %c0_21 = arith.constant 0 : index
    %52 = vector.load %arg9[%c0_19, %c0_20, %c0_21] : memref<1x6x50xf32, #tpu.memory_space<vmem>>, vector<1x6x50xf32>
    %53 = vector.shape_cast %52 : vector<1x6x50xf32> to vector<6x50xf32>
    %54 = vector.shape_cast %51 : vector<6x50xf32> to vector<1x6x50xf32>
    tpu.vector_store %arg9[%c0_19, %c0_20, %c0_21], %54 {strides = array<i32>} : memref<1x6x50xf32, #tpu.memory_space<vmem>>, vector<1x6x50xf32>,
    return
  }
  func.func @transform_0(%arg0: i32, %arg1: i32) -> (i32, i32) {
    %c0_i32 = arith.constant 0 : i32
    %c0_i32_0 = arith.constant 0 : i32
    %c0_i32_1 = arith.constant 0 : i32
    return %c0_i32, %c0_i32_0 : i32, i32
  }
  func.func @transform_1(%arg0: i32, %arg1: i32) -> (i32, i32) {
    %c0_i32 = arith.constant 0 : i32
    %c0_i32_0 = arith.constant 0 : i32
    %c0_i32_1 = arith.constant 0 : i32
    return %c0_i32, %c0_i32_0 : i32, i32
  }
  func.func @transform_2(%arg0: i32, %arg1: i32) -> (i32, i32) {
    %c1_i32 = arith.constant 1 : i32
    %0 = arith.muli %arg0, %c1_i32 : i32
    %1 = arith.addi %0, %arg1 : i32
    %c0_i32 = arith.constant 0 : i32
    %c0_i32_0 = arith.constant 0 : i32
    return %c0_i32, %1 : i32, i32
  }
  func.func @transform_3(%arg0: i32, %arg1: i32) -> (i32, i32) {
    %c1_i32 = arith.constant 1 : i32
    %0 = arith.muli %arg0, %c1_i32 : i32
    %1 = arith.addi %0, %arg1 : i32
    %c0_i32 = arith.constant 0 : i32
    %c0_i32_0 = arith.constant 0 : i32
    return %c0_i32, %1 : i32, i32
  }
  func.func @transform_4(%arg0: i32, %arg1: i32) -> (i32, i32) {
    %c1_i32 = arith.constant 1 : i32
    %0 = arith.muli %arg0, %c1_i32 : i32
    %1 = arith.addi %0, %arg1 : i32
    %c0_i32 = arith.constant 0 : i32
    %c0_i32_0 = arith.constant 0 : i32
    return %c0_i32, %1 : i32, i32
  }
  func.func @transform_5(%arg0: i32, %arg1: i32) -> (i32, i32) {
    %c1_i32 = arith.constant 1 : i32
    %0 = arith.muli %arg0, %c1_i32 : i32
    %1 = arith.addi %0, %arg1 : i32
    %c0_i32 = arith.constant 0 : i32
    %c0_i32_0 = arith.constant 0 : i32
    return %c0_i32, %1 : i32, i32
  }
  func.func @transform_6(%arg0: i32, %arg1: i32) -> (i32, i32) {
    %c1_i32 = arith.constant 1 : i32
    %0 = arith.muli %arg0, %c1_i32 : i32
    %1 = arith.addi %0, %arg1 : i32
    %c0_i32 = arith.constant 0 : i32
    %c0_i32_0 = arith.constant 0 : i32
    return %c0_i32, %1 : i32, i32
  }
  func.func @transform_7(%arg0: i32, %arg1: i32) -> (i32, i32, i32) {
    %c0_i32 = arith.constant 0 : i32
    %c0_i32_0 = arith.constant 0 : i32
    %c0_i32_1 = arith.constant 0 : i32
    return %arg0, %c0_i32, %c0_i32_0 : i32, i32, i32
  }
}

</mosaic_0001>

<llo_original>
// kernel: smpl_forward.2
$region0: #{smpl_forward.2}
  #allocation0 [shape = 'u32[]', space=smem, size = 0x4, offset = 0x4, fixed_abs, tag = 'smem constant byte address 0x4 - core index']
  #allocation1 [shape = 'u32[72,128]{1,0:T(1,128)}', space=vmem, size = 0x9000, scoped, tag = 'internal scratch']
  %s0 = inlined_call_operand.vmem [shape: bf16[6,33], index: 0, kind: input, shape index: {}]
  %s1 = inlined_call_operand.hbm [shape: bf16[33,512], index: 1, kind: input, shape index: {}]
  %s2 = inlined_call_operand.vmem [shape: bf16[24,512], index: 2, kind: input, shape index: {}]
  %s3 = inlined_call_operand.vmem [shape: f32[6,512], index: 3, kind: output, shape index: {0}]
  %s4 = inlined_call_operand.vmem [shape: f32[2,6,24], index: 4, kind: output, shape index: {1}]
  %5 = xla_tuple %s3, %s4
  %s6 = sld [smem:[#allocation0]]
  $region99: #{smpl_forward.2} parent=0
    _
  %s8 = ssub.s32 1, %s6
  %s9 = scalar_select 0, %s8, %s6
  $region1: #{smpl_forward.2} parent=0
    #allocation2 [shape = 'u8[40960]{0}', space=vmem, size = 0xa000, scoped, tag = 'input window, operand 1']
    #allocation3 [shape = 's32[2]{0}', space=sflag, size = 0x8, scoped, tag = 'scoped memory for smpl_forward.2']
    #allocation4 [shape = 'u8[24576]{0}', space=vmem, size = 0x6000, scoped, tag = 'input window, operand 2']
    %10 = vsyncpa [#allocation3], 0
    %s11 = scalar_lea.sflag [#allocation3], 1
    %12 = vsyncpa %s11, 0
    loop: start=0, step=1, limit=4
    $region2: #{smpl_forward.2} parent=1 // loop_pre_header
      _
    $region3: #{smpl_forward.2} parent=1 // loop_header
      %s14 = sphi 0, %s18
      %p15 = scmp.ge.s32.totalorder %s14, 4
      %s21 = sphi 0, %s33
      %s22 = sphi 0, %s29
      %s23 = sphi 0, %s21
      %s24 = sphi 0, %s22
      %s25 = sphi 0, %s23
      %s26 = sphi 0, %s24
      %s34 = sphi 0, %s34
      %s36 = sphi 0, %s34
      %s37 = sphi 0, %s36
      %s51 = sphi 0, %s37
      %s59 = sphi 0, %s61
      %s62 = sphi 0, %s59
      %s63 = sphi 0, %s62
      %s79 = sphi 0, %s63
      %s87 = sphi 0, %s89
      %s90 = sphi 0, %s87
      %s91 = sphi 0, %s90
      %s107 = sphi 0, %s91
      %s115 = sphi 0, %s117
      %s118 = sphi 0, %s115
      %s119 = sphi 0, %s118
      %s135 = sphi 0, %s119
      %s141 = sphi 0, %s143
      %s144 = sphi 0, %s141
      %s145 = sphi 0, %s144
      %s161 = sphi 0, %s145
    $region4: #{smpl_forward.2} parent=1 // loop_header_branch
      %17 = sbr.rel (%p15) target = $region8
    $region5: #{smpl_forward.2} parent=1 // loop_body
      %s19 = ssub.s32 %s14, 1
      %s20 = ssub.s32 %s14, 2
      %s27 = sadd.s32 1, %s22
      %p28 = scmp.ge.s32.totalorder %s27, 1
      %s29 = scalar_select %p28, 0, %s27
      %s30 = sadd.s32 1, %s21
      %s31 = scalar_select %p28, %s30, %s21
      %p32 = scmp.ge.s32.totalorder %s31, 2
      %s33 = scalar_select %p32, 0, %s31
      %s35 = sadd.s32 %s34, 1
      %p38 = scmp.eq.s32.totalorder %s14, 1
      %p39 = scmp.ne.s32.totalorder %s34, %s36
      %p40 = scmp.eq.s32.totalorder %s14, 0
      %p41 = por %p39, %p40
      %p42 = scmp.ne.s32.totalorder %s34, %s36
      %p43 = scmp.eq.s32.totalorder %s19, 1
      %p44 = por %p42, %p43
      %p45 = scmp.ne.s32.totalorder %s36, %s37
      %p46 = scmp.eq.s32.totalorder %s19, 0
      %p47 = por %p45, %p46
      %p48 = scmp.ne.s32.totalorder %s36, %s37
      %p49 = scmp.eq.s32.totalorder %s20, 1
      %p50 = por %p48, %p49
      %p52 = scmp.ne.s32.totalorder %s37, %s51
      %p53 = scmp.eq.s32.totalorder %s20, 0
      %p54 = por %p52, %p53
      %s55 = sadd.s32 %s21, %s22
      %s56 = sadd.s32 %s33, %s29
      %s57 = ssub.s32 %s55, %s56
      %p58 = scmp.eq.s32.totalorder %s57, 0
      %s60 = sadd.s32 %s59, 1
      %s61 = scalar_select %p58, %s59, %s60
      %p64 = pneg %p58
      %p65 = scmp.eq.s32.totalorder %s14, 1
      %p66 = por %p64, %p65
      %p67 = scmp.ne.s32.totalorder %s59, %s62
      %p68 = scmp.eq.s32.totalorder %s14, 0
      %p69 = por %p67, %p68
      %p70 = scmp.ne.s32.totalorder %s59, %s62
      %p71 = scmp.eq.s32.totalorder %s19, 1
      %p72 = por %p70, %p71
      %p73 = scmp.ne.s32.totalorder %s62, %s63
      %p74 = scmp.eq.s32.totalorder %s19, 0
      %p75 = por %p73, %p74
      %p76 = scmp.ne.s32.totalorder %s62, %s63
      %p77 = scmp.eq.s32.totalorder %s20, 1
      %p78 = por %p76, %p77
      %p80 = scmp.ne.s32.totalorder %s63, %s79
      %p81 = scmp.eq.s32.totalorder %s20, 0
      %p82 = por %p80, %p81
      %s83 = sadd.s32 %s21, %s22
      %s84 = sadd.s32 %s33, %s29
      %s85 = ssub.s32 %s83, %s84
      %p86 = scmp.eq.s32.totalorder %s85, 0
      %s88 = sadd.s32 %s87, 1
      %s89 = scalar_select %p86, %s87, %s88
      %p92 = pneg %p86
      %p93 = scmp.eq.s32.totalorder %s14, 1
      %p94 = por %p92, %p93
      %p95 = scmp.ne.s32.totalorder %s87, %s90
      %p96 = scmp.eq.s32.totalorder %s14, 0
      %p97 = por %p95, %p96
      %p98 = scmp.ne.s32.totalorder %s87, %s90
      %p99 = scmp.eq.s32.totalorder %s19, 1
      %p100 = por %p98, %p99
      %p101 = scmp.ne.s32.totalorder %s90, %s91
      %p102 = scmp.eq.s32.totalorder %s19, 0
      %p103 = por %p101, %p102
      %p104 = scmp.ne.s32.totalorder %s90, %s91
      %p105 = scmp.eq.s32.totalorder %s20, 1
      %p106 = por %p104, %p105
      %p108 = scmp.ne.s32.totalorder %s91, %s107
      %p109 = scmp.eq.s32.totalorder %s20, 0
      %p110 = por %p108, %p109
      %s111 = sadd.s32 %s21, %s22
      %s112 = sadd.s32 %s33, %s29
      %s113 = ssub.s32 %s111, %s112
      %p114 = scmp.eq.s32.totalorder %s113, 0
      %s116 = sadd.s32 %s115, 1
      %s117 = scalar_select %p114, %s115, %s116
      %p120 = pneg %p114
      %p121 = scmp.eq.s32.totalorder %s14, 1
      %p122 = por %p120, %p121
      %p123 = scmp.ne.s32.totalorder %s115, %s118
      %p124 = scmp.eq.s32.totalorder %s14, 0
      %p125 = por %p123, %p124
      %p126 = scmp.ne.s32.totalorder %s115, %s118
      %p127 = scmp.eq.s32.totalorder %s19, 1
      %p128 = por %p126, %p127
      %p129 = scmp.ne.s32.totalorder %s118, %s119
      %p130 = scmp.eq.s32.totalorder %s19, 0
      %p131 = por %p129, %p130
      %p132 = scmp.ne.s32.totalorder %s118, %s119
      %p133 = scmp.eq.s32.totalorder %s20, 1
      %p134 = por %p132, %p133
      %p136 = scmp.ne.s32.totalorder %s119, %s135
      %p137 = scmp.eq.s32.totalorder %s20, 0
      %p138 = por %p136, %p137
      %s139 = ssub.s32 %s21, %s33
      %p140 = scmp.eq.s32.totalorder %s139, 0
      %s142 = sadd.s32 %s141, 1
      %s143 = scalar_select %p140, %s141, %s142
      %p146 = pneg %p140
      %p147 = scmp.eq.s32.totalorder %s14, 1
      %p148 = por %p146, %p147
      %p149 = scmp.ne.s32.totalorder %s141, %s144
      %p150 = scmp.eq.s32.totalorder %s14, 0
      %p151 = por %p149, %p150
      %p152 = scmp.ne.s32.totalorder %s141, %s144
      %p153 = scmp.eq.s32.totalorder %s19, 1
      %p154 = por %p152, %p153
      %p155 = scmp.ne.s32.totalorder %s144, %s145
      %p156 = scmp.eq.s32.totalorder %s19, 0
      %p157 = por %p155, %p156
      %p158 = scmp.ne.s32.totalorder %s144, %s145
      %p159 = scmp.eq.s32.totalorder %s20, 1
      %p160 = por %p158, %p159
      %p162 = scmp.ne.s32.totalorder %s145, %s161
      %p163 = scmp.eq.s32.totalorder %s20, 0
      %p164 = por %p162, %p163
      %p165 = scmp.le.s32.totalorder 1, %s14
      %p166 = scmp.lt.s32.totalorder %s14, 3
      %p167 = pnand %p165, %p166
      %p168 = pneg %p167
      // Predicated region
      $region9: #{smpl_forward.2} parent=5 // pred_check
        _
      $region10: #{smpl_forward.2} parent=5 // pred_check_branch
        %170 = sbr.rel (%p167) target = $region12
      $region11: #{smpl_forward.2} parent=5 // pred_region
        %s171 = ssub.s32 %s14, 1
        // Predicated region
        $region13: #{smpl_forward.2} parent=11 // pred_check
          %p172 = pneg %p47
        $region14: #{smpl_forward.2} parent=11 // pred_check_branch
          %174 = sbr.rel (%p172) target = $region16
        $region15: #{smpl_forward.2} parent=11 // pred_region
          _
        $region16: #{smpl_forward.2} parent=11 // pred_fallthru
          _
      $region12: #{smpl_forward.2} parent=5 // pred_fallthru
        _
      %p175 = scmp.lt.s32.totalorder %s14, 2
      // Predicated region
      $region17: #{smpl_forward.2} parent=5 // pred_check
        %p176 = pneg %p175
      $region18: #{smpl_forward.2} parent=5 // pred_check_branch
        %178 = sbr.rel (%p176) target = $region20
      $region19: #{smpl_forward.2} parent=5 // pred_region
        // Predicated region
        $region21: #{smpl_forward.2} parent=19 // pred_check
          %p179 = pneg %p69
        $region22: #{smpl_forward.2} parent=19 // pred_check_branch
          %181 = sbr.rel (%p179) target = $region24
        $region23: #{smpl_forward.2} parent=19 // pred_region
          %s182 = sand.u32 %s59, 1
          %s183 = scalar_lea.sflag [#allocation3], %s182
          %s184 = sand.u32 %s59, 1
          %s185 = smul.addr %s184, 40
          %s186 = scalar_lea.vmem [#allocation2], %s185
          %s187 = sadd.s32 %s21, %s22
          %s188 = smul.u32 2, %s187
          %190 = vsyncadd %s183, 0
          %s191 = smul.addr %s188, 4
          %s192 = scalar_lea.hbm %s1, %s191
          %s193 = sshll.u32 %s192, 4
          %s194 = int_to_ptr.hbm [resolvable:$true] %s193
          %s195 = sshll.u32 %s186, 4
          %s196 = int_to_ptr.vmem [resolvable:$true] %s195
          %201 = dma.hbm_to_vmem [thread:$0]  %s194, 640, %s196, %s183, 256, 128, 8
        $region24: #{smpl_forward.2} parent=19 // pred_fallthru
          _
        // Predicated region
        $region25: #{smpl_forward.2} parent=19 // pred_check
          %p202 = pneg %p97
        $region26: #{smpl_forward.2} parent=19 // pred_check_branch
          %204 = sbr.rel (%p202) target = $region28
        $region27: #{smpl_forward.2} parent=19 // pred_region
          %s205 = sand.u32 %s87, 1
          %s206 = sand.u32 %s87, 1
          %s207 = smul.addr %s206, 24
          %s208 = scalar_lea.vmem [#allocation4], %s207
          %s209 = sadd.s32 %s21, %s22
          %s210 = smul.u32 2, %s209
          %s211 = smul.addr %s210, 4
          %s212 = scalar_lea.vmem %s2, %s211
          // Predicated region
          $region29: #{smpl_forward.2} parent=27 // pred_check
            _
          $region30: #{smpl_forward.2} parent=27 // pred_check_branch
            %214 = sbr.rel (0) target = $region32
          $region31: #{smpl_forward.2} parent=27 // pred_region
            // Predicated region
            $region33: #{smpl_forward.2} parent=31 // pred_check
              _
            $region34: #{smpl_forward.2} parent=31 // pred_check_branch
              %216 = sbr.rel (0) target = $region36
            $region35: #{smpl_forward.2} parent=31 // pred_region
              // Predicated region
              $region48: #{smpl_forward.2} parent=35 // pred_check
                _
              $region49: #{smpl_forward.2} parent=35 // pred_check_branch
                %236 = sbr.rel (0) target = $region51
              $region50: #{smpl_forward.2} parent=35 // pred_region
                loop: start=0, step=1, limit=1
                $region52: #{smpl_forward.2} parent=50 // loop_pre_header
                  _
                $region53: #{smpl_forward.2} parent=50 // loop_header
                  %s238 = sphi 0, %s242
                  %p239 = scmp.ge.s32.totalorder %s238, 1
                  %s243 = sphi %s212, %s212
                  %s244 = sphi %s208, %s208
                $region54: #{smpl_forward.2} parent=50 // loop_header_branch
                  %241 = sbr.rel (%p239) target = $region58
                $region55: #{smpl_forward.2} parent=50 // loop_body
                  %v245 = vld [vmem:[%s243] sm:$0xff]
                  %246 = vst [vmem:[%s244] sm:$0xff] %v245
                  %v247 = vld [vmem:[%s243 + $0x10] sm:$0xff]
                  %248 = vst [vmem:[%s244 + $0x8] sm:$0xff] %v247
                  %v249 = vld [vmem:[%s243 + $0x20] sm:$0xff]
                  %250 = vst [vmem:[%s244 + $0x10] sm:$0xff] %v249
                $region56: #{smpl_forward.2} parent=50 // loop_footer
                  %s242 = sadd.s32 1, %s238
                $region57: #{smpl_forward.2} parent=50 // loop_footer_branch
                  %237 = sbr.rel target = $region53
                $region58: #{smpl_forward.2} parent=50 // loop_exit
                  _
              $region51: #{smpl_forward.2} parent=35 // pred_fallthru
                _
              // Predicated region
              $region59: #{smpl_forward.2} parent=35 // pred_check
                _
              $region60: #{smpl_forward.2} parent=35 // pred_check_branch
                %252 = sbr.rel target = $region62
              $region61: #{smpl_forward.2} parent=35 // pred_region
                _
              $region62: #{smpl_forward.2} parent=35 // pred_fallthru
                _
            $region36: #{smpl_forward.2} parent=31 // pred_fallthru
              _
            // Predicated region
            $region37: #{smpl_forward.2} parent=31 // pred_check
              _
            $region38: #{smpl_forward.2} parent=31 // pred_check_branch
              %218 = sbr.rel target = $region40
            $region39: #{smpl_forward.2} parent=31 // pred_region
              %s220 = ssub.s32 256, 1
              loop: start=0, step=1, limit=1
              $region41: #{smpl_forward.2} parent=39 // loop_pre_header
                _
              $region42: #{smpl_forward.2} parent=39 // loop_header
                %s222 = sphi 0, %s226
                %p223 = scmp.ge.s32.totalorder %s222, 1
                %s227 = sphi %s212, %s212
                %s228 = sphi %s208, %s208
              $region43: #{smpl_forward.2} parent=39 // loop_header_branch
                %225 = sbr.rel (%p223) target = $region47
              $region44: #{smpl_forward.2} parent=39 // loop_body
                %v229 = vld [vmem:[%s227] sm:%s220]
                %230 = vst [vmem:[%s228] sm:%s220] %v229
                %v231 = vld [vmem:[%s227 + $0x10] sm:%s220]
                %232 = vst [vmem:[%s228 + $0x8] sm:%s220] %v231
                %v233 = vld [vmem:[%s227 + $0x20] sm:%s220]
                %234 = vst [vmem:[%s228 + $0x10] sm:%s220] %v233
              $region45: #{smpl_forward.2} parent=39 // loop_footer
                %s226 = sadd.s32 1, %s222
              $region46: #{smpl_forward.2} parent=39 // loop_footer_branch
                %221 = sbr.rel target = $region42
              $region47: #{smpl_forward.2} parent=39 // loop_exit
                _
            $region40: #{smpl_forward.2} parent=31 // pred_fallthru
              _
          $region32: #{smpl_forward.2} parent=27 // pred_fallthru
            _
          %253 = vnop
        $region28: #{smpl_forward.2} parent=19 // pred_fallthru
          _
      $region20: #{smpl_forward.2} parent=5 // pred_fallthru
        _
      %p254 = scmp.le.s32.totalorder 1, %s14
      %p255 = scmp.lt.s32.totalorder %s14, 3
      %p256 = pnand %p254, %p255
      %p257 = pneg %p256
      // Predicated region
      $region63: #{smpl_forward.2} parent=5 // pred_check
        _
      $region64: #{smpl_forward.2} parent=5 // pred_check_branch
        %259 = sbr.rel (%p256) target = $region66
      $region65: #{smpl_forward.2} parent=5 // pred_region
        %s260 = ssub.s32 %s14, 1
        %s261 = sand.u32 %s62, 1
        %s262 = scalar_lea.sflag [#allocation3], %s261
        %s263 = sand.u32 %s62, 1
        %s264 = smul.addr %s263, 40
        %s265 = scalar_lea.vmem [#allocation2], %s264
        // Predicated region
        $region67: #{smpl_forward.2} parent=65 // pred_check
          %p266 = pneg %p75
        $region68: #{smpl_forward.2} parent=65 // pred_check_branch
          %268 = sbr.rel (%p266) target = $region70
        $region69: #{smpl_forward.2} parent=65 // pred_region
          %270 = dma.done %s262, 640
        $region70: #{smpl_forward.2} parent=65 // pred_fallthru
          _
        %s271 = sand.u32 %s90, 1
        %s272 = sand.u32 %s90, 1
        %s273 = smul.addr %s272, 24
        %s274 = scalar_lea.vmem [#allocation4], %s273
        // Predicated region
        $region71: #{smpl_forward.2} parent=65 // pred_check
          %p275 = pneg %p103
        $region72: #{smpl_forward.2} parent=65 // pred_check_branch
          %277 = sbr.rel (%p275) target = $region74
        $region73: #{smpl_forward.2} parent=65 // pred_region
          _
        $region74: #{smpl_forward.2} parent=65 // pred_fallthru
          _
        %p278 = pneg %p47
        %p279 = pneg %p44
        %s280 = sand.u32 %s62, 1
        %s281 = scalar_lea.sflag [#allocation3], %s280
        %s282 = sand.u32 %s62, 1
        %s283 = smul.addr %s282, 40
        %s284 = scalar_lea.vmem [#allocation2], %s283
        %p285 = pneg %p75
        %p286 = pneg %p72
        %s287 = sand.u32 %s90, 1
        %s288 = sand.u32 %s90, 1
        %s289 = smul.addr %s288, 24
        %s290 = scalar_lea.vmem [#allocation4], %s289
        %p291 = pneg %p103
        %p292 = pneg %p100
        %p293 = pneg %p131
        %p294 = pneg %p128
        %s295 = sadd.s32 %s23, %s24
        %s296 = smul.u32 2, %s295
        %p297 = scmp.lt.s32.totalorder %s296, 3
        %s298 = scalar_select %p297, %s296, 3
        %s299 = smul.addr %s298, 8
        %s300 = scalar_lea.vmem %s3, %s299
        %p301 = pneg %p157
        %p302 = pneg %p154
        %p303 = scmp.lt.s32.totalorder %s23, 1
        %s304 = scalar_select %p303, %s23, 1
        %s305 = smul.addr %s304, 8
        %s306 = scalar_lea.vmem %s4, %s305
        %s307 = sadd.s32 %s23, %s24
        %s308 = smul.u32 2, %s307
        %s309 = sadd.s32 %s23, %s24
        %s310 = smul.u32 2, %s309
        %s311 = sadd.s32 %s23, %s24
        %s312 = smul.u32 2, %s311
        %p313 = scmp.lt.s32.totalorder %s312, 3
        %s314 = scalar_select %p313, %s312, 3
        %s315 = smul.addr %s314, 8
        %s316 = scalar_lea.vmem %s3, %s315
        %s317 = sadd.s32 %s23, %s24
        %s318 = smul.u32 2, %s317
        %p319 = scmp.lt.s32.totalorder %s23, 1
        %s320 = scalar_select %p319, %s23, 1
        %s321 = smul.addr %s320, 8
        %s322 = scalar_lea.vmem %s4, %s321
        %p324 = scmp.eq.s32.totalorder %s24, 0
        // Predicated region
        $region75: #{smpl_forward.2} parent=65 // pred_check
          %p325 = pneg %p324
        $region76: #{smpl_forward.2} parent=65 // pred_check_branch
          %327 = sbr.rel (%p325) target = $region78
        $region77: #{smpl_forward.2} parent=65 // pred_region
          %vm328 = vcmask 193536
          %329 = vst.msk [vmem:[%s322] sm:$0x3f] %vm328, 0.0
        $region78: #{smpl_forward.2} parent=65 // pred_fallthru
          _
        %v330 = vld [vmem:[%s0] sm:$0x7]
        %v331 = vld [vmem:[%s265] sm:$0xff]
        %v332 = vld [vmem:[%s265 + $0x8] sm:$0xff]
        %v333 = vld [vmem:[%s265 + $0x10] sm:$0xff]
        %v334 = vld [vmem:[%s265 + $0x18] sm:$0xff]
        %v335 = vld [vmem:[%s265 + $0x20] sm:$0x11]
        %v341 = vunpack.c.l.b16 %v331
        %v342 = vunpack.c.h.b16 %v331
        %v343 = vunpack.c.l.b16 %v332
        %v344 = vunpack.c.h.b16 %v332
        %v345 = vunpack.c.l.b16 %v333
        %v346 = vunpack.c.h.b16 %v333
        %v347 = vunpack.c.l.b16 %v334
        %v348 = vunpack.c.h.b16 %v334
        %v349 = vunpack.c.l.b16 %v335
        %v350 = vunpack.c.h.b16 %v335
        %v351 = vpack.c.b16 %v343, %v341
        %v352 = vpack.c.b16 %v344, %v342
        %v353 = vpack.c.b16 %v347, %v345
        %v354 = vpack.c.b16 %v348, %v346
        %v355 = vpack.c.b16 %v349, %v349
        %v356 = vpack.c.b16 %v350, %v350
        %vm361 = vcmask 269312
        %v363 = vsel %vm361, %v330, 0
        %vm365 = vcmask 1040384
        %v366 = vsel 0, 4294967295, 65535
        %v367 = vsel %vm365, %v366, 0
        %v369 = vand.u32 %v355, %v367
        %v372 = vand.u32 %v356, %v367
        %374 = vmatpush.bf16.msra.mxu0 0
        %375 = vmatpush.bf16.msra.mxu0 0
        %376 = vmatpush.bf16.msra.mxu0 0
        %377 = vmatpush.bf16.msra.mxu0 0
        %378 = vmatpush.bf16.msra.mxu0 0
        %379 = vmatpush.bf16.msra.mxu0 %v369
        %380 = vmatpush.bf16.msra.mxu0 %v353
        %381 = vmatpush.bf16.msra.mxu0 %v351
        %382 = vmatmul.bf16.gmra.mxu0 %v363
        %v383 = vpop.f32.mrf.mxu0
        %v384 = vadd.f32 0.0, %v383
        %v385 = vpop.f32.mrf.mxu0
        %386 = vdwg.mxu0
        %387 = vmatpush.bf16.msra.mxu0 0
        %388 = vmatpush.bf16.msra.mxu0 0
        %389 = vmatpush.bf16.msra.mxu0 0
        %390 = vmatpush.bf16.msra.mxu0 0
        %391 = vmatpush.bf16.msra.mxu0 0
        %392 = vmatpush.bf16.msra.mxu0 %v372
        %393 = vmatpush.bf16.msra.mxu0 %v354
        %394 = vmatpush.bf16.msra.mxu0 %v352
        %395 = vmatmul.bf16.gmra.mxu0 %v363
        %v396 = vpop.f32.mrf.mxu0
        %v397 = vadd.f32 0.0, %v396
        %v398 = vpop.f32.mrf.mxu0
        %399 = vdwg.mxu0
        %400 = vst [vmem:[%s316] sm:$0x3f] %v384
        %401 = vst [vmem:[%s316 + $0x8] sm:$0x3f] %v397
        %v402 = vld [vmem:[%s322] sm:$0x3f]
        %v403 = vpack.c.bf16 %v384, %v384
        %v404 = vpack.c.bf16 %v397, %v397
        %v405 = vld [vmem:[%s274] sm:$0xff]
        %v406 = vld [vmem:[%s274 + $0x8] sm:$0xff]
        %v407 = vld [vmem:[%s274 + $0x10] sm:$0xff]
        %v411 = vunpack.c.l.b16 %v405
        %v412 = vunpack.c.h.b16 %v405
        %v413 = vunpack.c.l.b16 %v406
        %v414 = vunpack.c.h.b16 %v406
        %v415 = vunpack.c.l.b16 %v407
        %v416 = vunpack.c.h.b16 %v407
        %v417 = vpack.c.b16 %v413, %v411
        %v418 = vpack.c.b16 %v414, %v412
        %v419 = vpack.c.b16 %v415, %v415
        %v420 = vpack.c.b16 %v416, %v416
        %425 = vmatpush.bf16.xpose.msra.mxu0 0
        %426 = vmatpush.bf16.xpose.msra.mxu0 0
        %427 = vmatpush.bf16.xpose.msra.mxu0 0
        %428 = vmatpush.bf16.xpose.msra.mxu0 0
        %429 = vmatpush.bf16.xpose.msra.mxu0 0
        %430 = vmatpush.bf16.xpose.msra.mxu0 0
        %431 = vmatpush.bf16.xpose.msra.mxu0 %v419
        %432 = vmatpush.bf16.xpose.msra.mxu0 %v417
        %433 = vmatmul.bf16.gmra.mxu0 %v403
        %v434 = vpop.f32.mrf.mxu0
        %v435 = vadd.f32 0.0, %v434
        %v436 = vpop.f32.mrf.mxu0
        %437 = vdwg.mxu0
        %438 = vmatpush.bf16.xpose.msra.mxu0 0
        %439 = vmatpush.bf16.xpose.msra.mxu0 0
        %440 = vmatpush.bf16.xpose.msra.mxu0 0
        %441 = vmatpush.bf16.xpose.msra.mxu0 0
        %442 = vmatpush.bf16.xpose.msra.mxu0 0
        %443 = vmatpush.bf16.xpose.msra.mxu0 0
        %444 = vmatpush.bf16.xpose.msra.mxu0 %v420
        %445 = vmatpush.bf16.xpose.msra.mxu0 %v418
        %446 = vmatmul.bf16.gmra.mxu0 %v404
        %v447 = vpop.f32.mrf.mxu0
        %v448 = vadd.f32 %v435, %v447
        %v449 = vpop.f32.mrf.mxu0
        %450 = vdwg.mxu0
        %v451 = vadd.f32 %v402, %v448
        %vm452 = vcmask 193536
        %453 = vst.msk [vmem:[%s322] sm:$0x3f] %vm452, %v451
        %s454 = sadd.s32 %s23, %s24
        %s455 = smul.u32 2, %s454
        %p456 = scmp.lt.s32.totalorder %s455, 3
        %s457 = scalar_select %p456, %s455, 3
        %s458 = smul.addr %s457, 8
        %s459 = scalar_lea.vmem %s3, %s458
        %p460 = scmp.lt.s32.totalorder %s23, 1
        %s461 = scalar_select %p460, %s23, 1
        %s462 = smul.addr %s461, 8
        %s463 = scalar_lea.vmem %s4, %s462
        // Predicated region
        $region79: #{smpl_forward.2} parent=65 // pred_check
          %p464 = pneg %p128
        $region80: #{smpl_forward.2} parent=65 // pred_check_branch
          %466 = sbr.rel (%p464) target = $region82
        $region81: #{smpl_forward.2} parent=65 // pred_region
          %s467 = sadd.s32 %s23, %s24
          %s468 = smul.u32 2, %s467
        $region82: #{smpl_forward.2} parent=65 // pred_fallthru
          _
        // Predicated region
        $region83: #{smpl_forward.2} parent=65 // pred_check
          %p469 = pneg %p154
        $region84: #{smpl_forward.2} parent=65 // pred_check_branch
          %471 = sbr.rel (%p469) target = $region86
        $region85: #{smpl_forward.2} parent=65 // pred_region
          _
        $region86: #{smpl_forward.2} parent=65 // pred_fallthru
          _
      $region66: #{smpl_forward.2} parent=5 // pred_fallthru
        _
      %p472 = scmp.le.s32.totalorder 2, %s14
      // Predicated region
      $region87: #{smpl_forward.2} parent=5 // pred_check
        %p473 = pneg %p472
      $region88: #{smpl_forward.2} parent=5 // pred_check_branch
        %475 = sbr.rel (%p473) target = $region90
      $region89: #{smpl_forward.2} parent=5 // pred_region
        %s476 = ssub.s32 %s14, 2
        // Predicated region
        $region91: #{smpl_forward.2} parent=89 // pred_check
          %p477 = pneg %p134
        $region92: #{smpl_forward.2} parent=89 // pred_check_branch
          %479 = sbr.rel (%p477) target = $region94
        $region93: #{smpl_forward.2} parent=89 // pred_region
          %s480 = sadd.s32 %s25, %s26
          %s481 = smul.u32 2, %s480
          %p482 = scmp.lt.s32.totalorder %s481, 3
          %s483 = scalar_select %p482, %s481, 3
          %s484 = smul.addr %s483, 8
          %s485 = scalar_lea.vmem %s3, %s484
        $region94: #{smpl_forward.2} parent=89 // pred_fallthru
          _
        // Predicated region
        $region95: #{smpl_forward.2} parent=89 // pred_check
          %p486 = pneg %p160
        $region96: #{smpl_forward.2} parent=89 // pred_check_branch
          %488 = sbr.rel (%p486) target = $region98
        $region97: #{smpl_forward.2} parent=89 // pred_region
          %p489 = scmp.lt.s32.totalorder %s25, 1
          %s490 = scalar_select %p489, %s25, 1
          %s491 = smul.addr %s490, 8
          %s492 = scalar_lea.vmem %s4, %s491
        $region98: #{smpl_forward.2} parent=89 // pred_fallthru
          _
      $region90: #{smpl_forward.2} parent=5 // pred_fallthru
        _
    $region6: #{smpl_forward.2} parent=1 // loop_footer
      %s18 = sadd.s32 1, %s14
    $region7: #{smpl_forward.2} parent=1 // loop_footer_branch
      %13 = sbr.rel target = $region3
    $region8: #{smpl_forward.2} parent=1 // loop_exit
      _
    %493 = vsyncpa [#allocation3], 1
    %s494 = scalar_lea.sflag [#allocation3], 1
    %495 = vsyncpa %s494, 1

// kernel: mul.5
$region0: #{mul.5}
  %s0 = inlined_call_operand.vmem [shape: f32[2,23,3,3], index: 0, kind: input, shape index: {}]
  %s1 = inlined_call_operand.vmem [shape: f32[2,207], index: 1, kind: output, shape index: {}]
  $region1: #{mul.5} parent=0
    #allocation0 [shape = 'u8[8192]{0}', space=vmem, size = 0x2000, scoped, tag = 'scoped mem for output reshape']
    #allocation1 [shape = 'u8[188416]{0}', space=vmem, size = 0x2e000, scoped, tag = 'scoped mem for input reshape']
    %s3 = ssub.s32 16, 1
    %s4 = scalar_lea.vmem %s0, 180
    %v5 = vld [vmem:[%s4] sm:%s3]
    %s6 = scalar_lea.vmem [#allocation1], 360
    %7 = vst [vmem:[%s6] sm:%s3] %v5
    %s8 = scalar_lea.vmem %s0, 176
    %v9 = vld [vmem:[%s8] sm:%s3]
    %s10 = scalar_lea.vmem [#allocation1], 352
    %11 = vst [vmem:[%s10] sm:%s3] %v9
    %s12 = scalar_lea.vmem %s0, 172
    %v13 = vld [vmem:[%s12] sm:%s3]
    %s14 = scalar_lea.vmem [#allocation1], 344
    %15 = vst [vmem:[%s14] sm:%s3] %v13
    %s16 = scalar_lea.vmem %s0, 168
    %v17 = vld [vmem:[%s16] sm:%s3]
    %s18 = scalar_lea.vmem [#allocation1], 336
    %19 = vst [vmem:[%s18] sm:%s3] %v17
    %s20 = scalar_lea.vmem %s0, 164
    %v21 = vld [vmem:[%s20] sm:%s3]
    %s22 = scalar_lea.vmem [#allocation1], 328
    %23 = vst [vmem:[%s22] sm:%s3] %v21
    %s24 = scalar_lea.vmem %s0, 160
    %v25 = vld [vmem:[%s24] sm:%s3]
    %s26 = scalar_lea.vmem [#allocation1], 320
    %27 = vst [vmem:[%s26] sm:%s3] %v25
    %s28 = scalar_lea.vmem %s0, 156
    %v29 = vld [vmem:[%s28] sm:%s3]
    %s30 = scalar_lea.vmem [#allocation1], 312
    %31 = vst [vmem:[%s30] sm:%s3] %v29
    %s32 = scalar_lea.vmem %s0, 152
    %v33 = vld [vmem:[%s32] sm:%s3]
    %s34 = scalar_lea.vmem [#allocation1], 304
    %35 = vst [vmem:[%s34] sm:%s3] %v33
    %s36 = scalar_lea.vmem %s0, 148
    %v37 = vld [vmem:[%s36] sm:%s3]
    %s38 = scalar_lea.vmem [#allocation1], 296
    %39 = vst [vmem:[%s38] sm:%s3] %v37
    %s40 = scalar_lea.vmem %s0, 144
    %v41 = vld [vmem:[%s40] sm:%s3]
    %s42 = scalar_lea.vmem [#allocation1], 288
    %43 = vst [vmem:[%s42] sm:%s3] %v41
    %s44 = scalar_lea.vmem %s0, 140
    %v45 = vld [vmem:[%s44] sm:%s3]
    %s46 = scalar_lea.vmem [#allocation1], 280
    %47 = vst [vmem:[%s46] sm:%s3] %v45
    %s48 = scalar_lea.vmem %s0, 136
    %v49 = vld [vmem:[%s48] sm:%s3]
    %s50 = scalar_lea.vmem [#allocation1], 272
    %51 = vst [vmem:[%s50] sm:%s3] %v49
    %s52 = scalar_lea.vmem %s0, 132
    %v53 = vld [vmem:[%s52] sm:%s3]
    %s54 = scalar_lea.vmem [#allocation1], 264
    %55 = vst [vmem:[%s54] sm:%s3] %v53
    %s56 = scalar_lea.vmem %s0, 128
    %v57 = vld [vmem:[%s56] sm:%s3]
    %s58 = scalar_lea.vmem [#allocation1], 256
    %59 = vst [vmem:[%s58] sm:%s3] %v57
    %s60 = scalar_lea.vmem %s0, 124
    %v61 = vld [vmem:[%s60] sm:%s3]
    %s62 = scalar_lea.vmem [#allocation1], 248
    %63 = vst [vmem:[%s62] sm:%s3] %v61
    %s64 = scalar_lea.vmem %s0, 120
    %v65 = vld [vmem:[%s64] sm:%s3]
    %s66 = scalar_lea.vmem [#allocation1], 240
    %67 = vst [vmem:[%s66] sm:%s3] %v65
    %s68 = scalar_lea.vmem %s0, 116
    %v69 = vld [vmem:[%s68] sm:%s3]
    %s70 = scalar_lea.vmem [#allocation1], 232
    %71 = vst [vmem:[%s70] sm:%s3] %v69
    %s72 = scalar_lea.vmem %s0, 112
    %v73 = vld [vmem:[%s72] sm:%s3]
    %s74 = scalar_lea.vmem [#allocation1], 224
    %75 = vst [vmem:[%s74] sm:%s3] %v73
    %s76 = scalar_lea.vmem %s0, 108
    %v77 = vld [vmem:[%s76] sm:%s3]
    %s78 = scalar_lea.vmem [#allocation1], 216
    %79 = vst [vmem:[%s78] sm:%s3] %v77
    %s80 = scalar_lea.vmem %s0, 104
    %v81 = vld [vmem:[%s80] sm:%s3]
    %s82 = scalar_lea.vmem [#allocation1], 208
    %83 = vst [vmem:[%s82] sm:%s3] %v81
    %s84 = scalar_lea.vmem %s0, 100
    %v85 = vld [vmem:[%s84] sm:%s3]
    %s86 = scalar_lea.vmem [#allocation1], 200
    %87 = vst [vmem:[%s86] sm:%s3] %v85
    %s88 = scalar_lea.vmem %s0, 96
    %v89 = vld [vmem:[%s88] sm:%s3]
    %s90 = scalar_lea.vmem [#allocation1], 192
    %91 = vst [vmem:[%s90] sm:%s3] %v89
    %s92 = scalar_lea.vmem %s0, 92
    %v93 = vld [vmem:[%s92] sm:%s3]
    %s94 = scalar_lea.vmem [#allocation1], 184
    %95 = vst [vmem:[%s94] sm:%s3] %v93
    %s96 = scalar_lea.vmem %s0, 88
    %v97 = vld [vmem:[%s96] sm:%s3]
    %s98 = scalar_lea.vmem [#allocation1], 176
    %99 = vst [vmem:[%s98] sm:%s3] %v97
    %s100 = scalar_lea.vmem %s0, 84
    %v101 = vld [vmem:[%s100] sm:%s3]
    %s102 = scalar_lea.vmem [#allocation1], 168
    %103 = vst [vmem:[%s102] sm:%s3] %v101
    %s104 = scalar_lea.vmem %s0, 80
    %v105 = vld [vmem:[%s104] sm:%s3]
    %s106 = scalar_lea.vmem [#allocation1], 160
    %107 = vst [vmem:[%s106] sm:%s3] %v105
    %s108 = scalar_lea.vmem %s0, 76
    %v109 = vld [vmem:[%s108] sm:%s3]
    %s110 = scalar_lea.vmem [#allocation1], 152
    %111 = vst [vmem:[%s110] sm:%s3] %v109
    %s112 = scalar_lea.vmem %s0, 72
    %v113 = vld [vmem:[%s112] sm:%s3]
    %s114 = scalar_lea.vmem [#allocation1], 144
    %115 = vst [vmem:[%s114] sm:%s3] %v113
    %s116 = scalar_lea.vmem %s0, 68
    %v117 = vld [vmem:[%s116] sm:%s3]
    %s118 = scalar_lea.vmem [#allocation1], 136
    %119 = vst [vmem:[%s118] sm:%s3] %v117
    %s120 = scalar_lea.vmem %s0, 64
    %v121 = vld [vmem:[%s120] sm:%s3]
    %s122 = scalar_lea.vmem [#allocation1], 128
    %123 = vst [vmem:[%s122] sm:%s3] %v121
    %s124 = scalar_lea.vmem %s0, 60
    %v125 = vld [vmem:[%s124] sm:%s3]
    %s126 = scalar_lea.vmem [#allocation1], 120
    %127 = vst [vmem:[%s126] sm:%s3] %v125
    %s128 = scalar_lea.vmem %s0, 56
    %v129 = vld [vmem:[%s128] sm:%s3]
    %s130 = scalar_lea.vmem [#allocation1], 112
    %131 = vst [vmem:[%s130] sm:%s3] %v129
    %s132 = scalar_lea.vmem %s0, 52
    %v133 = vld [vmem:[%s132] sm:%s3]
    %s134 = scalar_lea.vmem [#allocation1], 104
    %135 = vst [vmem:[%s134] sm:%s3] %v133
    %s136 = scalar_lea.vmem %s0, 48
    %v137 = vld [vmem:[%s136] sm:%s3]
    %s138 = scalar_lea.vmem [#allocation1], 96
    %139 = vst [vmem:[%s138] sm:%s3] %v137
    %s140 = scalar_lea.vmem %s0, 44
    %v141 = vld [vmem:[%s140] sm:%s3]
    %s142 = scalar_lea.vmem [#allocation1], 88
    %143 = vst [vmem:[%s142] sm:%s3] %v141
    %s144 = scalar_lea.vmem %s0, 40
    %v145 = vld [vmem:[%s144] sm:%s3]
    %s146 = scalar_lea.vmem [#allocation1], 80
    %147 = vst [vmem:[%s146] sm:%s3] %v145
    %s148 = scalar_lea.vmem %s0, 36
    %v149 = vld [vmem:[%s148] sm:%s3]
    %s150 = scalar_lea.vmem [#allocation1], 72
    %151 = vst [vmem:[%s150] sm:%s3] %v149
    %s152 = scalar_lea.vmem %s0, 32
    %v153 = vld [vmem:[%s152] sm:%s3]
    %s154 = scalar_lea.vmem [#allocation1], 64
    %155 = vst [vmem:[%s154] sm:%s3] %v153
    %s156 = scalar_lea.vmem %s0, 28
    %v157 = vld [vmem:[%s156] sm:%s3]
    %s158 = scalar_lea.vmem [#allocation1], 56
    %159 = vst [vmem:[%s158] sm:%s3] %v157
    %s160 = scalar_lea.vmem %s0, 24
    %v161 = vld [vmem:[%s160] sm:%s3]
    %s162 = scalar_lea.vmem [#allocation1], 48
    %163 = vst [vmem:[%s162] sm:%s3] %v161
    %s164 = scalar_lea.vmem %s0, 20
    %v165 = vld [vmem:[%s164] sm:%s3]
    %s166 = scalar_lea.vmem [#allocation1], 40
    %167 = vst [vmem:[%s166] sm:%s3] %v165
    %s168 = scalar_lea.vmem %s0, 16
    %v169 = vld [vmem:[%s168] sm:%s3]
    %s170 = scalar_lea.vmem [#allocation1], 32
    %171 = vst [vmem:[%s170] sm:%s3] %v169
    %s172 = scalar_lea.vmem %s0, 12
    %v173 = vld [vmem:[%s172] sm:%s3]
    %s174 = scalar_lea.vmem [#allocation1], 24
    %175 = vst [vmem:[%s174] sm:%s3] %v173
    %s176 = scalar_lea.vmem %s0, 8
    %v177 = vld [vmem:[%s176] sm:%s3]
    %s178 = scalar_lea.vmem [#allocation1], 16
    %179 = vst [vmem:[%s178] sm:%s3] %v177
    %s180 = scalar_lea.vmem %s0, 4
    %v181 = vld [vmem:[%s180] sm:%s3]
    %s182 = scalar_lea.vmem [#allocation1], 8
    %183 = vst [vmem:[%s182] sm:%s3] %v181
    %v184 = vld [vmem:[%s0] sm:%s3]
    %185 = vst [vmem:[#allocation1] sm:%s3] %v184
    %s186 = smov 3
    %v187 = vld [vmem:[#allocation1] ss:$184 sm:%s186]
    %vm188 = vcmask 23552
    %189 = vst.msk [vmem:[#allocation0] sm:$0x3] %vm188, %v187
    %s190 = scalar_lea.vmem [#allocation1], 112
    %s191 = smov 3
    %v192 = vld [vmem:[%s190] ss:$184 sm:%s191]
    %s193 = scalar_lea.vmem [#allocation1], 112
    %s194 = smov 3
    %v195 = vld [vmem:[%s193] ss:$184 sm:%s194]
    %vm196 = vcmask 15360
    %v197 = vsel %vm196, %v195, %v192
    %198 = vrot.lane.b32.xlu0 %v197, 126
    %v199 = vpop.permute.xlu0 %198
    %vm200 = vcmask 7168
    %s201 = scalar_lea.vmem [#allocation0], 8
    %202 = vst.msk [vmem:[%s201] sm:$0x3] %vm200, %v199
    %vm203 = vcmask 1048560
    %204 = vst.msk [vmem:[#allocation0] sm:$0x3] %vm203, %v199
    %s205 = scalar_lea.vmem [#allocation1], 106
    %s206 = smov 3
    %v207 = vld [vmem:[%s205] ss:$184 sm:%s206]
    %208 = vrot.lane.b32.xlu0 %v207, 123
    %v209 = vpop.permute.xlu0 %208
    %vm210 = vcmask 1032152
    %211 = vst.msk [vmem:[#allocation0] sm:$0x3] %vm210, %v209
    %s212 = scalar_lea.vmem [#allocation1], 105
    %s213 = smov 3
    %v214 = vld [vmem:[%s212] ss:$184 sm:%s213]
    %215 = vrot.lane.b32.xlu0 %v214, 120
    %v216 = vpop.permute.xlu0 %215
    %vm217 = vcmask 1007552
    %218 = vst.msk [vmem:[#allocation0] sm:$0x3] %vm217, %v216
    %s219 = scalar_lea.vmem [#allocation1], 104
    %s220 = smov 3
    %v221 = vld [vmem:[%s219] ss:$184 sm:%s220]
    %222 = vrot.lane.b32.xlu0 %v221, 117
    %v223 = vpop.permute.xlu0 %222
    %vm224 = vcmask 982952
    %225 = vst.msk [vmem:[#allocation0] sm:$0x3] %vm224, %v223
    %s226 = scalar_lea.vmem [#allocation1], 98
    %s227 = smov 3
    %v228 = vld [vmem:[%s226] ss:$184 sm:%s227]
    %229 = vrot.lane.b32.xlu0 %v228, 114
    %v230 = vpop.permute.xlu0 %229
    %vm231 = vcmask 958352
    %232 = vst.msk [vmem:[#allocation0] sm:$0x3] %vm231, %v230
    %s233 = scalar_lea.vmem [#allocation1], 97
    %s234 = smov 3
    %v235 = vld [vmem:[%s233] ss:$184 sm:%s234]
    %236 = vrot.lane.b32.xlu0 %v235, 111
    %v237 = vpop.permute.xlu0 %236
    %vm238 = vcmask 933752
    %239 = vst.msk [vmem:[#allocation0] sm:$0x3] %vm238, %v237
    %s240 = scalar_lea.vmem [#allocation1], 96
    %s241 = smov 3
    %v242 = vld [vmem:[%s240] ss:$184 sm:%s241]
    %243 = vrot.lane.b32.xlu0 %v242, 108
    %v244 = vpop.permute.xlu0 %243
    %vm245 = vcmask 909152
    %246 = vst.msk [vmem:[#allocation0] sm:$0x3] %vm245, %v244
    %s247 = scalar_lea.vmem [#allocation1], 90
    %s248 = smov 3
    %v249 = vld [vmem:[%s247] ss:$184 sm:%s248]
    %250 = vrot.lane.b32.xlu0 %v249, 105
    %v251 = vpop.permute.xlu0 %250
    %vm252 = vcmask 884552
    %253 = vst.msk [vmem:[#allocation0] sm:$0x3] %vm252, %v251
    %s254 = scalar_lea.vmem [#allocation1], 89
    %s255 = smov 3
    %v256 = vld [vmem:[%s254] ss:$184 sm:%s255]
    %257 = vrot.lane.b32.xlu0 %v256, 102
    %v258 = vpop.permute.xlu0 %257
    %vm259 = vcmask 859952
    %260 = vst.msk [vmem:[#allocation0] sm:$0x3] %vm259, %v258
    %s261 = scalar_lea.vmem [#allocation1], 88
    %s262 = smov 3
    %v263 = vld [vmem:[%s261] ss:$184 sm:%s262]
    %264 = vrot.lane.b32.xlu0 %v263, 99
    %v265 = vpop.permute.xlu0 %264
    %vm266 = vcmask 835352
    %267 = vst.msk [vmem:[#allocation0] sm:$0x3] %vm266, %v265
    %s268 = scalar_lea.vmem [#allocation1], 82
    %s269 = smov 3
    %v270 = vld [vmem:[%s268] ss:$184 sm:%s269]
    %271 = vrot.lane.b32.xlu0 %v270, 96
    %v272 = vpop.permute.xlu0 %271
    %vm273 = vcmask 810752
    %274 = vst.msk [vmem:[#allocation0] sm:$0x3] %vm273, %v272
    %s275 = scalar_lea.vmem [#allocation1], 81
    %s276 = smov 3
    %v277 = vld [vmem:[%s275] ss:$184 sm:%s276]
    %278 = vrot.lane.b32.xlu0 %v277, 93
    %v279 = vpop.permute.xlu0 %278
    %vm280 = vcmask 786152
    %281 = vst.msk [vmem:[#allocation0] sm:$0x3] %vm280, %v279
    %s282 = scalar_lea.vmem [#allocation1], 80
    %s283 = smov 3
    %v284 = vld [vmem:[%s282] ss:$184 sm:%s283]
    %285 = vrot.lane.b32.xlu0 %v284, 90
    %v286 = vpop.permute.xlu0 %285
    %vm287 = vcmask 761552
    %288 = vst.msk [vmem:[#allocation0] sm:$0x3] %vm287, %v286
    %s289 = scalar_lea.vmem [#allocation1], 74
    %s290 = smov 3
    %v291 = vld [vmem:[%s289] ss:$184 sm:%s290]
    %292 = vrot.lane.b32.xlu0 %v291, 87
    %v293 = vpop.permute.xlu0 %292
    %vm294 = vcmask 736952
    %295 = vst.msk [vmem:[#allocation0] sm:$0x3] %vm294, %v293
    %s296 = scalar_lea.vmem [#allocation1], 73
    %s297 = smov 3
    %v298 = vld [vmem:[%s296] ss:$184 sm:%s297]
    %299 = vrot.lane.b32.xlu0 %v298, 84
    %v300 = vpop.permute.xlu0 %299
    %vm301 = vcmask 712352
    %302 = vst.msk [vmem:[#allocation0] sm:$0x3] %vm301, %v300
    %s303 = scalar_lea.vmem [#allocation1], 72
    %s304 = smov 3
    %v305 = vld [vmem:[%s303] ss:$184 sm:%s304]
    %306 = vrot.lane.b32.xlu0 %v305, 81
    %v307 = vpop.permute.xlu0 %306
    %vm308 = vcmask 687752
    %309 = vst.msk [vmem:[#allocation0] sm:$0x3] %vm308, %v307
    %s310 = scalar_lea.vmem [#allocation1], 66
    %s311 = smov 3
    %v312 = vld [vmem:[%s310] ss:$184 sm:%s311]
    %313 = vrot.lane.b32.xlu0 %v312, 78
    %v314 = vpop.permute.xlu0 %313
    %vm315 = vcmask 663152
    %316 = vst.msk [vmem:[#allocation0] sm:$0x3] %vm315, %v314
    %s317 = scalar_lea.vmem [#allocation1], 178
    %s318 = smov 3
    %v319 = vld [vmem:[%s317] ss:$184 sm:%s318]
    %320 = vrot.lane.b32.xlu0 %v319, 76
    %v321 = vpop.permute.xlu0 %320
    %vm322 = vcmask 646752
    %s323 = scalar_lea.vmem [#allocation0], 8
    %324 = vst.msk [vmem:[%s323] sm:$0x3] %vm322, %v321
    %s325 = scalar_lea.vmem [#allocation1], 65
    %s326 = smov 3
    %v327 = vld [vmem:[%s325] ss:$184 sm:%s326]
    %328 = vrot.lane.b32.xlu0 %v327, 75
    %v329 = vpop.permute.xlu0 %328
    %vm330 = vcmask 638552
    %331 = vst.msk [vmem:[#allocation0] sm:$0x3] %vm330, %v329
    %s332 = scalar_lea.vmem [#allocation1], 177
    %s333 = smov 3
    %v334 = vld [vmem:[%s332] ss:$184 sm:%s333]
    %335 = vrot.lane.b32.xlu0 %v334, 73
    %v336 = vpop.permute.xlu0 %335
    %vm337 = vcmask 622152
    %s338 = scalar_lea.vmem [#allocation0], 8
    %339 = vst.msk [vmem:[%s338] sm:$0x3] %vm337, %v336
    %s340 = scalar_lea.vmem [#allocation1], 64
    %s341 = smov 3
    %v342 = vld [vmem:[%s340] ss:$184 sm:%s341]
    %343 = vrot.lane.b32.xlu0 %v342, 72
    %v344 = vpop.permute.xlu0 %343
    %vm345 = vcmask 613952
    %346 = vst.msk [vmem:[#allocation0] sm:$0x3] %vm345, %v344
    %s347 = scalar_lea.vmem [#allocation1], 176
    %s348 = smov 3
    %v349 = vld [vmem:[%s347] ss:$184 sm:%s348]
    %350 = vrot.lane.b32.xlu0 %v349, 70
    %v351 = vpop.permute.xlu0 %350
    %vm352 = vcmask 597552
    %s353 = scalar_lea.vmem [#allocation0], 8
    %354 = vst.msk [vmem:[%s353] sm:$0x3] %vm352, %v351
    %s355 = scalar_lea.vmem [#allocation1], 58
    %s356 = smov 3
    %v357 = vld [vmem:[%s355] ss:$184 sm:%s356]
    %358 = vrot.lane.b32.xlu0 %v357, 69
    %v359 = vpop.permute.xlu0 %358
    %vm360 = vcmask 589352
    %361 = vst.msk [vmem:[#allocation0] sm:$0x3] %vm360, %v359
    %s362 = scalar_lea.vmem [#allocation1], 170
    %s363 = smov 3
    %v364 = vld [vmem:[%s362] ss:$184 sm:%s363]
    %365 = vrot.lane.b32.xlu0 %v364, 67
    %v366 = vpop.permute.xlu0 %365
    %vm367 = vcmask 572952
    %s368 = scalar_lea.vmem [#allocation0], 8
    %369 = vst.msk [vmem:[%s368] sm:$0x3] %vm367, %v366
    %s370 = scalar_lea.vmem [#allocation1], 57
    %s371 = smov 3
    %v372 = vld [vmem:[%s370] ss:$184 sm:%s371]
    %373 = vrot.lane.b32.xlu0 %v372, 66
    %v374 = vpop.permute.xlu0 %373
    %vm375 = vcmask 564752
    %376 = vst.msk [vmem:[#allocation0] sm:$0x3] %vm375, %v374
    %s377 = scalar_lea.vmem [#allocation1], 169
    %s378 = smov 3
    %v379 = vld [vmem:[%s377] ss:$184 sm:%s378]
    %380 = vrot.lane.b32.xlu0 %v379, 64
    %v381 = vpop.permute.xlu0 %380
    %vm382 = vcmask 548352
    %s383 = scalar_lea.vmem [#allocation0], 8
    %384 = vst.msk [vmem:[%s383] sm:$0x3] %vm382, %v381
    %s385 = scalar_lea.vmem [#allocation1], 56
    %s386 = smov 3
    %v387 = vld [vmem:[%s385] ss:$184 sm:%s386]
    %388 = vrot.lane.b32.xlu0 %v387, 63
    %v389 = vpop.permute.xlu0 %388
    %vm390 = vcmask 540152
    %391 = vst.msk [vmem:[#allocation0] sm:$0x3] %vm390, %v389
    %s392 = scalar_lea.vmem [#allocation1], 168
    %s393 = smov 3
    %v394 = vld [vmem:[%s392] ss:$184 sm:%s393]
    %395 = vrot.lane.b32.xlu0 %v394, 61
    %v396 = vpop.permute.xlu0 %395
    %vm397 = vcmask 523752
    %s398 = scalar_lea.vmem [#allocation0], 8
    %399 = vst.msk [vmem:[%s398] sm:$0x3] %vm397, %v396
    %s400 = scalar_lea.vmem [#allocation1], 50
    %s401 = smov 3
    %v402 = vld [vmem:[%s400] ss:$184 sm:%s401]
    %403 = vrot.lane.b32.xlu0 %v402, 60
    %v404 = vpop.permute.xlu0 %403
    %vm405 = vcmask 515552
    %406 = vst.msk [vmem:[#allocation0] sm:$0x3] %vm405, %v404
    %s407 = scalar_lea.vmem [#allocation1], 162
    %s408 = smov 3
    %v409 = vld [vmem:[%s407] ss:$184 sm:%s408]
    %410 = vrot.lane.b32.xlu0 %v409, 58
    %v411 = vpop.permute.xlu0 %410
    %vm412 = vcmask 499152
    %s413 = scalar_lea.vmem [#allocation0], 8
    %414 = vst.msk [vmem:[%s413] sm:$0x3] %vm412, %v411
    %s415 = scalar_lea.vmem [#allocation1], 49
    %s416 = smov 3
    %v417 = vld [vmem:[%s415] ss:$184 sm:%s416]
    %418 = vrot.lane.b32.xlu0 %v417, 57
    %v419 = vpop.permute.xlu0 %418
    %vm420 = vcmask 490952
    %421 = vst.msk [vmem:[#allocation0] sm:$0x3] %vm420, %v419
    %s422 = scalar_lea.vmem [#allocation1], 161
    %s423 = smov 3
    %v424 = vld [vmem:[%s422] ss:$184 sm:%s423]
    %425 = vrot.lane.b32.xlu0 %v424, 55
    %v426 = vpop.permute.xlu0 %425
    %vm427 = vcmask 474552
    %s428 = scalar_lea.vmem [#allocation0], 8
    %429 = vst.msk [vmem:[%s428] sm:$0x3] %vm427, %v426
    %s430 = scalar_lea.vmem [#allocation1], 48
    %s431 = smov 3
    %v432 = vld [vmem:[%s430] ss:$184 sm:%s431]
    %433 = vrot.lane.b32.xlu0 %v432, 54
    %v434 = vpop.permute.xlu0 %433
    %vm435 = vcmask 466352
    %436 = vst.msk [vmem:[#allocation0] sm:$0x3] %vm435, %v434
    %s437 = scalar_lea.vmem [#allocation1], 160
    %s438 = smov 3
    %v439 = vld [vmem:[%s437] ss:$184 sm:%s438]
    %440 = vrot.lane.b32.xlu0 %v439, 52
    %v441 = vpop.permute.xlu0 %440
    %vm442 = vcmask 449952
    %s443 = scalar_lea.vmem [#allocation0], 8
    %444 = vst.msk [vmem:[%s443] sm:$0x3] %vm442, %v441
    %s445 = scalar_lea.vmem [#allocation1], 42
    %s446 = smov 3
    %v447 = vld [vmem:[%s445] ss:$184 sm:%s446]
    %448 = vrot.lane.b32.xlu0 %v447, 51
    %v449 = vpop.permute.xlu0 %448
    %vm450 = vcmask 441752
    %451 = vst.msk [vmem:[#allocation0] sm:$0x3] %vm450, %v449
    %s452 = scalar_lea.vmem [#allocation1], 154
    %s453 = smov 3
    %v454 = vld [vmem:[%s452] ss:$184 sm:%s453]
    %455 = vrot.lane.b32.xlu0 %v454, 49
    %v456 = vpop.permute.xlu0 %455
    %vm457 = vcmask 425352
    %s458 = scalar_lea.vmem [#allocation0], 8
    %459 = vst.msk [vmem:[%s458] sm:$0x3] %vm457, %v456
    %s460 = scalar_lea.vmem [#allocation1], 41
    %s461 = smov 3
    %v462 = vld [vmem:[%s460] ss:$184 sm:%s461]
    %463 = vrot.lane.b32.xlu0 %v462, 48
    %v464 = vpop.permute.xlu0 %463
    %vm465 = vcmask 417152
    %466 = vst.msk [vmem:[#allocation0] sm:$0x3] %vm465, %v464
    %s467 = scalar_lea.vmem [#allocation1], 153
    %s468 = smov 3
    %v469 = vld [vmem:[%s467] ss:$184 sm:%s468]
    %470 = vrot.lane.b32.xlu0 %v469, 46
    %v471 = vpop.permute.xlu0 %470
    %vm472 = vcmask 400752
    %s473 = scalar_lea.vmem [#allocation0], 8
    %474 = vst.msk [vmem:[%s473] sm:$0x3] %vm472, %v471
    %s475 = scalar_lea.vmem [#allocation1], 40
    %s476 = smov 3
    %v477 = vld [vmem:[%s475] ss:$184 sm:%s476]
    %478 = vrot.lane.b32.xlu0 %v477, 45
    %v479 = vpop.permute.xlu0 %478
    %vm480 = vcmask 392552
    %481 = vst.msk [vmem:[#allocation0] sm:$0x3] %vm480, %v479
    %s482 = scalar_lea.vmem [#allocation1], 152
    %s483 = smov 3
    %v484 = vld [vmem:[%s482] ss:$184 sm:%s483]
    %485 = vrot.lane.b32.xlu0 %v484, 43
    %v486 = vpop.permute.xlu0 %485
    %vm487 = vcmask 376152
    %s488 = scalar_lea.vmem [#allocation0], 8
    %489 = vst.msk [vmem:[%s488] sm:$0x3] %vm487, %v486
    %s490 = scalar_lea.vmem [#allocation1], 34
    %s491 = smov 3
    %v492 = vld [vmem:[%s490] ss:$184 sm:%s491]
    %493 = vrot.lane.b32.xlu0 %v492, 42
    %v494 = vpop.permute.xlu0 %493
    %vm495 = vcmask 367952
    %496 = vst.msk [vmem:[#allocation0] sm:$0x3] %vm495, %v494
    %s497 = scalar_lea.vmem [#allocation1], 146
    %s498 = smov 3
    %v499 = vld [vmem:[%s497] ss:$184 sm:%s498]
    %500 = vrot.lane.b32.xlu0 %v499, 40
    %v501 = vpop.permute.xlu0 %500
    %vm502 = vcmask 351552
    %s503 = scalar_lea.vmem [#allocation0], 8
    %504 = vst.msk [vmem:[%s503] sm:$0x3] %vm502, %v501
    %s505 = scalar_lea.vmem [#allocation1], 33
    %s506 = smov 3
    %v507 = vld [vmem:[%s505] ss:$184 sm:%s506]
    %508 = vrot.lane.b32.xlu0 %v507, 39
    %v509 = vpop.permute.xlu0 %508
    %vm510 = vcmask 343352
    %511 = vst.msk [vmem:[#allocation0] sm:$0x3] %vm510, %v509
    %s512 = scalar_lea.vmem [#allocation1], 145
    %s513 = smov 3
    %v514 = vld [vmem:[%s512] ss:$184 sm:%s513]
    %515 = vrot.lane.b32.xlu0 %v514, 37
    %v516 = vpop.permute.xlu0 %515
    %vm517 = vcmask 326952
    %s518 = scalar_lea.vmem [#allocation0], 8
    %519 = vst.msk [vmem:[%s518] sm:$0x3] %vm517, %v516
    %s520 = scalar_lea.vmem [#allocation1], 32
    %s521 = smov 3
    %v522 = vld [vmem:[%s520] ss:$184 sm:%s521]
    %523 = vrot.lane.b32.xlu0 %v522, 36
    %v524 = vpop.permute.xlu0 %523
    %vm525 = vcmask 318752
    %526 = vst.msk [vmem:[#allocation0] sm:$0x3] %vm525, %v524
    %s527 = scalar_lea.vmem [#allocation1], 144
    %s528 = smov 3
    %v529 = vld [vmem:[%s527] ss:$184 sm:%s528]
    %530 = vrot.lane.b32.xlu0 %v529, 34
    %v531 = vpop.permute.xlu0 %530
    %vm532 = vcmask 302352
    %s533 = scalar_lea.vmem [#allocation0], 8
    %534 = vst.msk [vmem:[%s533] sm:$0x3] %vm532, %v531
    %s535 = scalar_lea.vmem [#allocation1], 26
    %s536 = smov 3
    %v537 = vld [vmem:[%s535] ss:$184 sm:%s536]
    %538 = vrot.lane.b32.xlu0 %v537, 33
    %v539 = vpop.permute.xlu0 %538
    %vm540 = vcmask 294152
    %541 = vst.msk [vmem:[#allocation0] sm:$0x3] %vm540, %v539
    %s542 = scalar_lea.vmem [#allocation1], 138
    %s543 = smov 3
    %v544 = vld [vmem:[%s542] ss:$184 sm:%s543]
    %545 = vrot.lane.b32.xlu0 %v544, 31
    %v546 = vpop.permute.xlu0 %545
    %vm547 = vcmask 277752
    %s548 = scalar_lea.vmem [#allocation0], 8
    %549 = vst.msk [vmem:[%s548] sm:$0x3] %vm547, %v546
    %s550 = scalar_lea.vmem [#allocation1], 25
    %s551 = smov 3
    %v552 = vld [vmem:[%s550] ss:$184 sm:%s551]
    %553 = vrot.lane.b32.xlu0 %v552, 30
    %v554 = vpop.permute.xlu0 %553
    %vm555 = vcmask 269552
    %556 = vst.msk [vmem:[#allocation0] sm:$0x3] %vm555, %v554
    %s557 = scalar_lea.vmem [#allocation1], 137
    %s558 = smov 3
    %v559 = vld [vmem:[%s557] ss:$184 sm:%s558]
    %560 = vrot.lane.b32.xlu0 %v559, 28
    %v561 = vpop.permute.xlu0 %560
    %vm562 = vcmask 253152
    %s563 = scalar_lea.vmem [#allocation0], 8
    %564 = vst.msk [vmem:[%s563] sm:$0x3] %vm562, %v561
    %s565 = scalar_lea.vmem [#allocation1], 24
    %s566 = smov 3
    %v567 = vld [vmem:[%s565] ss:$184 sm:%s566]
    %568 = vrot.lane.b32.xlu0 %v567, 27
    %v569 = vpop.permute.xlu0 %568
    %vm570 = vcmask 244952
    %571 = vst.msk [vmem:[#allocation0] sm:$0x3] %vm570, %v569
    %s572 = scalar_lea.vmem [#allocation1], 136
    %s573 = smov 3
    %v574 = vld [vmem:[%s572] ss:$184 sm:%s573]
    %575 = vrot.lane.b32.xlu0 %v574, 25
    %v576 = vpop.permute.xlu0 %575
    %vm577 = vcmask 228552
    %s578 = scalar_lea.vmem [#allocation0], 8
    %579 = vst.msk [vmem:[%s578] sm:$0x3] %vm577, %v576
    %s580 = scalar_lea.vmem [#allocation1], 18
    %s581 = smov 3
    %v582 = vld [vmem:[%s580] ss:$184 sm:%s581]
    %583 = vrot.lane.b32.xlu0 %v582, 24
    %v584 = vpop.permute.xlu0 %583
    %vm585 = vcmask 220352
    %586 = vst.msk [vmem:[#allocation0] sm:$0x3] %vm585, %v584
    %s587 = scalar_lea.vmem [#allocation1], 130
    %s588 = smov 3
    %v589 = vld [vmem:[%s587] ss:$184 sm:%s588]
    %590 = vrot.lane.b32.xlu0 %v589, 22
    %v591 = vpop.permute.xlu0 %590
    %vm592 = vcmask 203952
    %s593 = scalar_lea.vmem [#allocation0], 8
    %594 = vst.msk [vmem:[%s593] sm:$0x3] %vm592, %v591
    %s595 = scalar_lea.vmem [#allocation1], 17
    %s596 = smov 3
    %v597 = vld [vmem:[%s595] ss:$184 sm:%s596]
    %598 = vrot.lane.b32.xlu0 %v597, 21
    %v599 = vpop.permute.xlu0 %598
    %vm600 = vcmask 195752
    %601 = vst.msk [vmem:[#allocation0] sm:$0x3] %vm600, %v599
    %s602 = scalar_lea.vmem [#allocation1], 129
    %s603 = smov 3
    %v604 = vld [vmem:[%s602] ss:$184 sm:%s603]
    %605 = vrot.lane.b32.xlu0 %v604, 19
    %v606 = vpop.permute.xlu0 %605
    %vm607 = vcmask 179352
    %s608 = scalar_lea.vmem [#allocation0], 8
    %609 = vst.msk [vmem:[%s608] sm:$0x3] %vm607, %v606
    %s610 = scalar_lea.vmem [#allocation1], 16
    %s611 = smov 3
    %v612 = vld [vmem:[%s610] ss:$184 sm:%s611]
    %613 = vrot.lane.b32.xlu0 %v612, 18
    %v614 = vpop.permute.xlu0 %613
    %vm615 = vcmask 171152
    %616 = vst.msk [vmem:[#allocation0] sm:$0x3] %vm615, %v614
    %s617 = scalar_lea.vmem [#allocation1], 128
    %s618 = smov 3
    %v619 = vld [vmem:[%s617] ss:$184 sm:%s618]
    %620 = vrot.lane.b32.xlu0 %v619, 16
    %v621 = vpop.permute.xlu0 %620
    %vm622 = vcmask 154752
    %s623 = scalar_lea.vmem [#allocation0], 8
    %624 = vst.msk [vmem:[%s623] sm:$0x3] %vm622, %v621
    %s625 = scalar_lea.vmem [#allocation1], 10
    %s626 = smov 3
    %v627 = vld [vmem:[%s625] ss:$184 sm:%s626]
    %628 = vrot.lane.b32.xlu0 %v627, 15
    %v629 = vpop.permute.xlu0 %628
    %vm630 = vcmask 146552
    %631 = vst.msk [vmem:[#allocation0] sm:$0x3] %vm630, %v629
    %s632 = scalar_lea.vmem [#allocation1], 122
    %s633 = smov 3
    %v634 = vld [vmem:[%s632] ss:$184 sm:%s633]
    %635 = vrot.lane.b32.xlu0 %v634, 13
    %v636 = vpop.permute.xlu0 %635
    %vm637 = vcmask 130152
    %s638 = scalar_lea.vmem [#allocation0], 8
    %639 = vst.msk [vmem:[%s638] sm:$0x3] %vm637, %v636
    %s640 = scalar_lea.vmem [#allocation1], 9
    %s641 = smov 3
    %v642 = vld [vmem:[%s640] ss:$184 sm:%s641]
    %643 = vrot.lane.b32.xlu0 %v642, 12
    %v644 = vpop.permute.xlu0 %643
    %vm645 = vcmask 121952
    %646 = vst.msk [vmem:[#allocation0] sm:$0x3] %vm645, %v644
    %s647 = scalar_lea.vmem [#allocation1], 121
    %s648 = smov 3
    %v649 = vld [vmem:[%s647] ss:$184 sm:%s648]
    %650 = vrot.lane.b32.xlu0 %v649, 10
    %v651 = vpop.permute.xlu0 %650
    %vm652 = vcmask 105552
    %s653 = scalar_lea.vmem [#allocation0], 8
    %654 = vst.msk [vmem:[%s653] sm:$0x3] %vm652, %v651
    %s655 = scalar_lea.vmem [#allocation1], 8
    %s656 = smov 3
    %v657 = vld [vmem:[%s655] ss:$184 sm:%s656]
    %658 = vrot.lane.b32.xlu0 %v657, 9
    %v659 = vpop.permute.xlu0 %658
    %vm660 = vcmask 97352
    %661 = vst.msk [vmem:[#allocation0] sm:$0x3] %vm660, %v659
    %s662 = scalar_lea.vmem [#allocation1], 120
    %s663 = smov 3
    %v664 = vld [vmem:[%s662] ss:$184 sm:%s663]
    %665 = vrot.lane.b32.xlu0 %v664, 7
    %v666 = vpop.permute.xlu0 %665
    %vm667 = vcmask 80952
    %s668 = scalar_lea.vmem [#allocation0], 8
    %669 = vst.msk [vmem:[%s668] sm:$0x3] %vm667, %v666
    %s670 = scalar_lea.vmem [#allocation1], 2
    %s671 = smov 3
    %v672 = vld [vmem:[%s670] ss:$184 sm:%s671]
    %673 = vrot.lane.b32.xlu0 %v672, 6
    %v674 = vpop.permute.xlu0 %673
    %vm675 = vcmask 72752
    %676 = vst.msk [vmem:[#allocation0] sm:$0x3] %vm675, %v674
    %s677 = scalar_lea.vmem [#allocation1], 114
    %s678 = smov 3
    %v679 = vld [vmem:[%s677] ss:$184 sm:%s678]
    %680 = vrot.lane.b32.xlu0 %v679, 4
    %v681 = vpop.permute.xlu0 %680
    %vm682 = vcmask 56352
    %s683 = scalar_lea.vmem [#allocation0], 8
    %684 = vst.msk [vmem:[%s683] sm:$0x3] %vm682, %v681
    %s685 = scalar_lea.vmem [#allocation1], 1
    %s686 = smov 3
    %v687 = vld [vmem:[%s685] ss:$184 sm:%s686]
    %688 = vrot.lane.b32.xlu0 %v687, 3
    %v689 = vpop.permute.xlu0 %688
    %vm690 = vcmask 48152
    %691 = vst.msk [vmem:[#allocation0] sm:$0x3] %vm690, %v689
    %s692 = scalar_lea.vmem [#allocation1], 113
    %s693 = smov 3
    %v694 = vld [vmem:[%s692] ss:$184 sm:%s693]
    %695 = vrot.lane.b32.xlu0 %v694, 1
    %v696 = vpop.permute.xlu0 %695
    %vm697 = vcmask 31752
    %s698 = scalar_lea.vmem [#allocation0], 8
    %699 = vst.msk [vmem:[%s698] sm:$0x3] %vm697, %v696
    %s701 = ssub.s32 4, 1
    %v702 = vld [vmem:[#allocation0] sm:%s701]
    %s704 = ssub.s32 4, 1
    %705 = vst [vmem:[%s1] sm:%s704] %v702
    %s706 = scalar_lea.vmem [#allocation0], 8
    %v707 = vld [vmem:[%s706] sm:%s701]
    %s709 = ssub.s32 4, 1
    %s710 = scalar_lea.vmem %s1, 2
    %711 = vst [vmem:[%s710] sm:%s709] %v707

// kernel: smpl_forward.3
$region0: #{smpl_forward.3}
  #allocation0 [shape = 'u32[]', space=smem, size = 0x4, offset = 0x4, fixed_abs, tag = 'smem constant byte address 0x4 - core index']
  #allocation1 [shape = 'u32[72,128]{1,0:T(1,128)}', space=vmem, size = 0x9000, scoped, tag = 'internal scratch']
  %s0 = inlined_call_operand.vmem [shape: bf16[6,621], index: 0, kind: input, shape index: {}]
  %s1 = inlined_call_operand.vmem [shape: bf16[32,24], index: 1, kind: input, shape index: {}]
  %s2 = inlined_call_operand.vmem [shape: f32[6,512], index: 2, kind: input, shape index: {}]
  %s3 = inlined_call_operand.vmem [shape: bf16[621,512], index: 3, kind: input, shape index: {}]
  %s4 = inlined_call_operand.vmem [shape: bf16[24,512], index: 4, kind: input, shape index: {}]
  %s5 = inlined_call_operand.vmem [shape: bf16[50,512], index: 5, kind: input, shape index: {}]
  %s6 = inlined_call_operand.vmem [shape: f32[6,512], index: 6, kind: output, shape index: {0}]
  %s7 = inlined_call_operand.vmem [shape: f32[2,6,50], index: 7, kind: output, shape index: {1}]
  %8 = xla_tuple %s6, %s7
  %s9 = sld [smem:[#allocation0]]
  $region183: #{smpl_forward.3} parent=0
    _
  %s11 = ssub.s32 1, %s9
  %s12 = scalar_select 0, %s11, %s9
  $region1: #{smpl_forward.3} parent=0
    #allocation2 [shape = 'u8[638976]{0}', space=vmem, size = 0x9c000, scoped, tag = 'input window, operand 3']
    #allocation3 [shape = 'u8[24576]{0}', space=vmem, size = 0x6000, scoped, tag = 'input window, operand 4']
    #allocation4 [shape = 'u8[57344]{0}', space=vmem, size = 0xe000, scoped, tag = 'input window, operand 5']
    loop: start=0, step=1, limit=4
    $region2: #{smpl_forward.3} parent=1 // loop_pre_header
      _
    $region3: #{smpl_forward.3} parent=1 // loop_header
      %s14 = sphi 0, %s18
      %p15 = scmp.ge.s32.totalorder %s14, 4
      %s21 = sphi 0, %s33
      %s22 = sphi 0, %s29
      %s23 = sphi 0, %s21
      %s24 = sphi 0, %s22
      %s25 = sphi 0, %s23
      %s26 = sphi 0, %s24
      %s34 = sphi 0, %s34
      %s36 = sphi 0, %s34
      %s37 = sphi 0, %s36
      %s51 = sphi 0, %s37
      %s55 = sphi 0, %s55
      %s57 = sphi 0, %s55
      %s58 = sphi 0, %s57
      %s72 = sphi 0, %s58
      %s80 = sphi 0, %s82
      %s83 = sphi 0, %s80
      %s84 = sphi 0, %s83
      %s100 = sphi 0, %s84
      %s108 = sphi 0, %s110
      %s111 = sphi 0, %s108
      %s112 = sphi 0, %s111
      %s128 = sphi 0, %s112
      %s136 = sphi 0, %s138
      %s139 = sphi 0, %s136
      %s140 = sphi 0, %s139
      %s156 = sphi 0, %s140
      %s164 = sphi 0, %s166
      %s167 = sphi 0, %s164
      %s168 = sphi 0, %s167
      %s184 = sphi 0, %s168
      %s192 = sphi 0, %s194
      %s195 = sphi 0, %s192
      %s196 = sphi 0, %s195
      %s212 = sphi 0, %s196
      %s218 = sphi 0, %s220
      %s221 = sphi 0, %s218
      %s222 = sphi 0, %s221
      %s238 = sphi 0, %s222
    $region4: #{smpl_forward.3} parent=1 // loop_header_branch
      %17 = sbr.rel (%p15) target = $region8
    $region5: #{smpl_forward.3} parent=1 // loop_body
      %s19 = ssub.s32 %s14, 1
      %s20 = ssub.s32 %s14, 2
      %s27 = sadd.s32 1, %s22
      %p28 = scmp.ge.s32.totalorder %s27, 1
      %s29 = scalar_select %p28, 0, %s27
      %s30 = sadd.s32 1, %s21
      %s31 = scalar_select %p28, %s30, %s21
      %p32 = scmp.ge.s32.totalorder %s31, 2
      %s33 = scalar_select %p32, 0, %s31
      %s35 = sadd.s32 %s34, 1
      %p38 = scmp.eq.s32.totalorder %s14, 1
      %p39 = scmp.ne.s32.totalorder %s34, %s36
      %p40 = scmp.eq.s32.totalorder %s14, 0
      %p41 = por %p39, %p40
      %p42 = scmp.ne.s32.totalorder %s34, %s36
      %p43 = scmp.eq.s32.totalorder %s19, 1
      %p44 = por %p42, %p43
      %p45 = scmp.ne.s32.totalorder %s36, %s37
      %p46 = scmp.eq.s32.totalorder %s19, 0
      %p47 = por %p45, %p46
      %p48 = scmp.ne.s32.totalorder %s36, %s37
      %p49 = scmp.eq.s32.totalorder %s20, 1
      %p50 = por %p48, %p49
      %p52 = scmp.ne.s32.totalorder %s37, %s51
      %p53 = scmp.eq.s32.totalorder %s20, 0
      %p54 = por %p52, %p53
      %s56 = sadd.s32 %s55, 1
      %p59 = scmp.eq.s32.totalorder %s14, 1
      %p60 = scmp.ne.s32.totalorder %s55, %s57
      %p61 = scmp.eq.s32.totalorder %s14, 0
      %p62 = por %p60, %p61
      %p63 = scmp.ne.s32.totalorder %s55, %s57
      %p64 = scmp.eq.s32.totalorder %s19, 1
      %p65 = por %p63, %p64
      %p66 = scmp.ne.s32.totalorder %s57, %s58
      %p67 = scmp.eq.s32.totalorder %s19, 0
      %p68 = por %p66, %p67
      %p69 = scmp.ne.s32.totalorder %s57, %s58
      %p70 = scmp.eq.s32.totalorder %s20, 1
      %p71 = por %p69, %p70
      %p73 = scmp.ne.s32.totalorder %s58, %s72
      %p74 = scmp.eq.s32.totalorder %s20, 0
      %p75 = por %p73, %p74
      %s76 = sadd.s32 %s21, %s22
      %s77 = sadd.s32 %s33, %s29
      %s78 = ssub.s32 %s76, %s77
      %p79 = scmp.eq.s32.totalorder %s78, 0
      %s81 = sadd.s32 %s80, 1
      %s82 = scalar_select %p79, %s80, %s81
      %p85 = pneg %p79
      %p86 = scmp.eq.s32.totalorder %s14, 1
      %p87 = por %p85, %p86
      %p88 = scmp.ne.s32.totalorder %s80, %s83
      %p89 = scmp.eq.s32.totalorder %s14, 0
      %p90 = por %p88, %p89
      %p91 = scmp.ne.s32.totalorder %s80, %s83
      %p92 = scmp.eq.s32.totalorder %s19, 1
      %p93 = por %p91, %p92
      %p94 = scmp.ne.s32.totalorder %s83, %s84
      %p95 = scmp.eq.s32.totalorder %s19, 0
      %p96 = por %p94, %p95
      %p97 = scmp.ne.s32.totalorder %s83, %s84
      %p98 = scmp.eq.s32.totalorder %s20, 1
      %p99 = por %p97, %p98
      %p101 = scmp.ne.s32.totalorder %s84, %s100
      %p102 = scmp.eq.s32.totalorder %s20, 0
      %p103 = por %p101, %p102
      %s104 = sadd.s32 %s21, %s22
      %s105 = sadd.s32 %s33, %s29
      %s106 = ssub.s32 %s104, %s105
      %p107 = scmp.eq.s32.totalorder %s106, 0
      %s109 = sadd.s32 %s108, 1
      %s110 = scalar_select %p107, %s108, %s109
      %p113 = pneg %p107
      %p114 = scmp.eq.s32.totalorder %s14, 1
      %p115 = por %p113, %p114
      %p116 = scmp.ne.s32.totalorder %s108, %s111
      %p117 = scmp.eq.s32.totalorder %s14, 0
      %p118 = por %p116, %p117
      %p119 = scmp.ne.s32.totalorder %s108, %s111
      %p120 = scmp.eq.s32.totalorder %s19, 1
      %p121 = por %p119, %p120
      %p122 = scmp.ne.s32.totalorder %s111, %s112
      %p123 = scmp.eq.s32.totalorder %s19, 0
      %p124 = por %p122, %p123
      %p125 = scmp.ne.s32.totalorder %s111, %s112
      %p126 = scmp.eq.s32.totalorder %s20, 1
      %p127 = por %p125, %p126
      %p129 = scmp.ne.s32.totalorder %s112, %s128
      %p130 = scmp.eq.s32.totalorder %s20, 0
      %p131 = por %p129, %p130
      %s132 = sadd.s32 %s21, %s22
      %s133 = sadd.s32 %s33, %s29
      %s134 = ssub.s32 %s132, %s133
      %p135 = scmp.eq.s32.totalorder %s134, 0
      %s137 = sadd.s32 %s136, 1
      %s138 = scalar_select %p135, %s136, %s137
      %p141 = pneg %p135
      %p142 = scmp.eq.s32.totalorder %s14, 1
      %p143 = por %p141, %p142
      %p144 = scmp.ne.s32.totalorder %s136, %s139
      %p145 = scmp.eq.s32.totalorder %s14, 0
      %p146 = por %p144, %p145
      %p147 = scmp.ne.s32.totalorder %s136, %s139
      %p148 = scmp.eq.s32.totalorder %s19, 1
      %p149 = por %p147, %p148
      %p150 = scmp.ne.s32.totalorder %s139, %s140
      %p151 = scmp.eq.s32.totalorder %s19, 0
      %p152 = por %p150, %p151
      %p153 = scmp.ne.s32.totalorder %s139, %s140
      %p154 = scmp.eq.s32.totalorder %s20, 1
      %p155 = por %p153, %p154
      %p157 = scmp.ne.s32.totalorder %s140, %s156
      %p158 = scmp.eq.s32.totalorder %s20, 0
      %p159 = por %p157, %p158
      %s160 = sadd.s32 %s21, %s22
      %s161 = sadd.s32 %s33, %s29
      %s162 = ssub.s32 %s160, %s161
      %p163 = scmp.eq.s32.totalorder %s162, 0
      %s165 = sadd.s32 %s164, 1
      %s166 = scalar_select %p163, %s164, %s165
      %p169 = pneg %p163
      %p170 = scmp.eq.s32.totalorder %s14, 1
      %p171 = por %p169, %p170
      %p172 = scmp.ne.s32.totalorder %s164, %s167
      %p173 = scmp.eq.s32.totalorder %s14, 0
      %p174 = por %p172, %p173
      %p175 = scmp.ne.s32.totalorder %s164, %s167
      %p176 = scmp.eq.s32.totalorder %s19, 1
      %p177 = por %p175, %p176
      %p178 = scmp.ne.s32.totalorder %s167, %s168
      %p179 = scmp.eq.s32.totalorder %s19, 0
      %p180 = por %p178, %p179
      %p181 = scmp.ne.s32.totalorder %s167, %s168
      %p182 = scmp.eq.s32.totalorder %s20, 1
      %p183 = por %p181, %p182
      %p185 = scmp.ne.s32.totalorder %s168, %s184
      %p186 = scmp.eq.s32.totalorder %s20, 0
      %p187 = por %p185, %p186
      %s188 = sadd.s32 %s21, %s22
      %s189 = sadd.s32 %s33, %s29
      %s190 = ssub.s32 %s188, %s189
      %p191 = scmp.eq.s32.totalorder %s190, 0
      %s193 = sadd.s32 %s192, 1
      %s194 = scalar_select %p191, %s192, %s193
      %p197 = pneg %p191
      %p198 = scmp.eq.s32.totalorder %s14, 1
      %p199 = por %p197, %p198
      %p200 = scmp.ne.s32.totalorder %s192, %s195
      %p201 = scmp.eq.s32.totalorder %s14, 0
      %p202 = por %p200, %p201
      %p203 = scmp.ne.s32.totalorder %s192, %s195
      %p204 = scmp.eq.s32.totalorder %s19, 1
      %p205 = por %p203, %p204
      %p206 = scmp.ne.s32.totalorder %s195, %s196
      %p207 = scmp.eq.s32.totalorder %s19, 0
      %p208 = por %p206, %p207
      %p209 = scmp.ne.s32.totalorder %s195, %s196
      %p210 = scmp.eq.s32.totalorder %s20, 1
      %p211 = por %p209, %p210
      %p213 = scmp.ne.s32.totalorder %s196, %s212
      %p214 = scmp.eq.s32.totalorder %s20, 0
      %p215 = por %p213, %p214
      %s216 = ssub.s32 %s21, %s33
      %p217 = scmp.eq.s32.totalorder %s216, 0
      %s219 = sadd.s32 %s218, 1
      %s220 = scalar_select %p217, %s218, %s219
      %p223 = pneg %p217
      %p224 = scmp.eq.s32.totalorder %s14, 1
      %p225 = por %p223, %p224
      %p226 = scmp.ne.s32.totalorder %s218, %s221
      %p227 = scmp.eq.s32.totalorder %s14, 0
      %p228 = por %p226, %p227
      %p229 = scmp.ne.s32.totalorder %s218, %s221
      %p230 = scmp.eq.s32.totalorder %s19, 1
      %p231 = por %p229, %p230
      %p232 = scmp.ne.s32.totalorder %s221, %s222
      %p233 = scmp.eq.s32.totalorder %s19, 0
      %p234 = por %p232, %p233
      %p235 = scmp.ne.s32.totalorder %s221, %s222
      %p236 = scmp.eq.s32.totalorder %s20, 1
      %p237 = por %p235, %p236
      %p239 = scmp.ne.s32.totalorder %s222, %s238
      %p240 = scmp.eq.s32.totalorder %s20, 0
      %p241 = por %p239, %p240
      %p242 = scmp.le.s32.totalorder 1, %s14
      %p243 = scmp.lt.s32.totalorder %s14, 3
      %p244 = pnand %p242, %p243
      %p245 = pneg %p244
      // Predicated region
      $region9: #{smpl_forward.3} parent=5 // pred_check
        _
      $region10: #{smpl_forward.3} parent=5 // pred_check_branch
        %247 = sbr.rel (%p244) target = $region12
      $region11: #{smpl_forward.3} parent=5 // pred_region
        %s248 = ssub.s32 %s14, 1
        // Predicated region
        $region13: #{smpl_forward.3} parent=11 // pred_check
          %p249 = pneg %p47
        $region14: #{smpl_forward.3} parent=11 // pred_check_branch
          %251 = sbr.rel (%p249) target = $region16
        $region15: #{smpl_forward.3} parent=11 // pred_region
          _
        $region16: #{smpl_forward.3} parent=11 // pred_fallthru
          _
        // Predicated region
        $region17: #{smpl_forward.3} parent=11 // pred_check
          %p252 = pneg %p68
        $region18: #{smpl_forward.3} parent=11 // pred_check_branch
          %254 = sbr.rel (%p252) target = $region20
        $region19: #{smpl_forward.3} parent=11 // pred_region
          _
        $region20: #{smpl_forward.3} parent=11 // pred_fallthru
          _
      $region12: #{smpl_forward.3} parent=5 // pred_fallthru
        _
      %p255 = scmp.lt.s32.totalorder %s14, 2
      // Predicated region
      $region21: #{smpl_forward.3} parent=5 // pred_check
        %p256 = pneg %p255
      $region22: #{smpl_forward.3} parent=5 // pred_check_branch
        %258 = sbr.rel (%p256) target = $region24
      $region23: #{smpl_forward.3} parent=5 // pred_region
        // Predicated region
        $region25: #{smpl_forward.3} parent=23 // pred_check
          %p259 = pneg %p90
        $region26: #{smpl_forward.3} parent=23 // pred_check_branch
          %261 = sbr.rel (%p259) target = $region28
        $region27: #{smpl_forward.3} parent=23 // pred_region
          %s262 = sadd.s32 %s21, %s22
          %s263 = smul.u32 2, %s262
          %p264 = scmp.lt.s32.totalorder %s263, 3
          %s265 = scalar_select %p264, %s263, 3
          %s266 = smul.addr %s265, 8
          %s267 = scalar_lea.vmem %s2, %s266
          %s268 = sadd.s32 %s21, %s22
          %s269 = smul.u32 2, %s268
        $region28: #{smpl_forward.3} parent=23 // pred_fallthru
          _
        // Predicated region
        $region29: #{smpl_forward.3} parent=23 // pred_check
          %p270 = pneg %p118
        $region30: #{smpl_forward.3} parent=23 // pred_check_branch
          %272 = sbr.rel (%p270) target = $region32
        $region31: #{smpl_forward.3} parent=23 // pred_region
          %s273 = sand.u32 %s108, 1
          %s274 = sand.u32 %s108, 1
          %s275 = smul.addr %s274, 624
          %s276 = scalar_lea.vmem [#allocation2], %s275
          %s277 = sadd.s32 %s21, %s22
          %s278 = smul.u32 2, %s277
          %s279 = smul.addr %s278, 4
          %s280 = scalar_lea.vmem %s3, %s279
          // Predicated region
          $region33: #{smpl_forward.3} parent=31 // pred_check
            _
          $region34: #{smpl_forward.3} parent=31 // pred_check_branch
            %282 = sbr.rel (0) target = $region36
          $region35: #{smpl_forward.3} parent=31 // pred_region
            // Predicated region
            $region37: #{smpl_forward.3} parent=35 // pred_check
              _
            $region38: #{smpl_forward.3} parent=35 // pred_check_branch
              %284 = sbr.rel (0) target = $region40
            $region39: #{smpl_forward.3} parent=35 // pred_region
              // Predicated region
              $region52: #{smpl_forward.3} parent=39 // pred_check
                _
              $region53: #{smpl_forward.3} parent=39 // pred_check_branch
                %454 = sbr.rel (0) target = $region55
              $region54: #{smpl_forward.3} parent=39 // pred_region
                loop: start=0, step=1, limit=1
                $region56: #{smpl_forward.3} parent=54 // loop_pre_header
                  _
                $region57: #{smpl_forward.3} parent=54 // loop_header
                  %s456 = sphi 0, %s460
                  %p457 = scmp.ge.s32.totalorder %s456, 1
                  %s461 = sphi %s280, %s280
                  %s462 = sphi %s276, %s276
                $region58: #{smpl_forward.3} parent=54 // loop_header_branch
                  %459 = sbr.rel (%p457) target = $region62
                $region59: #{smpl_forward.3} parent=54 // loop_body
                  %v463 = vld [vmem:[%s461] sm:$0xff]
                  %464 = vst [vmem:[%s462] sm:$0xff] %v463
                  %v465 = vld [vmem:[%s461 + $0x10] sm:$0xff]
                  %466 = vst [vmem:[%s462 + $0x8] sm:$0xff] %v465
                  %v467 = vld [vmem:[%s461 + $0x20] sm:$0xff]
                  %468 = vst [vmem:[%s462 + $0x10] sm:$0xff] %v467
                  %v469 = vld [vmem:[%s461 + $0x30] sm:$0xff]
                  %470 = vst [vmem:[%s462 + $0x18] sm:$0xff] %v469
                  %v471 = vld [vmem:[%s461 + $0x40] sm:$0xff]
                  %472 = vst [vmem:[%s462 + $0x20] sm:$0xff] %v471
                  %v473 = vld [vmem:[%s461 + $0x50] sm:$0xff]
                  %474 = vst [vmem:[%s462 + $0x28] sm:$0xff] %v473
                  %v475 = vld [vmem:[%s461 + $0x60] sm:$0xff]
                  %476 = vst [vmem:[%s462 + $0x30] sm:$0xff] %v475
                  %v477 = vld [vmem:[%s461 + $0x70] sm:$0xff]
                  %478 = vst [vmem:[%s462 + $0x38] sm:$0xff] %v477
                  %v479 = vld [vmem:[%s461 + $0x80] sm:$0xff]
                  %480 = vst [vmem:[%s462 + $0x40] sm:$0xff] %v479
                  %v481 = vld [vmem:[%s461 + $0x90] sm:$0xff]
                  %482 = vst [vmem:[%s462 + $0x48] sm:$0xff] %v481
                  %v483 = vld [vmem:[%s461 + $0xa0] sm:$0xff]
                  %484 = vst [vmem:[%s462 + $0x50] sm:$0xff] %v483
                  %v485 = vld [vmem:[%s461 + $0xb0] sm:$0xff]
                  %486 = vst [vmem:[%s462 + $0x58] sm:$0xff] %v485
                  %v487 = vld [vmem:[%s461 + $0xc0] sm:$0xff]
                  %488 = vst [vmem:[%s462 + $0x60] sm:$0xff] %v487
                  %v489 = vld [vmem:[%s461 + $0xd0] sm:$0xff]
                  %490 = vst [vmem:[%s462 + $0x68] sm:$0xff] %v489
                  %v491 = vld [vmem:[%s461 + $0xe0] sm:$0xff]
                  %492 = vst [vmem:[%s462 + $0x70] sm:$0xff] %v491
                  %v493 = vld [vmem:[%s461 + $0xf0] sm:$0xff]
                  %494 = vst [vmem:[%s462 + $0x78] sm:$0xff] %v493
                  %v495 = vld [vmem:[%s461 + $0x100] sm:$0xff]
                  %496 = vst [vmem:[%s462 + $0x80] sm:$0xff] %v495
                  %v497 = vld [vmem:[%s461 + $0x110] sm:$0xff]
                  %498 = vst [vmem:[%s462 + $0x88] sm:$0xff] %v497
                  %v499 = vld [vmem:[%s461 + $0x120] sm:$0xff]
                  %500 = vst [vmem:[%s462 + $0x90] sm:$0xff] %v499
                  %v501 = vld [vmem:[%s461 + $0x130] sm:$0xff]
                  %502 = vst [vmem:[%s462 + $0x98] sm:$0xff] %v501
                  %v503 = vld [vmem:[%s461 + $0x140] sm:$0xff]
                  %504 = vst [vmem:[%s462 + $0xa0] sm:$0xff] %v503
                  %v505 = vld [vmem:[%s461 + $0x150] sm:$0xff]
                  %506 = vst [vmem:[%s462 + $0xa8] sm:$0xff] %v505
                  %v507 = vld [vmem:[%s461 + $0x160] sm:$0xff]
                  %508 = vst [vmem:[%s462 + $0xb0] sm:$0xff] %v507
                  %v509 = vld [vmem:[%s461 + $0x170] sm:$0xff]
                  %510 = vst [vmem:[%s462 + $0xb8] sm:$0xff] %v509
                  %v511 = vld [vmem:[%s461 + $0x180] sm:$0xff]
                  %512 = vst [vmem:[%s462 + $0xc0] sm:$0xff] %v511
                  %v513 = vld [vmem:[%s461 + $0x190] sm:$0xff]
                  %514 = vst [vmem:[%s462 + $0xc8] sm:$0xff] %v513
                  %v515 = vld [vmem:[%s461 + $0x1a0] sm:$0xff]
                  %516 = vst [vmem:[%s462 + $0xd0] sm:$0xff] %v515
                  %v517 = vld [vmem:[%s461 + $0x1b0] sm:$0xff]
                  %518 = vst [vmem:[%s462 + $0xd8] sm:$0xff] %v517
                  %v519 = vld [vmem:[%s461 + $0x1c0] sm:$0xff]
                  %520 = vst [vmem:[%s462 + $0xe0] sm:$0xff] %v519
                  %v521 = vld [vmem:[%s461 + $0x1d0] sm:$0xff]
                  %522 = vst [vmem:[%s462 + $0xe8] sm:$0xff] %v521
                  %v523 = vld [vmem:[%s461 + $0x1e0] sm:$0xff]
                  %524 = vst [vmem:[%s462 + $0xf0] sm:$0xff] %v523
                  %v525 = vld [vmem:[%s461 + $0x1f0] sm:$0xff]
                  %526 = vst [vmem:[%s462 + $0xf8] sm:$0xff] %v525
                  %v527 = vld [vmem:[%s461 + $0x200] sm:$0xff]
                  %528 = vst [vmem:[%s462 + $0x100] sm:$0xff] %v527
                  %v529 = vld [vmem:[%s461 + $0x210] sm:$0xff]
                  %530 = vst [vmem:[%s462 + $0x108] sm:$0xff] %v529
                  %v531 = vld [vmem:[%s461 + $0x220] sm:$0xff]
                  %532 = vst [vmem:[%s462 + $0x110] sm:$0xff] %v531
                  %v533 = vld [vmem:[%s461 + $0x230] sm:$0xff]
                  %534 = vst [vmem:[%s462 + $0x118] sm:$0xff] %v533
                  %v535 = vld [vmem:[%s461 + $0x240] sm:$0xff]
                  %536 = vst [vmem:[%s462 + $0x120] sm:$0xff] %v535
                  %v537 = vld [vmem:[%s461 + $0x250] sm:$0xff]
                  %538 = vst [vmem:[%s462 + $0x128] sm:$0xff] %v537
                  %v539 = vld [vmem:[%s461 + $0x260] sm:$0xff]
                  %540 = vst [vmem:[%s462 + $0x130] sm:$0xff] %v539
                  %v541 = vld [vmem:[%s461 + $0x270] sm:$0xff]
                  %542 = vst [vmem:[%s462 + $0x138] sm:$0xff] %v541
                  %v543 = vld [vmem:[%s461 + $0x280] sm:$0xff]
                  %544 = vst [vmem:[%s462 + $0x140] sm:$0xff] %v543
                  %v545 = vld [vmem:[%s461 + $0x290] sm:$0xff]
                  %546 = vst [vmem:[%s462 + $0x148] sm:$0xff] %v545
                  %v547 = vld [vmem:[%s461 + $0x2a0] sm:$0xff]
                  %548 = vst [vmem:[%s462 + $0x150] sm:$0xff] %v547
                  %v549 = vld [vmem:[%s461 + $0x2b0] sm:$0xff]
                  %550 = vst [vmem:[%s462 + $0x158] sm:$0xff] %v549
                  %v551 = vld [vmem:[%s461 + $0x2c0] sm:$0xff]
                  %552 = vst [vmem:[%s462 + $0x160] sm:$0xff] %v551
                  %v553 = vld [vmem:[%s461 + $0x2d0] sm:$0xff]
                  %554 = vst [vmem:[%s462 + $0x168] sm:$0xff] %v553
                  %v555 = vld [vmem:[%s461 + $0x2e0] sm:$0xff]
                  %556 = vst [vmem:[%s462 + $0x170] sm:$0xff] %v555
                  %v557 = vld [vmem:[%s461 + $0x2f0] sm:$0xff]
                  %558 = vst [vmem:[%s462 + $0x178] sm:$0xff] %v557
                  %v559 = vld [vmem:[%s461 + $0x300] sm:$0xff]
                  %560 = vst [vmem:[%s462 + $0x180] sm:$0xff] %v559
                  %v561 = vld [vmem:[%s461 + $0x310] sm:$0xff]
                  %562 = vst [vmem:[%s462 + $0x188] sm:$0xff] %v561
                  %v563 = vld [vmem:[%s461 + $0x320] sm:$0xff]
                  %564 = vst [vmem:[%s462 + $0x190] sm:$0xff] %v563
                  %v565 = vld [vmem:[%s461 + $0x330] sm:$0xff]
                  %566 = vst [vmem:[%s462 + $0x198] sm:$0xff] %v565
                  %v567 = vld [vmem:[%s461 + $0x340] sm:$0xff]
                  %568 = vst [vmem:[%s462 + $0x1a0] sm:$0xff] %v567
                  %v569 = vld [vmem:[%s461 + $0x350] sm:$0xff]
                  %570 = vst [vmem:[%s462 + $0x1a8] sm:$0xff] %v569
                  %v571 = vld [vmem:[%s461 + $0x360] sm:$0xff]
                  %572 = vst [vmem:[%s462 + $0x1b0] sm:$0xff] %v571
                  %v573 = vld [vmem:[%s461 + $0x370] sm:$0xff]
                  %574 = vst [vmem:[%s462 + $0x1b8] sm:$0xff] %v573
                  %v575 = vld [vmem:[%s461 + $0x380] sm:$0xff]
                  %576 = vst [vmem:[%s462 + $0x1c0] sm:$0xff] %v575
                  %v577 = vld [vmem:[%s461 + $0x390] sm:$0xff]
                  %578 = vst [vmem:[%s462 + $0x1c8] sm:$0xff] %v577
                  %v579 = vld [vmem:[%s461 + $0x3a0] sm:$0xff]
                  %580 = vst [vmem:[%s462 + $0x1d0] sm:$0xff] %v579
                  %v581 = vld [vmem:[%s461 + $0x3b0] sm:$0xff]
                  %582 = vst [vmem:[%s462 + $0x1d8] sm:$0xff] %v581
                  %v583 = vld [vmem:[%s461 + $0x3c0] sm:$0xff]
                  %584 = vst [vmem:[%s462 + $0x1e0] sm:$0xff] %v583
                  %v585 = vld [vmem:[%s461 + $0x3d0] sm:$0xff]
                  %586 = vst [vmem:[%s462 + $0x1e8] sm:$0xff] %v585
                  %v587 = vld [vmem:[%s461 + $0x3e0] sm:$0xff]
                  %588 = vst [vmem:[%s462 + $0x1f0] sm:$0xff] %v587
                  %v589 = vld [vmem:[%s461 + $0x3f0] sm:$0xff]
                  %590 = vst [vmem:[%s462 + $0x1f8] sm:$0xff] %v589
                  %v591 = vld [vmem:[%s461 + $0x400] sm:$0xff]
                  %592 = vst [vmem:[%s462 + $0x200] sm:$0xff] %v591
                  %v593 = vld [vmem:[%s461 + $0x410] sm:$0xff]
                  %594 = vst [vmem:[%s462 + $0x208] sm:$0xff] %v593
                  %v595 = vld [vmem:[%s461 + $0x420] sm:$0xff]
                  %596 = vst [vmem:[%s462 + $0x210] sm:$0xff] %v595
                  %v597 = vld [vmem:[%s461 + $0x430] sm:$0xff]
                  %598 = vst [vmem:[%s462 + $0x218] sm:$0xff] %v597
                  %v599 = vld [vmem:[%s461 + $0x440] sm:$0xff]
                  %600 = vst [vmem:[%s462 + $0x220] sm:$0xff] %v599
                  %v601 = vld [vmem:[%s461 + $0x450] sm:$0xff]
                  %602 = vst [vmem:[%s462 + $0x228] sm:$0xff] %v601
                  %v603 = vld [vmem:[%s461 + $0x460] sm:$0xff]
                  %604 = vst [vmem:[%s462 + $0x230] sm:$0xff] %v603
                  %v605 = vld [vmem:[%s461 + $0x470] sm:$0xff]
                  %606 = vst [vmem:[%s462 + $0x238] sm:$0xff] %v605
                  %v607 = vld [vmem:[%s461 + $0x480] sm:$0xff]
                  %608 = vst [vmem:[%s462 + $0x240] sm:$0xff] %v607
                  %v609 = vld [vmem:[%s461 + $0x490] sm:$0xff]
                  %610 = vst [vmem:[%s462 + $0x248] sm:$0xff] %v609
                  %v611 = vld [vmem:[%s461 + $0x4a0] sm:$0xff]
                  %612 = vst [vmem:[%s462 + $0x250] sm:$0xff] %v611
                  %v613 = vld [vmem:[%s461 + $0x4b0] sm:$0xff]
                  %614 = vst [vmem:[%s462 + $0x258] sm:$0xff] %v613
                  %v615 = vld [vmem:[%s461 + $0x4c0] sm:$0xff]
                  %616 = vst [vmem:[%s462 + $0x260] sm:$0xff] %v615
                  %v617 = vld [vmem:[%s461 + $0x4d0] sm:$0xff]
                  %618 = vst [vmem:[%s462 + $0x268] sm:$0xff] %v617
                $region60: #{smpl_forward.3} parent=54 // loop_footer
                  %s460 = sadd.s32 1, %s456
                $region61: #{smpl_forward.3} parent=54 // loop_footer_branch
                  %455 = sbr.rel target = $region57
                $region62: #{smpl_forward.3} parent=54 // loop_exit
                  _
              $region55: #{smpl_forward.3} parent=39 // pred_fallthru
                _
              // Predicated region
              $region63: #{smpl_forward.3} parent=39 // pred_check
                _
              $region64: #{smpl_forward.3} parent=39 // pred_check_branch
                %620 = sbr.rel target = $region66
              $region65: #{smpl_forward.3} parent=39 // pred_region
                _
              $region66: #{smpl_forward.3} parent=39 // pred_fallthru
                _
            $region40: #{smpl_forward.3} parent=35 // pred_fallthru
              _
            // Predicated region
            $region41: #{smpl_forward.3} parent=35 // pred_check
              _
            $region42: #{smpl_forward.3} parent=35 // pred_check_branch
              %286 = sbr.rel target = $region44
            $region43: #{smpl_forward.3} parent=35 // pred_region
              %s288 = ssub.s32 256, 1
              loop: start=0, step=1, limit=1
              $region45: #{smpl_forward.3} parent=43 // loop_pre_header
                _
              $region46: #{smpl_forward.3} parent=43 // loop_header
                %s290 = sphi 0, %s294
                %p291 = scmp.ge.s32.totalorder %s290, 1
                %s295 = sphi %s280, %s280
                %s296 = sphi %s276, %s276
              $region47: #{smpl_forward.3} parent=43 // loop_header_branch
                %293 = sbr.rel (%p291) target = $region51
              $region48: #{smpl_forward.3} parent=43 // loop_body
                %v297 = vld [vmem:[%s295] sm:%s288]
                %298 = vst [vmem:[%s296] sm:%s288] %v297
                %v299 = vld [vmem:[%s295 + $0x10] sm:%s288]
                %300 = vst [vmem:[%s296 + $0x8] sm:%s288] %v299
                %v301 = vld [vmem:[%s295 + $0x20] sm:%s288]
                %302 = vst [vmem:[%s296 + $0x10] sm:%s288] %v301
                %v303 = vld [vmem:[%s295 + $0x30] sm:%s288]
                %304 = vst [vmem:[%s296 + $0x18] sm:%s288] %v303
                %v305 = vld [vmem:[%s295 + $0x40] sm:%s288]
                %306 = vst [vmem:[%s296 + $0x20] sm:%s288] %v305
                %v307 = vld [vmem:[%s295 + $0x50] sm:%s288]
                %308 = vst [vmem:[%s296 + $0x28] sm:%s288] %v307
                %v309 = vld [vmem:[%s295 + $0x60] sm:%s288]
                %310 = vst [vmem:[%s296 + $0x30] sm:%s288] %v309
                %v311 = vld [vmem:[%s295 + $0x70] sm:%s288]
                %312 = vst [vmem:[%s296 + $0x38] sm:%s288] %v311
                %v313 = vld [vmem:[%s295 + $0x80] sm:%s288]
                %314 = vst [vmem:[%s296 + $0x40] sm:%s288] %v313
                %v315 = vld [vmem:[%s295 + $0x90] sm:%s288]
                %316 = vst [vmem:[%s296 + $0x48] sm:%s288] %v315
                %v317 = vld [vmem:[%s295 + $0xa0] sm:%s288]
                %318 = vst [vmem:[%s296 + $0x50] sm:%s288] %v317
                %v319 = vld [vmem:[%s295 + $0xb0] sm:%s288]
                %320 = vst [vmem:[%s296 + $0x58] sm:%s288] %v319
                %v321 = vld [vmem:[%s295 + $0xc0] sm:%s288]
                %322 = vst [vmem:[%s296 + $0x60] sm:%s288] %v321
                %v323 = vld [vmem:[%s295 + $0xd0] sm:%s288]
                %324 = vst [vmem:[%s296 + $0x68] sm:%s288] %v323
                %v325 = vld [vmem:[%s295 + $0xe0] sm:%s288]
                %326 = vst [vmem:[%s296 + $0x70] sm:%s288] %v325
                %v327 = vld [vmem:[%s295 + $0xf0] sm:%s288]
                %328 = vst [vmem:[%s296 + $0x78] sm:%s288] %v327
                %v329 = vld [vmem:[%s295 + $0x100] sm:%s288]
                %330 = vst [vmem:[%s296 + $0x80] sm:%s288] %v329
                %v331 = vld [vmem:[%s295 + $0x110] sm:%s288]
                %332 = vst [vmem:[%s296 + $0x88] sm:%s288] %v331
                %v333 = vld [vmem:[%s295 + $0x120] sm:%s288]
                %334 = vst [vmem:[%s296 + $0x90] sm:%s288] %v333
                %v335 = vld [vmem:[%s295 + $0x130] sm:%s288]
                %336 = vst [vmem:[%s296 + $0x98] sm:%s288] %v335
                %v337 = vld [vmem:[%s295 + $0x140] sm:%s288]
                %338 = vst [vmem:[%s296 + $0xa0] sm:%s288] %v337
                %v339 = vld [vmem:[%s295 + $0x150] sm:%s288]
                %340 = vst [vmem:[%s296 + $0xa8] sm:%s288] %v339
                %v341 = vld [vmem:[%s295 + $0x160] sm:%s288]
                %342 = vst [vmem:[%s296 + $0xb0] sm:%s288] %v341
                %v343 = vld [vmem:[%s295 + $0x170] sm:%s288]
                %344 = vst [vmem:[%s296 + $0xb8] sm:%s288] %v343
                %v345 = vld [vmem:[%s295 + $0x180] sm:%s288]
                %346 = vst [vmem:[%s296 + $0xc0] sm:%s288] %v345
                %v347 = vld [vmem:[%s295 + $0x190] sm:%s288]
                %348 = vst [vmem:[%s296 + $0xc8] sm:%s288] %v347
                %v349 = vld [vmem:[%s295 + $0x1a0] sm:%s288]
                %350 = vst [vmem:[%s296 + $0xd0] sm:%s288] %v349
                %v351 = vld [vmem:[%s295 + $0x1b0] sm:%s288]
                %352 = vst [vmem:[%s296 + $0xd8] sm:%s288] %v351
                %v353 = vld [vmem:[%s295 + $0x1c0] sm:%s288]
                %354 = vst [vmem:[%s296 + $0xe0] sm:%s288] %v353
                %v355 = vld [vmem:[%s295 + $0x1d0] sm:%s288]
                %356 = vst [vmem:[%s296 + $0xe8] sm:%s288] %v355
                %v357 = vld [vmem:[%s295 + $0x1e0] sm:%s288]
                %358 = vst [vmem:[%s296 + $0xf0] sm:%s288] %v357
                %v359 = vld [vmem:[%s295 + $0x1f0] sm:%s288]
                %360 = vst [vmem:[%s296 + $0xf8] sm:%s288] %v359
                %v361 = vld [vmem:[%s295 + $0x200] sm:%s288]
                %362 = vst [vmem:[%s296 + $0x100] sm:%s288] %v361
                %v363 = vld [vmem:[%s295 + $0x210] sm:%s288]
                %364 = vst [vmem:[%s296 + $0x108] sm:%s288] %v363
                %v365 = vld [vmem:[%s295 + $0x220] sm:%s288]
                %366 = vst [vmem:[%s296 + $0x110] sm:%s288] %v365
                %v367 = vld [vmem:[%s295 + $0x230] sm:%s288]
                %368 = vst [vmem:[%s296 + $0x118] sm:%s288] %v367
                %v369 = vld [vmem:[%s295 + $0x240] sm:%s288]
                %370 = vst [vmem:[%s296 + $0x120] sm:%s288] %v369
                %v371 = vld [vmem:[%s295 + $0x250] sm:%s288]
                %372 = vst [vmem:[%s296 + $0x128] sm:%s288] %v371
                %v373 = vld [vmem:[%s295 + $0x260] sm:%s288]
                %374 = vst [vmem:[%s296 + $0x130] sm:%s288] %v373
                %v375 = vld [vmem:[%s295 + $0x270] sm:%s288]
                %376 = vst [vmem:[%s296 + $0x138] sm:%s288] %v375
                %v377 = vld [vmem:[%s295 + $0x280] sm:%s288]
                %378 = vst [vmem:[%s296 + $0x140] sm:%s288] %v377
                %v379 = vld [vmem:[%s295 + $0x290] sm:%s288]
                %380 = vst [vmem:[%s296 + $0x148] sm:%s288] %v379
                %v381 = vld [vmem:[%s295 + $0x2a0] sm:%s288]
                %382 = vst [vmem:[%s296 + $0x150] sm:%s288] %v381
                %v383 = vld [vmem:[%s295 + $0x2b0] sm:%s288]
                %384 = vst [vmem:[%s296 + $0x158] sm:%s288] %v383
                %v385 = vld [vmem:[%s295 + $0x2c0] sm:%s288]
                %386 = vst [vmem:[%s296 + $0x160] sm:%s288] %v385
                %v387 = vld [vmem:[%s295 + $0x2d0] sm:%s288]
                %388 = vst [vmem:[%s296 + $0x168] sm:%s288] %v387
                %v389 = vld [vmem:[%s295 + $0x2e0] sm:%s288]
                %390 = vst [vmem:[%s296 + $0x170] sm:%s288] %v389
                %v391 = vld [vmem:[%s295 + $0x2f0] sm:%s288]
                %392 = vst [vmem:[%s296 + $0x178] sm:%s288] %v391
                %v393 = vld [vmem:[%s295 + $0x300] sm:%s288]
                %394 = vst [vmem:[%s296 + $0x180] sm:%s288] %v393
                %v395 = vld [vmem:[%s295 + $0x310] sm:%s288]
                %396 = vst [vmem:[%s296 + $0x188] sm:%s288] %v395
                %v397 = vld [vmem:[%s295 + $0x320] sm:%s288]
                %398 = vst [vmem:[%s296 + $0x190] sm:%s288] %v397
                %v399 = vld [vmem:[%s295 + $0x330] sm:%s288]
                %400 = vst [vmem:[%s296 + $0x198] sm:%s288] %v399
                %v401 = vld [vmem:[%s295 + $0x340] sm:%s288]
                %402 = vst [vmem:[%s296 + $0x1a0] sm:%s288] %v401
                %v403 = vld [vmem:[%s295 + $0x350] sm:%s288]
                %404 = vst [vmem:[%s296 + $0x1a8] sm:%s288] %v403
                %v405 = vld [vmem:[%s295 + $0x360] sm:%s288]
                %406 = vst [vmem:[%s296 + $0x1b0] sm:%s288] %v405
                %v407 = vld [vmem:[%s295 + $0x370] sm:%s288]
                %408 = vst [vmem:[%s296 + $0x1b8] sm:%s288] %v407
                %v409 = vld [vmem:[%s295 + $0x380] sm:%s288]
                %410 = vst [vmem:[%s296 + $0x1c0] sm:%s288] %v409
                %v411 = vld [vmem:[%s295 + $0x390] sm:%s288]
                %412 = vst [vmem:[%s296 + $0x1c8] sm:%s288] %v411
                %v413 = vld [vmem:[%s295 + $0x3a0] sm:%s288]
                %414 = vst [vmem:[%s296 + $0x1d0] sm:%s288] %v413
                %v415 = vld [vmem:[%s295 + $0x3b0] sm:%s288]
                %416 = vst [vmem:[%s296 + $0x1d8] sm:%s288] %v415
                %v417 = vld [vmem:[%s295 + $0x3c0] sm:%s288]
                %418 = vst [vmem:[%s296 + $0x1e0] sm:%s288] %v417
                %v419 = vld [vmem:[%s295 + $0x3d0] sm:%s288]
                %420 = vst [vmem:[%s296 + $0x1e8] sm:%s288] %v419
                %v421 = vld [vmem:[%s295 + $0x3e0] sm:%s288]
                %422 = vst [vmem:[%s296 + $0x1f0] sm:%s288] %v421
                %v423 = vld [vmem:[%s295 + $0x3f0] sm:%s288]
                %424 = vst [vmem:[%s296 + $0x1f8] sm:%s288] %v423
                %v425 = vld [vmem:[%s295 + $0x400] sm:%s288]
                %426 = vst [vmem:[%s296 + $0x200] sm:%s288] %v425
                %v427 = vld [vmem:[%s295 + $0x410] sm:%s288]
                %428 = vst [vmem:[%s296 + $0x208] sm:%s288] %v427
                %v429 = vld [vmem:[%s295 + $0x420] sm:%s288]
                %430 = vst [vmem:[%s296 + $0x210] sm:%s288] %v429
                %v431 = vld [vmem:[%s295 + $0x430] sm:%s288]
                %432 = vst [vmem:[%s296 + $0x218] sm:%s288] %v431
                %v433 = vld [vmem:[%s295 + $0x440] sm:%s288]
                %434 = vst [vmem:[%s296 + $0x220] sm:%s288] %v433
                %v435 = vld [vmem:[%s295 + $0x450] sm:%s288]
                %436 = vst [vmem:[%s296 + $0x228] sm:%s288] %v435
                %v437 = vld [vmem:[%s295 + $0x460] sm:%s288]
                %438 = vst [vmem:[%s296 + $0x230] sm:%s288] %v437
                %v439 = vld [vmem:[%s295 + $0x470] sm:%s288]
                %440 = vst [vmem:[%s296 + $0x238] sm:%s288] %v439
                %v441 = vld [vmem:[%s295 + $0x480] sm:%s288]
                %442 = vst [vmem:[%s296 + $0x240] sm:%s288] %v441
                %v443 = vld [vmem:[%s295 + $0x490] sm:%s288]
                %444 = vst [vmem:[%s296 + $0x248] sm:%s288] %v443
                %v445 = vld [vmem:[%s295 + $0x4a0] sm:%s288]
                %446 = vst [vmem:[%s296 + $0x250] sm:%s288] %v445
                %v447 = vld [vmem:[%s295 + $0x4b0] sm:%s288]
                %448 = vst [vmem:[%s296 + $0x258] sm:%s288] %v447
                %v449 = vld [vmem:[%s295 + $0x4c0] sm:%s288]
                %450 = vst [vmem:[%s296 + $0x260] sm:%s288] %v449
                %v451 = vld [vmem:[%s295 + $0x4d0] sm:%s288]
                %452 = vst [vmem:[%s296 + $0x268] sm:%s288] %v451
              $region49: #{smpl_forward.3} parent=43 // loop_footer
                %s294 = sadd.s32 1, %s290
              $region50: #{smpl_forward.3} parent=43 // loop_footer_branch
                %289 = sbr.rel target = $region46
              $region51: #{smpl_forward.3} parent=43 // loop_exit
                _
            $region44: #{smpl_forward.3} parent=35 // pred_fallthru
              _
          $region36: #{smpl_forward.3} parent=31 // pred_fallthru
            _
          %621 = vnop
        $region32: #{smpl_forward.3} parent=23 // pred_fallthru
          _
        // Predicated region
        $region67: #{smpl_forward.3} parent=23 // pred_check
          %p622 = pneg %p146
        $region68: #{smpl_forward.3} parent=23 // pred_check_branch
          %624 = sbr.rel (%p622) target = $region70
        $region69: #{smpl_forward.3} parent=23 // pred_region
          %s625 = sand.u32 %s136, 1
          %s626 = sand.u32 %s136, 1
          %s627 = smul.addr %s626, 24
          %s628 = scalar_lea.vmem [#allocation3], %s627
          %s629 = sadd.s32 %s21, %s22
          %s630 = smul.u32 2, %s629
          %s631 = smul.addr %s630, 4
          %s632 = scalar_lea.vmem %s4, %s631
          // Predicated region
          $region71: #{smpl_forward.3} parent=69 // pred_check
            _
          $region72: #{smpl_forward.3} parent=69 // pred_check_branch
            %634 = sbr.rel (0) target = $region74
          $region73: #{smpl_forward.3} parent=69 // pred_region
            // Predicated region
            $region75: #{smpl_forward.3} parent=73 // pred_check
              _
            $region76: #{smpl_forward.3} parent=73 // pred_check_branch
              %636 = sbr.rel (0) target = $region78
            $region77: #{smpl_forward.3} parent=73 // pred_region
              // Predicated region
              $region90: #{smpl_forward.3} parent=77 // pred_check
                _
              $region91: #{smpl_forward.3} parent=77 // pred_check_branch
                %656 = sbr.rel (0) target = $region93
              $region92: #{smpl_forward.3} parent=77 // pred_region
                loop: start=0, step=1, limit=1
                $region94: #{smpl_forward.3} parent=92 // loop_pre_header
                  _
                $region95: #{smpl_forward.3} parent=92 // loop_header
                  %s658 = sphi 0, %s662
                  %p659 = scmp.ge.s32.totalorder %s658, 1
                  %s663 = sphi %s632, %s632
                  %s664 = sphi %s628, %s628
                $region96: #{smpl_forward.3} parent=92 // loop_header_branch
                  %661 = sbr.rel (%p659) target = $region100
                $region97: #{smpl_forward.3} parent=92 // loop_body
                  %v665 = vld [vmem:[%s663] sm:$0xff]
                  %666 = vst [vmem:[%s664] sm:$0xff] %v665
                  %v667 = vld [vmem:[%s663 + $0x10] sm:$0xff]
                  %668 = vst [vmem:[%s664 + $0x8] sm:$0xff] %v667
                  %v669 = vld [vmem:[%s663 + $0x20] sm:$0xff]
                  %670 = vst [vmem:[%s664 + $0x10] sm:$0xff] %v669
                $region98: #{smpl_forward.3} parent=92 // loop_footer
                  %s662 = sadd.s32 1, %s658
                $region99: #{smpl_forward.3} parent=92 // loop_footer_branch
                  %657 = sbr.rel target = $region95
                $region100: #{smpl_forward.3} parent=92 // loop_exit
                  _
              $region93: #{smpl_forward.3} parent=77 // pred_fallthru
                _
              // Predicated region
              $region101: #{smpl_forward.3} parent=77 // pred_check
                _
              $region102: #{smpl_forward.3} parent=77 // pred_check_branch
                %672 = sbr.rel target = $region104
              $region103: #{smpl_forward.3} parent=77 // pred_region
                _
              $region104: #{smpl_forward.3} parent=77 // pred_fallthru
                _
            $region78: #{smpl_forward.3} parent=73 // pred_fallthru
              _
            // Predicated region
            $region79: #{smpl_forward.3} parent=73 // pred_check
              _
            $region80: #{smpl_forward.3} parent=73 // pred_check_branch
              %638 = sbr.rel target = $region82
            $region81: #{smpl_forward.3} parent=73 // pred_region
              %s640 = ssub.s32 256, 1
              loop: start=0, step=1, limit=1
              $region83: #{smpl_forward.3} parent=81 // loop_pre_header
                _
              $region84: #{smpl_forward.3} parent=81 // loop_header
                %s642 = sphi 0, %s646
                %p643 = scmp.ge.s32.totalorder %s642, 1
                %s647 = sphi %s632, %s632
                %s648 = sphi %s628, %s628
              $region85: #{smpl_forward.3} parent=81 // loop_header_branch
                %645 = sbr.rel (%p643) target = $region89
              $region86: #{smpl_forward.3} parent=81 // loop_body
                %v649 = vld [vmem:[%s647] sm:%s640]
                %650 = vst [vmem:[%s648] sm:%s640] %v649
                %v651 = vld [vmem:[%s647 + $0x10] sm:%s640]
                %652 = vst [vmem:[%s648 + $0x8] sm:%s640] %v651
                %v653 = vld [vmem:[%s647 + $0x20] sm:%s640]
                %654 = vst [vmem:[%s648 + $0x10] sm:%s640] %v653
              $region87: #{smpl_forward.3} parent=81 // loop_footer
                %s646 = sadd.s32 1, %s642
              $region88: #{smpl_forward.3} parent=81 // loop_footer_branch
                %641 = sbr.rel target = $region84
              $region89: #{smpl_forward.3} parent=81 // loop_exit
                _
            $region82: #{smpl_forward.3} parent=73 // pred_fallthru
              _
          $region74: #{smpl_forward.3} parent=69 // pred_fallthru
            _
          %673 = vnop
        $region70: #{smpl_forward.3} parent=23 // pred_fallthru
          _
        // Predicated region
        $region105: #{smpl_forward.3} parent=23 // pred_check
          %p674 = pneg %p174
        $region106: #{smpl_forward.3} parent=23 // pred_check_branch
          %676 = sbr.rel (%p674) target = $region108
        $region107: #{smpl_forward.3} parent=23 // pred_region
          %s677 = sand.u32 %s164, 1
          %s678 = sand.u32 %s164, 1
          %s679 = smul.addr %s678, 56
          %s680 = scalar_lea.vmem [#allocation4], %s679
          %s681 = sadd.s32 %s21, %s22
          %s682 = smul.u32 2, %s681
          %s683 = smul.addr %s682, 4
          %s684 = scalar_lea.vmem %s5, %s683
          // Predicated region
          $region109: #{smpl_forward.3} parent=107 // pred_check
            _
          $region110: #{smpl_forward.3} parent=107 // pred_check_branch
            %686 = sbr.rel (0) target = $region112
          $region111: #{smpl_forward.3} parent=107 // pred_region
            // Predicated region
            $region113: #{smpl_forward.3} parent=111 // pred_check
              _
            $region114: #{smpl_forward.3} parent=111 // pred_check_branch
              %688 = sbr.rel (0) target = $region116
            $region115: #{smpl_forward.3} parent=111 // pred_region
              // Predicated region
              $region128: #{smpl_forward.3} parent=115 // pred_check
                _
              $region129: #{smpl_forward.3} parent=115 // pred_check_branch
                %716 = sbr.rel (0) target = $region131
              $region130: #{smpl_forward.3} parent=115 // pred_region
                loop: start=0, step=1, limit=1
                $region132: #{smpl_forward.3} parent=130 // loop_pre_header
                  _
                $region133: #{smpl_forward.3} parent=130 // loop_header
                  %s718 = sphi 0, %s722
                  %p719 = scmp.ge.s32.totalorder %s718, 1
                  %s723 = sphi %s684, %s684
                  %s724 = sphi %s680, %s680
                $region134: #{smpl_forward.3} parent=130 // loop_header_branch
                  %721 = sbr.rel (%p719) target = $region138
                $region135: #{smpl_forward.3} parent=130 // loop_body
                  %v725 = vld [vmem:[%s723] sm:$0xff]
                  %726 = vst [vmem:[%s724] sm:$0xff] %v725
                  %v727 = vld [vmem:[%s723 + $0x10] sm:$0xff]
                  %728 = vst [vmem:[%s724 + $0x8] sm:$0xff] %v727
                  %v729 = vld [vmem:[%s723 + $0x20] sm:$0xff]
                  %730 = vst [vmem:[%s724 + $0x10] sm:$0xff] %v729
                  %v731 = vld [vmem:[%s723 + $0x30] sm:$0xff]
                  %732 = vst [vmem:[%s724 + $0x18] sm:$0xff] %v731
                  %v733 = vld [vmem:[%s723 + $0x40] sm:$0xff]
                  %734 = vst [vmem:[%s724 + $0x20] sm:$0xff] %v733
                  %v735 = vld [vmem:[%s723 + $0x50] sm:$0xff]
                  %736 = vst [vmem:[%s724 + $0x28] sm:$0xff] %v735
                  %v737 = vld [vmem:[%s723 + $0x60] sm:$0xff]
                  %738 = vst [vmem:[%s724 + $0x30] sm:$0xff] %v737
                $region136: #{smpl_forward.3} parent=130 // loop_footer
                  %s722 = sadd.s32 1, %s718
                $region137: #{smpl_forward.3} parent=130 // loop_footer_branch
                  %717 = sbr.rel target = $region133
                $region138: #{smpl_forward.3} parent=130 // loop_exit
                  _
              $region131: #{smpl_forward.3} parent=115 // pred_fallthru
                _
              // Predicated region
              $region139: #{smpl_forward.3} parent=115 // pred_check
                _
              $region140: #{smpl_forward.3} parent=115 // pred_check_branch
                %740 = sbr.rel target = $region142
              $region141: #{smpl_forward.3} parent=115 // pred_region
                _
              $region142: #{smpl_forward.3} parent=115 // pred_fallthru
                _
            $region116: #{smpl_forward.3} parent=111 // pred_fallthru
              _
            // Predicated region
            $region117: #{smpl_forward.3} parent=111 // pred_check
              _
            $region118: #{smpl_forward.3} parent=111 // pred_check_branch
              %690 = sbr.rel target = $region120
            $region119: #{smpl_forward.3} parent=111 // pred_region
              %s692 = ssub.s32 256, 1
              loop: start=0, step=1, limit=1
              $region121: #{smpl_forward.3} parent=119 // loop_pre_header
                _
              $region122: #{smpl_forward.3} parent=119 // loop_header
                %s694 = sphi 0, %s698
                %p695 = scmp.ge.s32.totalorder %s694, 1
                %s699 = sphi %s684, %s684
                %s700 = sphi %s680, %s680
              $region123: #{smpl_forward.3} parent=119 // loop_header_branch
                %697 = sbr.rel (%p695) target = $region127
              $region124: #{smpl_forward.3} parent=119 // loop_body
                %v701 = vld [vmem:[%s699] sm:%s692]
                %702 = vst [vmem:[%s700] sm:%s692] %v701
                %v703 = vld [vmem:[%s699 + $0x10] sm:%s692]
                %704 = vst [vmem:[%s700 + $0x8] sm:%s692] %v703
                %v705 = vld [vmem:[%s699 + $0x20] sm:%s692]
                %706 = vst [vmem:[%s700 + $0x10] sm:%s692] %v705
                %v707 = vld [vmem:[%s699 + $0x30] sm:%s692]
                %708 = vst [vmem:[%s700 + $0x18] sm:%s692] %v707
                %v709 = vld [vmem:[%s699 + $0x40] sm:%s692]
                %710 = vst [vmem:[%s700 + $0x20] sm:%s692] %v709
                %v711 = vld [vmem:[%s699 + $0x50] sm:%s692]
                %712 = vst [vmem:[%s700 + $0x28] sm:%s692] %v711
                %v713 = vld [vmem:[%s699 + $0x60] sm:%s692]
                %714 = vst [vmem:[%s700 + $0x30] sm:%s692] %v713
              $region125: #{smpl_forward.3} parent=119 // loop_footer
                %s698 = sadd.s32 1, %s694
              $region126: #{smpl_forward.3} parent=119 // loop_footer_branch
                %693 = sbr.rel target = $region122
              $region127: #{smpl_forward.3} parent=119 // loop_exit
                _
            $region120: #{smpl_forward.3} parent=111 // pred_fallthru
              _
          $region112: #{smpl_forward.3} parent=107 // pred_fallthru
            _
          %741 = vnop
        $region108: #{smpl_forward.3} parent=23 // pred_fallthru
          _
      $region24: #{smpl_forward.3} parent=5 // pred_fallthru
        _
      %p742 = scmp.le.s32.totalorder 1, %s14
      %p743 = scmp.lt.s32.totalorder %s14, 3
      %p744 = pnand %p742, %p743
      %p745 = pneg %p744
      // Predicated region
      $region143: #{smpl_forward.3} parent=5 // pred_check
        _
      $region144: #{smpl_forward.3} parent=5 // pred_check_branch
        %747 = sbr.rel (%p744) target = $region146
      $region145: #{smpl_forward.3} parent=5 // pred_region
        %s748 = ssub.s32 %s14, 1
        %s749 = sand.u32 %s111, 1
        %s750 = sand.u32 %s111, 1
        %s751 = smul.addr %s750, 624
        %s752 = scalar_lea.vmem [#allocation2], %s751
        // Predicated region
        $region147: #{smpl_forward.3} parent=145 // pred_check
          %p753 = pneg %p124
        $region148: #{smpl_forward.3} parent=145 // pred_check_branch
          %755 = sbr.rel (%p753) target = $region150
        $region149: #{smpl_forward.3} parent=145 // pred_region
          _
        $region150: #{smpl_forward.3} parent=145 // pred_fallthru
          _
        %s756 = sand.u32 %s139, 1
        %s757 = sand.u32 %s139, 1
        %s758 = smul.addr %s757, 24
        %s759 = scalar_lea.vmem [#allocation3], %s758
        // Predicated region
        $region151: #{smpl_forward.3} parent=145 // pred_check
          %p760 = pneg %p152
        $region152: #{smpl_forward.3} parent=145 // pred_check_branch
          %762 = sbr.rel (%p760) target = $region154
        $region153: #{smpl_forward.3} parent=145 // pred_region
          _
        $region154: #{smpl_forward.3} parent=145 // pred_fallthru
          _
        %s763 = sand.u32 %s167, 1
        %s764 = sand.u32 %s167, 1
        %s765 = smul.addr %s764, 56
        %s766 = scalar_lea.vmem [#allocation4], %s765
        // Predicated region
        $region155: #{smpl_forward.3} parent=145 // pred_check
          %p767 = pneg %p180
        $region156: #{smpl_forward.3} parent=145 // pred_check_branch
          %769 = sbr.rel (%p767) target = $region158
        $region157: #{smpl_forward.3} parent=145 // pred_region
          _
        $region158: #{smpl_forward.3} parent=145 // pred_fallthru
          _
        %p770 = pneg %p47
        %p771 = pneg %p44
        %p772 = pneg %p68
        %p773 = pneg %p65
        %s774 = sadd.s32 %s23, %s24
        %s775 = smul.u32 2, %s774
        %p776 = scmp.lt.s32.totalorder %s775, 3
        %s777 = scalar_select %p776, %s775, 3
        %s778 = smul.addr %s777, 8
        %s779 = scalar_lea.vmem %s2, %s778
        %p780 = pneg %p96
        %p781 = pneg %p93
        %s782 = sand.u32 %s111, 1
        %s783 = sand.u32 %s111, 1
        %s784 = smul.addr %s783, 624
        %s785 = scalar_lea.vmem [#allocation2], %s784
        %p786 = pneg %p124
        %p787 = pneg %p121
        %s788 = sand.u32 %s139, 1
        %s789 = sand.u32 %s139, 1
        %s790 = smul.addr %s789, 24
        %s791 = scalar_lea.vmem [#allocation3], %s790
        %p792 = pneg %p152
        %p793 = pneg %p149
        %s794 = sand.u32 %s167, 1
        %s795 = sand.u32 %s167, 1
        %s796 = smul.addr %s795, 56
        %s797 = scalar_lea.vmem [#allocation4], %s796
        %p798 = pneg %p180
        %p799 = pneg %p177
        %p800 = pneg %p208
        %p801 = pneg %p205
        %s802 = sadd.s32 %s23, %s24
        %s803 = smul.u32 2, %s802
        %p804 = scmp.lt.s32.totalorder %s803, 3
        %s805 = scalar_select %p804, %s803, 3
        %s806 = smul.addr %s805, 8
        %s807 = scalar_lea.vmem %s6, %s806
        %p808 = pneg %p234
        %p809 = pneg %p231
        %p810 = scmp.lt.s32.totalorder %s23, 1
        %s811 = scalar_select %p810, %s23, 1
        %s812 = smul.addr %s811, 8
        %s813 = scalar_lea.vmem %s7, %s812
        %s814 = sadd.s32 %s23, %s24
        %s815 = smul.u32 2, %s814
        %p816 = scmp.lt.s32.totalorder %s815, 3
        %s817 = scalar_select %p816, %s815, 3
        %s818 = smul.addr %s817, 8
        %s819 = scalar_lea.vmem %s2, %s818
        %s820 = sadd.s32 %s23, %s24
        %s821 = smul.u32 2, %s820
        %s822 = sadd.s32 %s23, %s24
        %s823 = smul.u32 2, %s822
        %s824 = sadd.s32 %s23, %s24
        %s825 = smul.u32 2, %s824
        %s826 = sadd.s32 %s23, %s24
        %s827 = smul.u32 2, %s826
        %s828 = sadd.s32 %s23, %s24
        %s829 = smul.u32 2, %s828
        %p830 = scmp.lt.s32.totalorder %s829, 3
        %s831 = scalar_select %p830, %s829, 3
        %s832 = smul.addr %s831, 8
        %s833 = scalar_lea.vmem %s6, %s832
        %s834 = sadd.s32 %s23, %s24
        %s835 = smul.u32 2, %s834
        %p836 = scmp.lt.s32.totalorder %s23, 1
        %s837 = scalar_select %p836, %s23, 1
        %s838 = smul.addr %s837, 8
        %s839 = scalar_lea.vmem %s7, %s838
        %p841 = scmp.eq.s32.totalorder %s24, 0
        // Predicated region
        $region159: #{smpl_forward.3} parent=145 // pred_check
          %p842 = pneg %p841
        $region160: #{smpl_forward.3} parent=145 // pred_check_branch
          %844 = sbr.rel (%p842) target = $region162
        $region161: #{smpl_forward.3} parent=145 // pred_region
          %vm845 = vcmask 406528
          %846 = vst.msk [vmem:[%s839] sm:$0x3f] %vm845, 0.0
        $region162: #{smpl_forward.3} parent=145 // pred_fallthru
          _
        %v847 = vld [vmem:[%s0] sm:$0x77]
        %v848 = vld [vmem:[%s0 + $0x8] sm:$0x77]
        %v849 = vld [vmem:[%s0 + $0x10] sm:$0x7]
        %v850 = vld [vmem:[%s752] sm:$0xff]
        %v851 = vld [vmem:[%s752 + $0x8] sm:$0xff]
        %v852 = vld [vmem:[%s752 + $0x10] sm:$0xff]
        %v853 = vld [vmem:[%s752 + $0x18] sm:$0xff]
        %v854 = vld [vmem:[%s752 + $0x20] sm:$0xff]
        %v855 = vld [vmem:[%s752 + $0x28] sm:$0xff]
        %v856 = vld [vmem:[%s752 + $0x30] sm:$0xff]
        %v857 = vld [vmem:[%s752 + $0x38] sm:$0xff]
        %v858 = vld [vmem:[%s752 + $0x40] sm:$0xff]
        %v859 = vld [vmem:[%s752 + $0x48] sm:$0xff]
        %v860 = vld [vmem:[%s752 + $0x50] sm:$0xff]
        %v861 = vld [vmem:[%s752 + $0x58] sm:$0xff]
        %v862 = vld [vmem:[%s752 + $0x60] sm:$0xff]
        %v863 = vld [vmem:[%s752 + $0x68] sm:$0xff]
        %v864 = vld [vmem:[%s752 + $0x70] sm:$0xff]
        %v865 = vld [vmem:[%s752 + $0x78] sm:$0xff]
        %v866 = vld [vmem:[%s752 + $0x80] sm:$0xff]
        %v867 = vld [vmem:[%s752 + $0x88] sm:$0xff]
        %v868 = vld [vmem:[%s752 + $0x90] sm:$0xff]
        %v869 = vld [vmem:[%s752 + $0x98] sm:$0xff]
        %v870 = vld [vmem:[%s752 + $0xa0] sm:$0xff]
        %v871 = vld [vmem:[%s752 + $0xa8] sm:$0xff]
        %v872 = vld [vmem:[%s752 + $0xb0] sm:$0xff]
        %v873 = vld [vmem:[%s752 + $0xb8] sm:$0xff]
        %v874 = vld [vmem:[%s752 + $0xc0] sm:$0xff]
        %v875 = vld [vmem:[%s752 + $0xc8] sm:$0xff]
        %v876 = vld [vmem:[%s752 + $0xd0] sm:$0xff]
        %v877 = vld [vmem:[%s752 + $0xd8] sm:$0xff]
        %v878 = vld [vmem:[%s752 + $0xe0] sm:$0xff]
        %v879 = vld [vmem:[%s752 + $0xe8] sm:$0xff]
        %v880 = vld [vmem:[%s752 + $0xf0] sm:$0xff]
        %v881 = vld [vmem:[%s752 + $0xf8] sm:$0xff]
        %v882 = vld [vmem:[%s752 + $0x100] sm:$0xff]
        %v883 = vld [vmem:[%s752 + $0x108] sm:$0xff]
        %v884 = vld [vmem:[%s752 + $0x110] sm:$0xff]
        %v885 = vld [vmem:[%s752 + $0x118] sm:$0xff]
        %v886 = vld [vmem:[%s752 + $0x120] sm:$0xff]
        %v887 = vld [vmem:[%s752 + $0x128] sm:$0xff]
        %v888 = vld [vmem:[%s752 + $0x130] sm:$0xff]
        %v889 = vld [vmem:[%s752 + $0x138] sm:$0xff]
        %v890 = vld [vmem:[%s752 + $0x140] sm:$0xff]
        %v891 = vld [vmem:[%s752 + $0x148] sm:$0xff]
        %v892 = vld [vmem:[%s752 + $0x150] sm:$0xff]
        %v893 = vld [vmem:[%s752 + $0x158] sm:$0xff]
        %v894 = vld [vmem:[%s752 + $0x160] sm:$0xff]
        %v895 = vld [vmem:[%s752 + $0x168] sm:$0xff]
        %v896 = vld [vmem:[%s752 + $0x170] sm:$0xff]
        %v897 = vld [vmem:[%s752 + $0x178] sm:$0xff]
        %v898 = vld [vmem:[%s752 + $0x180] sm:$0xff]
        %v899 = vld [vmem:[%s752 + $0x188] sm:$0xff]
        %v900 = vld [vmem:[%s752 + $0x190] sm:$0xff]
        %v901 = vld [vmem:[%s752 + $0x198] sm:$0xff]
        %v902 = vld [vmem:[%s752 + $0x1a0] sm:$0xff]
        %v903 = vld [vmem:[%s752 + $0x1a8] sm:$0xff]
        %v904 = vld [vmem:[%s752 + $0x1b0] sm:$0xff]
        %v905 = vld [vmem:[%s752 + $0x1b8] sm:$0xff]
        %v906 = vld [vmem:[%s752 + $0x1c0] sm:$0xff]
        %v907 = vld [vmem:[%s752 + $0x1c8] sm:$0xff]
        %v908 = vld [vmem:[%s752 + $0x1d0] sm:$0xff]
        %v909 = vld [vmem:[%s752 + $0x1d8] sm:$0xff]
        %v910 = vld [vmem:[%s752 + $0x1e0] sm:$0xff]
        %v911 = vld [vmem:[%s752 + $0x1e8] sm:$0xff]
        %v912 = vld [vmem:[%s752 + $0x1f0] sm:$0xff]
        %v913 = vld [vmem:[%s752 + $0x1f8] sm:$0xff]
        %v914 = vld [vmem:[%s752 + $0x200] sm:$0xff]
        %v915 = vld [vmem:[%s752 + $0x208] sm:$0xff]
        %v916 = vld [vmem:[%s752 + $0x210] sm:$0xff]
        %v917 = vld [vmem:[%s752 + $0x218] sm:$0xff]
        %v918 = vld [vmem:[%s752 + $0x220] sm:$0xff]
        %v919 = vld [vmem:[%s752 + $0x228] sm:$0xff]
        %v920 = vld [vmem:[%s752 + $0x230] sm:$0xff]
        %v921 = vld [vmem:[%s752 + $0x238] sm:$0xff]
        %v922 = vld [vmem:[%s752 + $0x240] sm:$0xff]
        %v923 = vld [vmem:[%s752 + $0x248] sm:$0xff]
        %v924 = vld [vmem:[%s752 + $0x250] sm:$0xff]
        %v925 = vld [vmem:[%s752 + $0x258] sm:$0xff]
        %v926 = vld [vmem:[%s752 + $0x260] sm:$0xff]
        %v927 = vld [vmem:[%s752 + $0x268] sm:$0x77]
        %v928 = vld [vmem:[%s819] sm:$0x3f]
        %v929 = vld [vmem:[%s819 + $0x8] sm:$0x3f]
        %v933 = vunpack.c.l.b16 %v847
        %v934 = vunpack.c.h.b16 %v847
        %v935 = vunpack.c.l.b16 %v848
        %v936 = vunpack.c.h.b16 %v848
        %v937 = vunpack.c.l.b16 %v849
        %v938 = vpack.c.b16 %v933, %v933
        %v939 = vpack.c.b16 %v934, %v934
        %v940 = vpack.c.b16 %v935, %v935
        %v941 = vpack.c.b16 %v936, %v936
        %v942 = vpack.c.b16 %v937, %v937
        %v1025 = vunpack.c.l.b16 %v850
        %v1026 = vunpack.c.h.b16 %v850
        %v1027 = vunpack.c.l.b16 %v851
        %v1028 = vunpack.c.h.b16 %v851
        %v1029 = vunpack.c.l.b16 %v852
        %v1030 = vunpack.c.h.b16 %v852
        %v1031 = vunpack.c.l.b16 %v853
        %v1032 = vunpack.c.h.b16 %v853
        %v1033 = vunpack.c.l.b16 %v854
        %v1034 = vunpack.c.h.b16 %v854
        %v1035 = vunpack.c.l.b16 %v855
        %v1036 = vunpack.c.h.b16 %v855
        %v1037 = vunpack.c.l.b16 %v856
        %v1038 = vunpack.c.h.b16 %v856
        %v1039 = vunpack.c.l.b16 %v857
        %v1040 = vunpack.c.h.b16 %v857
        %v1041 = vunpack.c.l.b16 %v858
        %v1042 = vunpack.c.h.b16 %v858
        %v1043 = vunpack.c.l.b16 %v859
        %v1044 = vunpack.c.h.b16 %v859
        %v1045 = vunpack.c.l.b16 %v860
        %v1046 = vunpack.c.h.b16 %v860
        %v1047 = vunpack.c.l.b16 %v861
        %v1048 = vunpack.c.h.b16 %v861
        %v1049 = vunpack.c.l.b16 %v862
        %v1050 = vunpack.c.h.b16 %v862
        %v1051 = vunpack.c.l.b16 %v863
        %v1052 = vunpack.c.h.b16 %v863
        %v1053 = vunpack.c.l.b16 %v864
        %v1054 = vunpack.c.h.b16 %v864
        %v1055 = vunpack.c.l.b16 %v865
        %v1056 = vunpack.c.h.b16 %v865
        %v1057 = vunpack.c.l.b16 %v866
        %v1058 = vunpack.c.h.b16 %v866
        %v1059 = vunpack.c.l.b16 %v867
        %v1060 = vunpack.c.h.b16 %v867
        %v1061 = vunpack.c.l.b16 %v868
        %v1062 = vunpack.c.h.b16 %v868
        %v1063 = vunpack.c.l.b16 %v869
        %v1064 = vunpack.c.h.b16 %v869
        %v1065 = vunpack.c.l.b16 %v870
        %v1066 = vunpack.c.h.b16 %v870
        %v1067 = vunpack.c.l.b16 %v871
        %v1068 = vunpack.c.h.b16 %v871
        %v1069 = vunpack.c.l.b16 %v872
        %v1070 = vunpack.c.h.b16 %v872
        %v1071 = vunpack.c.l.b16 %v873
        %v1072 = vunpack.c.h.b16 %v873
        %v1073 = vunpack.c.l.b16 %v874
        %v1074 = vunpack.c.h.b16 %v874
        %v1075 = vunpack.c.l.b16 %v875
        %v1076 = vunpack.c.h.b16 %v875
        %v1077 = vunpack.c.l.b16 %v876
        %v1078 = vunpack.c.h.b16 %v876
        %v1079 = vunpack.c.l.b16 %v877
        %v1080 = vunpack.c.h.b16 %v877
        %v1081 = vunpack.c.l.b16 %v878
        %v1082 = vunpack.c.h.b16 %v878
        %v1083 = vunpack.c.l.b16 %v879
        %v1084 = vunpack.c.h.b16 %v879
        %v1085 = vunpack.c.l.b16 %v880
        %v1086 = vunpack.c.h.b16 %v880
        %v1087 = vunpack.c.l.b16 %v881
        %v1088 = vunpack.c.h.b16 %v881
        %v1089 = vunpack.c.l.b16 %v882
        %v1090 = vunpack.c.h.b16 %v882
        %v1091 = vunpack.c.l.b16 %v883
        %v1092 = vunpack.c.h.b16 %v883
        %v1093 = vunpack.c.l.b16 %v884
        %v1094 = vunpack.c.h.b16 %v884
        %v1095 = vunpack.c.l.b16 %v885
        %v1096 = vunpack.c.h.b16 %v885
        %v1097 = vunpack.c.l.b16 %v886
        %v1098 = vunpack.c.h.b16 %v886
        %v1099 = vunpack.c.l.b16 %v887
        %v1100 = vunpack.c.h.b16 %v887
        %v1101 = vunpack.c.l.b16 %v888
        %v1102 = vunpack.c.h.b16 %v888
        %v1103 = vunpack.c.l.b16 %v889
        %v1104 = vunpack.c.h.b16 %v889
        %v1105 = vunpack.c.l.b16 %v890
        %v1106 = vunpack.c.h.b16 %v890
        %v1107 = vunpack.c.l.b16 %v891
        %v1108 = vunpack.c.h.b16 %v891
        %v1109 = vunpack.c.l.b16 %v892
        %v1110 = vunpack.c.h.b16 %v892
        %v1111 = vunpack.c.l.b16 %v893
        %v1112 = vunpack.c.h.b16 %v893
        %v1113 = vunpack.c.l.b16 %v894
        %v1114 = vunpack.c.h.b16 %v894
        %v1115 = vunpack.c.l.b16 %v895
        %v1116 = vunpack.c.h.b16 %v895
        %v1117 = vunpack.c.l.b16 %v896
        %v1118 = vunpack.c.h.b16 %v896
        %v1119 = vunpack.c.l.b16 %v897
        %v1120 = vunpack.c.h.b16 %v897
        %v1121 = vunpack.c.l.b16 %v898
        %v1122 = vunpack.c.h.b16 %v898
        %v1123 = vunpack.c.l.b16 %v899
        %v1124 = vunpack.c.h.b16 %v899
        %v1125 = vunpack.c.l.b16 %v900
        %v1126 = vunpack.c.h.b16 %v900
        %v1127 = vunpack.c.l.b16 %v901
        %v1128 = vunpack.c.h.b16 %v901
        %v1129 = vunpack.c.l.b16 %v902
        %v1130 = vunpack.c.h.b16 %v902
        %v1131 = vunpack.c.l.b16 %v903
        %v1132 = vunpack.c.h.b16 %v903
        %v1133 = vunpack.c.l.b16 %v904
        %v1134 = vunpack.c.h.b16 %v904
        %v1135 = vunpack.c.l.b16 %v905
        %v1136 = vunpack.c.h.b16 %v905
        %v1137 = vunpack.c.l.b16 %v906
        %v1138 = vunpack.c.h.b16 %v906
        %v1139 = vunpack.c.l.b16 %v907
        %v1140 = vunpack.c.h.b16 %v907
        %v1141 = vunpack.c.l.b16 %v908
        %v1142 = vunpack.c.h.b16 %v908
        %v1143 = vunpack.c.l.b16 %v909
        %v1144 = vunpack.c.h.b16 %v909
        %v1145 = vunpack.c.l.b16 %v910
        %v1146 = vunpack.c.h.b16 %v910
        %v1147 = vunpack.c.l.b16 %v911
        %v1148 = vunpack.c.h.b16 %v911
        %v1149 = vunpack.c.l.b16 %v912
        %v1150 = vunpack.c.h.b16 %v912
        %v1151 = vunpack.c.l.b16 %v913
        %v1152 = vunpack.c.h.b16 %v913
        %v1153 = vunpack.c.l.b16 %v914
        %v1154 = vunpack.c.h.b16 %v914
        %v1155 = vunpack.c.l.b16 %v915
        %v1156 = vunpack.c.h.b16 %v915
        %v1157 = vunpack.c.l.b16 %v916
        %v1158 = vunpack.c.h.b16 %v916
        %v1159 = vunpack.c.l.b16 %v917
        %v1160 = vunpack.c.h.b16 %v917
        %v1161 = vunpack.c.l.b16 %v918
        %v1162 = vunpack.c.h.b16 %v918
        %v1163 = vunpack.c.l.b16 %v919
        %v1164 = vunpack.c.h.b16 %v919
        %v1165 = vunpack.c.l.b16 %v920
        %v1166 = vunpack.c.h.b16 %v920
        %v1167 = vunpack.c.l.b16 %v921
        %v1168 = vunpack.c.h.b16 %v921
        %v1169 = vunpack.c.l.b16 %v922
        %v1170 = vunpack.c.h.b16 %v922
        %v1171 = vunpack.c.l.b16 %v923
        %v1172 = vunpack.c.h.b16 %v923
        %v1173 = vunpack.c.l.b16 %v924
        %v1174 = vunpack.c.h.b16 %v924
        %v1175 = vunpack.c.l.b16 %v925
        %v1176 = vunpack.c.h.b16 %v925
        %v1177 = vunpack.c.l.b16 %v926
        %v1178 = vunpack.c.h.b16 %v926
        %v1179 = vunpack.c.l.b16 %v927
        %v1180 = vunpack.c.h.b16 %v927
        %v1181 = vpack.c.b16 %v1027, %v1025
        %v1182 = vpack.c.b16 %v1028, %v1026
        %v1183 = vpack.c.b16 %v1031, %v1029
        %v1184 = vpack.c.b16 %v1032, %v1030
        %v1185 = vpack.c.b16 %v1035, %v1033
        %v1186 = vpack.c.b16 %v1036, %v1034
        %v1187 = vpack.c.b16 %v1039, %v1037
        %v1188 = vpack.c.b16 %v1040, %v1038
        %v1189 = vpack.c.b16 %v1043, %v1041
        %v1190 = vpack.c.b16 %v1044, %v1042
        %v1191 = vpack.c.b16 %v1047, %v1045
        %v1192 = vpack.c.b16 %v1048, %v1046
        %v1193 = vpack.c.b16 %v1051, %v1049
        %v1194 = vpack.c.b16 %v1052, %v1050
        %v1195 = vpack.c.b16 %v1055, %v1053
        %v1196 = vpack.c.b16 %v1056, %v1054
        %v1197 = vpack.c.b16 %v1059, %v1057
        %v1198 = vpack.c.b16 %v1060, %v1058
        %v1199 = vpack.c.b16 %v1063, %v1061
        %v1200 = vpack.c.b16 %v1064, %v1062
        %v1201 = vpack.c.b16 %v1067, %v1065
        %v1202 = vpack.c.b16 %v1068, %v1066
        %v1203 = vpack.c.b16 %v1071, %v1069
        %v1204 = vpack.c.b16 %v1072, %v1070
        %v1205 = vpack.c.b16 %v1075, %v1073
        %v1206 = vpack.c.b16 %v1076, %v1074
        %v1207 = vpack.c.b16 %v1079, %v1077
        %v1208 = vpack.c.b16 %v1080, %v1078
        %v1209 = vpack.c.b16 %v1083, %v1081
        %v1210 = vpack.c.b16 %v1084, %v1082
        %v1211 = vpack.c.b16 %v1087, %v1085
        %v1212 = vpack.c.b16 %v1088, %v1086
        %v1213 = vpack.c.b16 %v1091, %v1089
        %v1214 = vpack.c.b16 %v1092, %v1090
        %v1215 = vpack.c.b16 %v1095, %v1093
        %v1216 = vpack.c.b16 %v1096, %v1094
        %v1217 = vpack.c.b16 %v1099, %v1097
        %v1218 = vpack.c.b16 %v1100, %v1098
        %v1219 = vpack.c.b16 %v1103, %v1101
        %v1220 = vpack.c.b16 %v1104, %v1102
        %v1221 = vpack.c.b16 %v1107, %v1105
        %v1222 = vpack.c.b16 %v1108, %v1106
        %v1223 = vpack.c.b16 %v1111, %v1109
        %v1224 = vpack.c.b16 %v1112, %v1110
        %v1225 = vpack.c.b16 %v1115, %v1113
        %v1226 = vpack.c.b16 %v1116, %v1114
        %v1227 = vpack.c.b16 %v1119, %v1117
        %v1228 = vpack.c.b16 %v1120, %v1118
        %v1229 = vpack.c.b16 %v1123, %v1121
        %v1230 = vpack.c.b16 %v1124, %v1122
        %v1231 = vpack.c.b16 %v1127, %v1125
        %v1232 = vpack.c.b16 %v1128, %v1126
        %v1233 = vpack.c.b16 %v1131, %v1129
        %v1234 = vpack.c.b16 %v1132, %v1130
        %v1235 = vpack.c.b16 %v1135, %v1133
        %v1236 = vpack.c.b16 %v1136, %v1134
        %v1237 = vpack.c.b16 %v1139, %v1137
        %v1238 = vpack.c.b16 %v1140, %v1138
        %v1239 = vpack.c.b16 %v1143, %v1141
        %v1240 = vpack.c.b16 %v1144, %v1142
        %v1241 = vpack.c.b16 %v1147, %v1145
        %v1242 = vpack.c.b16 %v1148, %v1146
        %v1243 = vpack.c.b16 %v1151, %v1149
        %v1244 = vpack.c.b16 %v1152, %v1150
        %v1245 = vpack.c.b16 %v1155, %v1153
        %v1246 = vpack.c.b16 %v1156, %v1154
        %v1247 = vpack.c.b16 %v1159, %v1157
        %v1248 = vpack.c.b16 %v1160, %v1158
        %v1249 = vpack.c.b16 %v1163, %v1161
        %v1250 = vpack.c.b16 %v1164, %v1162
        %v1251 = vpack.c.b16 %v1167, %v1165
        %v1252 = vpack.c.b16 %v1168, %v1166
        %v1253 = vpack.c.b16 %v1171, %v1169
        %v1254 = vpack.c.b16 %v1172, %v1170
        %v1255 = vpack.c.b16 %v1175, %v1173
        %v1256 = vpack.c.b16 %v1176, %v1174
        %v1257 = vpack.c.b16 %v1179, %v1177
        %v1258 = vpack.c.b16 %v1180, %v1178
        %vm1335 = vcmask 891904
        %v1337 = vsel %vm1335, %v942, 0
        %vm1339 = vcmask 1045504
        %vm1340 = vcmask 1046528
        %v1341 = vsel %vm1339, 4294967295, 65535
        %v1342 = vsel %vm1340, %v1341, 0
        %v1344 = vand.u32 %v1257, %v1342
        %v1347 = vand.u32 %v1258, %v1342
        %1349 = vmatpush.bf16.msra.mxu0 %v1195
        %1350 = vmatpush.bf16.msra.mxu0 %v1193
        %1351 = vmatpush.bf16.msra.mxu0 %v1191
        %1352 = vmatpush.bf16.msra.mxu0 %v1189
        %1353 = vmatpush.bf16.msra.mxu0 %v1187
        %1354 = vmatpush.bf16.msra.mxu0 %v1185
        %1355 = vmatpush.bf16.msra.mxu0 %v1183
        %1356 = vmatpush.bf16.msra.mxu0 %v1181
        %1357 = vmatmul.bf16.gmra.mxu0 %v938
        %v1358 = vpop.f32.mrf.mxu0
        %v1359 = vadd.f32 %v928, %v1358
        %v1360 = vpop.f32.mrf.mxu0
        %1361 = vdwg.mxu0
        %1362 = vmatpush.bf16.msra.mxu0 %v1211
        %1363 = vmatpush.bf16.msra.mxu0 %v1209
        %1364 = vmatpush.bf16.msra.mxu0 %v1207
        %1365 = vmatpush.bf16.msra.mxu0 %v1205
        %1366 = vmatpush.bf16.msra.mxu0 %v1203
        %1367 = vmatpush.bf16.msra.mxu0 %v1201
        %1368 = vmatpush.bf16.msra.mxu0 %v1199
        %1369 = vmatpush.bf16.msra.mxu0 %v1197
        %1370 = vmatmul.bf16.gmra.mxu0 %v939
        %v1371 = vpop.f32.mrf.mxu0
        %v1372 = vadd.f32 %v1359, %v1371
        %v1373 = vpop.f32.mrf.mxu0
        %1374 = vdwg.mxu0
        %1375 = vmatpush.bf16.msra.mxu0 %v1227
        %1376 = vmatpush.bf16.msra.mxu0 %v1225
        %1377 = vmatpush.bf16.msra.mxu0 %v1223
        %1378 = vmatpush.bf16.msra.mxu0 %v1221
        %1379 = vmatpush.bf16.msra.mxu0 %v1219
        %1380 = vmatpush.bf16.msra.mxu0 %v1217
        %1381 = vmatpush.bf16.msra.mxu0 %v1215
        %1382 = vmatpush.bf16.msra.mxu0 %v1213
        %1383 = vmatmul.bf16.gmra.mxu0 %v940
        %v1384 = vpop.f32.mrf.mxu0
        %v1385 = vadd.f32 %v1372, %v1384
        %v1386 = vpop.f32.mrf.mxu0
        %1387 = vdwg.mxu0
        %1388 = vmatpush.bf16.msra.mxu0 %v1243
        %1389 = vmatpush.bf16.msra.mxu0 %v1241
        %1390 = vmatpush.bf16.msra.mxu0 %v1239
        %1391 = vmatpush.bf16.msra.mxu0 %v1237
        %1392 = vmatpush.bf16.msra.mxu0 %v1235
        %1393 = vmatpush.bf16.msra.mxu0 %v1233
        %1394 = vmatpush.bf16.msra.mxu0 %v1231
        %1395 = vmatpush.bf16.msra.mxu0 %v1229
        %1396 = vmatmul.bf16.gmra.mxu0 %v941
        %v1397 = vpop.f32.mrf.mxu0
        %v1398 = vadd.f32 %v1385, %v1397
        %v1399 = vpop.f32.mrf.mxu0
        %1400 = vdwg.mxu0
        %1401 = vmatpush.bf16.msra.mxu0 0
        %1402 = vmatpush.bf16.msra.mxu0 %v1344
        %1403 = vmatpush.bf16.msra.mxu0 %v1255
        %1404 = vmatpush.bf16.msra.mxu0 %v1253
        %1405 = vmatpush.bf16.msra.mxu0 %v1251
        %1406 = vmatpush.bf16.msra.mxu0 %v1249
        %1407 = vmatpush.bf16.msra.mxu0 %v1247
        %1408 = vmatpush.bf16.msra.mxu0 %v1245
        %1409 = vmatmul.bf16.gmra.mxu0 %v1337
        %v1410 = vpop.f32.mrf.mxu0
        %v1411 = vadd.f32 %v1398, %v1410
        %v1412 = vpop.f32.mrf.mxu0
        %1413 = vdwg.mxu0
        %1414 = vmatpush.bf16.msra.mxu0 %v1196
        %1415 = vmatpush.bf16.msra.mxu0 %v1194
        %1416 = vmatpush.bf16.msra.mxu0 %v1192
        %1417 = vmatpush.bf16.msra.mxu0 %v1190
        %1418 = vmatpush.bf16.msra.mxu0 %v1188
        %1419 = vmatpush.bf16.msra.mxu0 %v1186
        %1420 = vmatpush.bf16.msra.mxu0 %v1184
        %1421 = vmatpush.bf16.msra.mxu0 %v1182
        %1422 = vmatmul.bf16.gmra.mxu0 %v938
        %v1423 = vpop.f32.mrf.mxu0
        %v1424 = vadd.f32 %v929, %v1423
        %v1425 = vpop.f32.mrf.mxu0
        %1426 = vdwg.mxu0
        %1427 = vmatpush.bf16.msra.mxu0 %v1212
        %1428 = vmatpush.bf16.msra.mxu0 %v1210
        %1429 = vmatpush.bf16.msra.mxu0 %v1208
        %1430 = vmatpush.bf16.msra.mxu0 %v1206
        %1431 = vmatpush.bf16.msra.mxu0 %v1204
        %1432 = vmatpush.bf16.msra.mxu0 %v1202
        %1433 = vmatpush.bf16.msra.mxu0 %v1200
        %1434 = vmatpush.bf16.msra.mxu0 %v1198
        %1435 = vmatmul.bf16.gmra.mxu0 %v939
        %v1436 = vpop.f32.mrf.mxu0
        %v1437 = vadd.f32 %v1424, %v1436
        %v1438 = vpop.f32.mrf.mxu0
        %1439 = vdwg.mxu0
        %1440 = vmatpush.bf16.msra.mxu0 %v1228
        %1441 = vmatpush.bf16.msra.mxu0 %v1226
        %1442 = vmatpush.bf16.msra.mxu0 %v1224
        %1443 = vmatpush.bf16.msra.mxu0 %v1222
        %1444 = vmatpush.bf16.msra.mxu0 %v1220
        %1445 = vmatpush.bf16.msra.mxu0 %v1218
        %1446 = vmatpush.bf16.msra.mxu0 %v1216
        %1447 = vmatpush.bf16.msra.mxu0 %v1214
        %1448 = vmatmul.bf16.gmra.mxu0 %v940
        %v1449 = vpop.f32.mrf.mxu0
        %v1450 = vadd.f32 %v1437, %v1449
        %v1451 = vpop.f32.mrf.mxu0
        %1452 = vdwg.mxu0
        %1453 = vmatpush.bf16.msra.mxu0 %v1244
        %1454 = vmatpush.bf16.msra.mxu0 %v1242
        %1455 = vmatpush.bf16.msra.mxu0 %v1240
        %1456 = vmatpush.bf16.msra.mxu0 %v1238
        %1457 = vmatpush.bf16.msra.mxu0 %v1236
        %1458 = vmatpush.bf16.msra.mxu0 %v1234
        %1459 = vmatpush.bf16.msra.mxu0 %v1232
        %1460 = vmatpush.bf16.msra.mxu0 %v1230
        %1461 = vmatmul.bf16.gmra.mxu0 %v941
        %v1462 = vpop.f32.mrf.mxu0
        %v1463 = vadd.f32 %v1450, %v1462
        %v1464 = vpop.f32.mrf.mxu0
        %1465 = vdwg.mxu0
        %1466 = vmatpush.bf16.msra.mxu0 0
        %1467 = vmatpush.bf16.msra.mxu0 %v1347
        %1468 = vmatpush.bf16.msra.mxu0 %v1256
        %1469 = vmatpush.bf16.msra.mxu0 %v1254
        %1470 = vmatpush.bf16.msra.mxu0 %v1252
        %1471 = vmatpush.bf16.msra.mxu0 %v1250
        %1472 = vmatpush.bf16.msra.mxu0 %v1248
        %1473 = vmatpush.bf16.msra.mxu0 %v1246
        %1474 = vmatmul.bf16.gmra.mxu0 %v1337
        %v1475 = vpop.f32.mrf.mxu0
        %v1476 = vadd.f32 %v1463, %v1475
        %v1477 = vpop.f32.mrf.mxu0
        %1478 = vdwg.mxu0
        %v1479 = vld [vmem:[%s1] sm:$0xf]
        %v1480 = vld [vmem:[%s1 + $0x4] sm:$0xf]
        %v1481 = vld [vmem:[%s1 + $0x8] sm:$0xf]
        %v1482 = vld [vmem:[%s1 + $0xc] sm:$0xf]
        %v1483 = vld [vmem:[%s759] sm:$0xff]
        %v1484 = vld [vmem:[%s759 + $0x8] sm:$0xff]
        %v1485 = vld [vmem:[%s759 + $0x10] sm:$0xff]
        %v1490 = vunpack.c.l.b16 %v1479
        %v1491 = vunpack.c.l.b16 %v1480
        %v1492 = vunpack.c.l.b16 %v1481
        %v1493 = vunpack.c.l.b16 %v1482
        %v1494 = vpack.c.b16 %v1491, %v1490
        %v1495 = vpack.c.b16 %v1493, %v1492
        %v1499 = vunpack.c.l.b16 %v1483
        %v1500 = vunpack.c.h.b16 %v1483
        %v1501 = vunpack.c.l.b16 %v1484
        %v1502 = vunpack.c.h.b16 %v1484
        %v1503 = vunpack.c.l.b16 %v1485
        %v1504 = vunpack.c.h.b16 %v1485
        %v1505 = vpack.c.b16 %v1501, %v1499
        %v1506 = vpack.c.b16 %v1502, %v1500
        %v1507 = vpack.c.b16 %v1503, %v1503
        %v1508 = vpack.c.b16 %v1504, %v1504
        %vm1511 = vcmask 195584
        %v1513 = vsel %vm1511, %v1494, 0
        %v1516 = vsel %vm1511, %v1495, 0
        %vm1518 = vcmask 1043456
        %v1520 = vsel %vm1518, %v1507, 0
        %v1523 = vsel %vm1518, %v1508, 0
        %1525 = vmatpush.bf16.msra.mxu0 0
        %1526 = vmatpush.bf16.msra.mxu0 0
        %1527 = vmatpush.bf16.msra.mxu0 0
        %1528 = vmatpush.bf16.msra.mxu0 0
        %1529 = vmatpush.bf16.msra.mxu0 0
        %1530 = vmatpush.bf16.msra.mxu0 0
        %1531 = vmatpush.bf16.msra.mxu0 %v1520
        %1532 = vmatpush.bf16.msra.mxu0 %v1505
        %1533 = vmatmul.bf16.gmra.mxu0 %v1513
        %v1534 = vpop.f32.mrf.mxu0
        %v1535 = vadd.f32 0.0, %v1534
        %v1536 = vpop.f32.mrf.mxu0
        %v1537 = vadd.f32 0.0, %v1536
        %1538 = vmatmul.bf16.gmra.mxu0 %v1516
        %v1539 = vpop.f32.mrf.mxu0
        %v1540 = vadd.f32 0.0, %v1539
        %v1541 = vpop.f32.mrf.mxu0
        %1542 = vdwg.mxu0
        %1543 = vmatpush.bf16.msra.mxu0 0
        %1544 = vmatpush.bf16.msra.mxu0 0
        %1545 = vmatpush.bf16.msra.mxu0 0
        %1546 = vmatpush.bf16.msra.mxu0 0
        %1547 = vmatpush.bf16.msra.mxu0 0
        %1548 = vmatpush.bf16.msra.mxu0 0
        %1549 = vmatpush.bf16.msra.mxu0 %v1523
        %1550 = vmatpush.bf16.msra.mxu0 %v1506
        %1551 = vmatmul.bf16.gmra.mxu0 %v1513
        %v1552 = vpop.f32.mrf.mxu0
        %v1553 = vadd.f32 0.0, %v1552
        %v1554 = vpop.f32.mrf.mxu0
        %v1555 = vadd.f32 0.0, %v1554
        %1556 = vmatmul.bf16.gmra.mxu0 %v1516
        %v1557 = vpop.f32.mrf.mxu0
        %v1558 = vadd.f32 0.0, %v1557
        %v1559 = vpop.f32.mrf.mxu0
        %1560 = vdwg.mxu0
        %v1561 = vmul.f32 %v1535, %v1411
        %v1562 = vmul.f32 %v1553, %v1476
        %v1565 = vrot.slane %v1561, 2
        %v1566 = vrot.slane %v1562, 2
        %v1569 = vadd.f32 %v1561, %v1565
        %v1570 = vadd.f32 %v1562, %v1566
        %v1571 = vrot.slane %v1561, 4
        %v1572 = vrot.slane %v1562, 4
        %v1575 = vadd.f32 %v1569, %v1571
        %v1576 = vadd.f32 %v1570, %v1572
        %v1579 = vrot.slane %v1535, 6
        %v1580 = vrot.slane %v1553, 6
        %v1583 = vadd.f32 %v1575, %v1579
        %v1584 = vadd.f32 %v1576, %v1580
        %v1585 = vmul.f32 %v1537, %v1411
        %v1586 = vmul.f32 %v1555, %v1476
        %v1589 = vrot.slane %v1585, 2
        %v1590 = vrot.slane %v1586, 2
        %v1593 = vadd.f32 %v1585, %v1589
        %v1594 = vadd.f32 %v1586, %v1590
        %v1595 = vrot.slane %v1585, 4
        %v1596 = vrot.slane %v1586, 4
        %v1599 = vadd.f32 %v1593, %v1595
        %v1600 = vadd.f32 %v1594, %v1596
        %v1603 = vrot.slane %v1537, 6
        %v1604 = vrot.slane %v1555, 6
        %v1607 = vadd.f32 %v1599, %v1603
        %v1608 = vadd.f32 %v1600, %v1604
        %v1609 = vmul.f32 %v1540, %v1411
        %v1610 = vmul.f32 %v1558, %v1476
        %v1613 = vrot.slane %v1609, 2
        %v1614 = vrot.slane %v1610, 2
        %v1617 = vadd.f32 %v1609, %v1613
        %v1618 = vadd.f32 %v1610, %v1614
        %v1619 = vrot.slane %v1609, 4
        %v1620 = vrot.slane %v1610, 4
        %v1623 = vadd.f32 %v1617, %v1619
        %v1624 = vadd.f32 %v1618, %v1620
        %v1627 = vrot.slane %v1540, 6
        %v1628 = vrot.slane %v1558, 6
        %v1631 = vadd.f32 %v1623, %v1627
        %v1632 = vadd.f32 %v1624, %v1628
        %v1635 = vrot.slane %v1607, 6
        %v1636 = vrot.slane %v1608, 6
        %v1641 = vrot.slane %v1631, 4
        %v1642 = vrot.slane %v1632, 4
        %vm1645 = vcmask 1041408
        %v1646 = vsel %vm1645, %v1583, %v1635
        %v1647 = vsel %vm1645, %v1584, %v1636
        %v1648 = vsel %vm1518, %v1646, %v1641
        %v1649 = vsel %vm1518, %v1647, %v1642
        %1650 = vst [vmem:[%s833] sm:$0x3f] %v1648
        %1651 = vst [vmem:[%s833 + $0x8] sm:$0x3f] %v1649
        %v1652 = vld [vmem:[%s839] sm:$0x3f]
        %v1653 = vpack.c.bf16 %v1648, %v1648
        %v1654 = vpack.c.bf16 %v1649, %v1649
        %v1655 = vld [vmem:[%s766] sm:$0xff]
        %v1656 = vld [vmem:[%s766 + $0x8] sm:$0xff]
        %v1657 = vld [vmem:[%s766 + $0x10] sm:$0xff]
        %v1658 = vld [vmem:[%s766 + $0x18] sm:$0xff]
        %v1659 = vld [vmem:[%s766 + $0x20] sm:$0xff]
        %v1660 = vld [vmem:[%s766 + $0x28] sm:$0xff]
        %v1661 = vld [vmem:[%s766 + $0x30] sm:$0x11]
        %v1669 = vunpack.c.l.b16 %v1655
        %v1670 = vunpack.c.h.b16 %v1655
        %v1671 = vunpack.c.l.b16 %v1656
        %v1672 = vunpack.c.h.b16 %v1656
        %v1673 = vunpack.c.l.b16 %v1657
        %v1674 = vunpack.c.h.b16 %v1657
        %v1675 = vunpack.c.l.b16 %v1658
        %v1676 = vunpack.c.h.b16 %v1658
        %v1677 = vunpack.c.l.b16 %v1659
        %v1678 = vunpack.c.h.b16 %v1659
        %v1679 = vunpack.c.l.b16 %v1660
        %v1680 = vunpack.c.h.b16 %v1660
        %v1681 = vunpack.c.l.b16 %v1661
        %v1682 = vunpack.c.h.b16 %v1661
        %v1683 = vpack.c.b16 %v1671, %v1669
        %v1684 = vpack.c.b16 %v1672, %v1670
        %v1685 = vpack.c.b16 %v1675, %v1673
        %v1686 = vpack.c.b16 %v1676, %v1674
        %v1687 = vpack.c.b16 %v1679, %v1677
        %v1688 = vpack.c.b16 %v1680, %v1678
        %v1689 = vpack.c.b16 %v1681, %v1681
        %v1690 = vpack.c.b16 %v1682, %v1682
        %1699 = vmatpush.bf16.xpose.msra.mxu0 0
        %1700 = vmatpush.bf16.xpose.msra.mxu0 0
        %1701 = vmatpush.bf16.xpose.msra.mxu0 0
        %1702 = vmatpush.bf16.xpose.msra.mxu0 0
        %1703 = vmatpush.bf16.xpose.msra.mxu0 %v1689
        %1704 = vmatpush.bf16.xpose.msra.mxu0 %v1687
        %1705 = vmatpush.bf16.xpose.msra.mxu0 %v1685
        %1706 = vmatpush.bf16.xpose.msra.mxu0 %v1683
        %1707 = vmatmul.bf16.gmra.mxu0 %v1653
        %v1708 = vpop.f32.mrf.mxu0
        %v1709 = vadd.f32 0.0, %v1708
        %v1710 = vpop.f32.mrf.mxu0
        %1711 = vdwg.mxu0
        %1712 = vmatpush.bf16.xpose.msra.mxu0 0
        %1713 = vmatpush.bf16.xpose.msra.mxu0 0
        %1714 = vmatpush.bf16.xpose.msra.mxu0 0
        %1715 = vmatpush.bf16.xpose.msra.mxu0 0
        %1716 = vmatpush.bf16.xpose.msra.mxu0 %v1690
        %1717 = vmatpush.bf16.xpose.msra.mxu0 %v1688
        %1718 = vmatpush.bf16.xpose.msra.mxu0 %v1686
        %1719 = vmatpush.bf16.xpose.msra.mxu0 %v1684
        %1720 = vmatmul.bf16.gmra.mxu0 %v1654
        %v1721 = vpop.f32.mrf.mxu0
        %v1722 = vadd.f32 %v1709, %v1721
        %v1723 = vpop.f32.mrf.mxu0
        %1724 = vdwg.mxu0
        %v1725 = vadd.f32 %v1652, %v1722
        %vm1726 = vcmask 406528
        %1727 = vst.msk [vmem:[%s839] sm:$0x3f] %vm1726, %v1725
        %s1728 = sadd.s32 %s23, %s24
        %s1729 = smul.u32 2, %s1728
        %p1730 = scmp.lt.s32.totalorder %s1729, 3
        %s1731 = scalar_select %p1730, %s1729, 3
        %s1732 = smul.addr %s1731, 8
        %s1733 = scalar_lea.vmem %s6, %s1732
        %p1734 = scmp.lt.s32.totalorder %s23, 1
        %s1735 = scalar_select %p1734, %s23, 1
        %s1736 = smul.addr %s1735, 8
        %s1737 = scalar_lea.vmem %s7, %s1736
        // Predicated region
        $region163: #{smpl_forward.3} parent=145 // pred_check
          %p1738 = pneg %p205
        $region164: #{smpl_forward.3} parent=145 // pred_check_branch
          %1740 = sbr.rel (%p1738) target = $region166
        $region165: #{smpl_forward.3} parent=145 // pred_region
          %s1741 = sadd.s32 %s23, %s24
          %s1742 = smul.u32 2, %s1741
        $region166: #{smpl_forward.3} parent=145 // pred_fallthru
          _
        // Predicated region
        $region167: #{smpl_forward.3} parent=145 // pred_check
          %p1743 = pneg %p231
        $region168: #{smpl_forward.3} parent=145 // pred_check_branch
          %1745 = sbr.rel (%p1743) target = $region170
        $region169: #{smpl_forward.3} parent=145 // pred_region
          _
        $region170: #{smpl_forward.3} parent=145 // pred_fallthru
          _
      $region146: #{smpl_forward.3} parent=5 // pred_fallthru
        _
      %p1746 = scmp.le.s32.totalorder 2, %s14
      // Predicated region
      $region171: #{smpl_forward.3} parent=5 // pred_check
        %p1747 = pneg %p1746
      $region172: #{smpl_forward.3} parent=5 // pred_check_branch
        %1749 = sbr.rel (%p1747) target = $region174
      $region173: #{smpl_forward.3} parent=5 // pred_region
        %s1750 = ssub.s32 %s14, 2
        // Predicated region
        $region175: #{smpl_forward.3} parent=173 // pred_check
          %p1751 = pneg %p211
        $region176: #{smpl_forward.3} parent=173 // pred_check_branch
          %1753 = sbr.rel (%p1751) target = $region178
        $region177: #{smpl_forward.3} parent=173 // pred_region
          %s1754 = sadd.s32 %s25, %s26
          %s1755 = smul.u32 2, %s1754
          %p1756 = scmp.lt.s32.totalorder %s1755, 3
          %s1757 = scalar_select %p1756, %s1755, 3
          %s1758 = smul.addr %s1757, 8
          %s1759 = scalar_lea.vmem %s6, %s1758
        $region178: #{smpl_forward.3} parent=173 // pred_fallthru
          _
        // Predicated region
        $region179: #{smpl_forward.3} parent=173 // pred_check
          %p1760 = pneg %p237
        $region180: #{smpl_forward.3} parent=173 // pred_check_branch
          %1762 = sbr.rel (%p1760) target = $region182
        $region181: #{smpl_forward.3} parent=173 // pred_region
          %p1763 = scmp.lt.s32.totalorder %s25, 1
          %s1764 = scalar_select %p1763, %s25, 1
          %s1765 = smul.addr %s1764, 8
          %s1766 = scalar_lea.vmem %s7, %s1765
        $region182: #{smpl_forward.3} parent=173 // pred_fallthru
          _
      $region174: #{smpl_forward.3} parent=5 // pred_fallthru
        _
    $region6: #{smpl_forward.3} parent=1 // loop_footer
      %s18 = sadd.s32 1, %s14
    $region7: #{smpl_forward.3} parent=1 // loop_footer_branch
      %13 = sbr.rel target = $region3
    $region8: #{smpl_forward.3} parent=1 // loop_exit
      _

</llo_original>
